<compile_context>
chip_gen: v5e
topology: v5e:2x2
jax: 0.10.0
libtpu: 0.0.40
codegen_flags: <defaults>
</compile_context>

<pallas_src>
import jax
import jax.numpy as jnp
import numpy as np
from jax import lax
from jax.experimental import pallas as pl
from jax.experimental.pallas import tpu as pltpu

# Fixed LeNet-5 / CIFAR-10 geometry (implied by the 16*5*5 flatten).
_C0, _H0, _W0 = 3, 32, 32
_C1, _K = 6, 5
_OH1 = _H0 - _K + 1          # 28   conv1 output spatial size
_PH1 = _OH1 // 2             # 14   pool1 output spatial size
_HP1 = _H0 // 2              # 16   rows/sample in pool1 scratch (incl. 2 garbage)
_C2 = 16
_OH2 = _PH1 - _K + 1         # 10   conv2 output spatial size
_PH2 = _OH2 // 2             # 5    pool2 output spatial size
_HP2 = _HP1 // 2             # 8    rows/sample in pool2 scratch (incl. 3 garbage)
_L1 = _PH1 * _C1             # 84   pooled conv1 lane width (wo*6 + c)
_L2 = _PH2 * _C2             # 80   pooled conv2 lane width (wo*16 + c)
_FC1_IN, _FC1, _FC2, _FC3 = _C2 * _PH2 * _PH2, 120, 84, 10
_NEG_SLOPE = 0.01            # PyTorch LeakyReLU default

_TB = 8                      # samples per grid step (sweepable; VMEM use ~1.5 MB)


# ----------------------------------------------------------------------------
# Fused batched kernel. Activation layout: rows = (sample, h), lanes = (w, c)
# with c fastest (NHWC flattened). Rows with h >= valid height per stage are
# "garbage rows" that never feed a valid output.
# ----------------------------------------------------------------------------
def _lenet_kernel(x_ref,                                    # [TB*32, 96]
                  w1_ref, b1_ref,                           # [5,96,84], [1,84]
                  w2_ref, b2_ref,                           # [5,84,80], [1,80]
                  fw1_ref, fb1_ref,                         # [5,80,120], [1,120]
                  fw2_ref, fb2_ref,                         # [120,84],  [1,84]
                  fw3_ref, fb3_ref,                         # [84,10],   [1,10]
                  out_ref,                                  # [TB, 10]
                  a1_ref, p1_ref, a2_ref, p2_ref):          # VMEM scratch
    f32 = jnp.float32
    r1 = _TB * _H0 - (_K - 1)       # batched conv1 output rows (TB*32 - 4)
    r2 = _TB * _HP1 - (_K - 1)      # batched conv2 output rows (TB*16 - 4)

    # ---- conv1 (+ folded W-pool): 5 batched Toeplitz matmuls, M = r1 --------
    acc1 = jnp.dot(x_ref[pl.ds(0, r1), :], w1_ref[0], preferred_element_type=f32)
    for kh in range(1, _K):
        acc1 = acc1 + jnp.dot(x_ref[pl.ds(kh, r1), :], w1_ref[kh],
                              preferred_element_type=f32)
    a1_ref[pl.ds(0, r1), :] = acc1
    a1_ref[pl.ds(r1, _K - 1), :] = jnp.zeros((_K - 1, _L1), f32)   # define tail rows

    # ---- pool1 along H: average even/odd rows (stride-2 loads), + bias ------
    ev1 = a1_ref[pl.ds(0, _TB * _HP1, stride=2), :]
    od1 = a1_ref[pl.ds(1, _TB * _HP1, stride=2), :]
    p1_ref[...] = 0.5 * (ev1 + od1) + b1_ref[...]                  # [TB*16, 84]

    # ---- conv2 (+ folded W-pool): 5 batched Toeplitz matmuls, M = r2 --------
    acc2 = jnp.dot(p1_ref[pl.ds(0, r2), :], w2_ref[0], preferred_element_type=f32)
    for kh in range(1, _K):
        acc2 = acc2 + jnp.dot(p1_ref[pl.ds(kh, r2), :], w2_ref[kh],
                              preferred_element_type=f32)
    a2_ref[pl.ds(0, r2), :] = acc2
    a2_ref[pl.ds(r2, _K - 1), :] = jnp.zeros((_K - 1, _L2), f32)

    # ---- pool2 along H + bias -> [TB*8, 80] (rows s*8+h, h<5 valid) ---------
    ev2 = a2_ref[pl.ds(0, _TB * _HP2, stride=2), :]
    od2 = a2_ref[pl.ds(1, _TB * _HP2, stride=2), :]
    p2_ref[...] = 0.5 * (ev2 + od2) + b2_ref[...]

    # ---- fc1: batched (M = TB) via stride-8 per-height row gathers ----------
    # (torch NCHW .view(B,400) flatten folded into the permuted fw1 weight)
    h1 = jnp.dot(p2_ref[pl.ds(0, _TB, stride=_HP2), :], fw1_ref[0],
                 preferred_element_type=f32)
    for hh in range(1, _PH2):
        h1 = h1 + jnp.dot(p2_ref[pl.ds(hh, _TB, stride=_HP2), :], fw1_ref[hh],
                          preferred_element_type=f32)
    h1 = h1 + fb1_ref[...]
    h1 = jnp.where(h1 >= 0.0, h1, _NEG_SLOPE * h1)                 # LeakyReLU

    h2 = jnp.dot(h1, fw2_ref[...], preferred_element_type=f32) + fb2_ref[...]
    h2 = jnp.where(h2 >= 0.0, h2, _NEG_SLOPE * h2)                 # LeakyReLU

    out_ref[...] = jnp.dot(h2, fw3_ref[...], preferred_element_type=f32) + fb3_ref[...]


# ----------------------------------------------------------------------------
# One-time weight reorganization (plain JAX in the wrapper).
# ----------------------------------------------------------------------------
def _conv_toeplitz(w, w_in):
    """w: [OC, C, K, K] -> [K, w_in*C, OW*OC] per-kh Toeplitz blocks.

    big[kh, w*C + c, ow*OC + oc] = w[oc, c, kh, w - ow]  (0 if w-ow not in [0,K)).
    """
    oc_n, c_n, k, _ = w.shape
    ow_n = w_in - k + 1
    kw_mat = jnp.arange(w_in)[:, None] - jnp.arange(ow_n)[None, :]      # [w_in, ow]
    valid = ((kw_mat >= 0) & (kw_mat < k)).astype(w.dtype)
    kw_idx = jnp.clip(kw_mat, 0, k - 1)
    wt = jnp.transpose(w, (2, 1, 0, 3))                                 # [kh, c, oc, kw]
    g = wt[:, :, :, kw_idx] * valid[None, None, None, :, :]             # [kh, c, oc, w, ow]
    g = jnp.transpose(g, (0, 3, 1, 4, 2))                               # [kh, w, c, ow, oc]
    return g.reshape(k, w_in * c_n, ow_n * oc_n)


def _pool_w_matrix(w_in, c_n):
    """[w_in*C, (w_in//2)*C]: 0.5 where c matches and w//2 == j (pool along W)."""
    wo = w_in // 2
    m = (jnp.arange(w_in)[:, None] // 2 == jnp.arange(wo)[None, :]).astype(jnp.float32) * 0.5
    eye = jnp.eye(c_n, dtype=jnp.float32)
    return (m[:, None, :, None] * eye[None, :, None, :]).reshape(w_in * c_n, wo * c_n)


def _prepare_constants(params):
    # Toeplitz conv weights with the W-direction avg-pool folded in.
    w1big = _conv_toeplitz(params["w1"], _W0)                           # [5, 96, 168]
    w2big = _conv_toeplitz(params["w2"], _PH1)                          # [5, 84, 160]
    pw1 = _pool_w_matrix(_OH1, _C1)                                     # [168, 84]
    pw2 = _pool_w_matrix(_OH2, _C2)                                     # [160, 80]
    w1f = w1big @ pw1                                                   # [5, 96, 84]
    w2f = w2big @ pw2                                                   # [5, 84, 80]
    # Biases at pooled lane width (avg-pool of a constant is the constant).
    b1p = jnp.tile(params["b1"], _PH1).reshape(1, _L1)                  # [1, 84]
    b2p = jnp.tile(params["b2"], _PH2).reshape(1, _L2)                  # [1, 80]
    # fc1 weight permuted so it contracts the per-height (w, c) lane layout,
    # reproducing torch's NCHW .view(B, 400) flatten order (c*25 + h*5 + w).
    fw1p = jnp.transpose(params["fw1"].reshape(_FC1, _C2, _PH2, _PH2),
                         (2, 3, 1, 0)).reshape(_PH2, _PH2 * _C2, _FC1)  # [5, 80, 120]
    fb1row = params["fb1"].reshape(1, _FC1)
    fw2t = params["fw2"].T                                              # [120, 84]
    fb2row = params["fb2"].reshape(1, _FC2)
    fw3t = params["fw3"].T                                              # [84, 10]
    fb3row = params["fb3"].reshape(1, _FC3)
    return (w1f, b1p, w2f, b2p, fw1p, fb1row, fw2t, fb2row, fw3t, fb3row)


# ----------------------------------------------------------------------------
# Forward: one pallas_call, grid over batch tiles, all weights VMEM-resident.
# ----------------------------------------------------------------------------
def lenet5_forward(params, x):
    """x: [B, 3, 32, 32] float32 -> logits [B, 10]."""
    B = x.shape[0]
    consts = _prepare_constants(params)

    # Pad the batch to a multiple of the batch tile.
    Bp = ((B + _TB - 1) // _TB) * _TB
    if Bp != B:
        x = jnp.pad(x, ((0, Bp - B), (0, 0), (0, 0), (0, 0)))
    n_steps = Bp // _TB

    # NHWC with (W, C) flattened into lanes, then (batch, H) merged into rows.
    x2d = jnp.transpose(x, (0, 2, 3, 1)).reshape(Bp * _H0, _W0 * _C0)   # [Bp*32, 96]

    def const_spec(a):
        nd = a.ndim
        return pl.BlockSpec(a.shape, lambda b, _nd=nd: (0,) * _nd)

    r1 = _TB * _H0 - (_K - 1)
    r2 = _TB * _HP1 - (_K - 1)
    flops_per_step = 2 * (r1 * (_W0 * _C0) * _L1 * _K
                          + r2 * (_PH1 * _C1) * _L2 * _K
                          + _TB * (_FC1_IN * _FC1 + _FC1 * _FC2 + _FC2 * _FC3))
    cost = pl.CostEstimate(
        flops=n_steps * flops_per_step,
        transcendentals=0,
        bytes_accessed=4 * (x2d.size + sum(int(c.size) for c in consts) + Bp * _FC3),
    )

    out = pl.pallas_call(
        _lenet_kernel,
        out_shape=jax.ShapeDtypeStruct((Bp, _FC3), jnp.float32),
        grid=(n_steps,),
        in_specs=[pl.BlockSpec((_TB * _H0, _W0 * _C0), lambda b: (b, 0))]
                 + [const_spec(c) for c in consts],
        out_specs=pl.BlockSpec((_TB, _FC3), lambda b: (b, 0)),
        scratch_shapes=[pltpu.VMEM((_TB * _H0, _L1), jnp.float32),    # conv1+Wpool out
                        pltpu.VMEM((_TB * _HP1, _L1), jnp.float32),   # pool1 out
                        pltpu.VMEM((_TB * _HP1, _L2), jnp.float32),   # conv2+Wpool out
                        pltpu.VMEM((_TB * _HP2, _L2), jnp.float32)],  # pool2 out
        compiler_params=pltpu.CompilerParams(dimension_semantics=("parallel",)),
        cost_estimate=cost,
    )(x2d, *consts)
    return out[:B]


# ----------------------------------------------------------------------------
# Deterministic PyTorch-style parameter init.
# ----------------------------------------------------------------------------
def init_params(key):
    ks = jax.random.split(key, 10)

    def uni(k, shape, bound):
        return jax.random.uniform(k, shape, jnp.float32, -bound, bound)

    def conv_init(kw, kb, oc, ic, k):
        bound = 1.0 / float(np.sqrt(ic * k * k))
        return uni(kw, (oc, ic, k, k), bound), uni(kb, (oc,), bound)

    def lin_init(kw, kb, out, inp):
        bound = 1.0 / float(np.sqrt(inp))
        return uni(kw, (out, inp), bound), uni(kb, (out,), bound)

    w1, b1 = conv_init(ks[0], ks[1], _C1, _C0, _K)
    w2, b2 = conv_init(ks[2], ks[3], _C2, _C1, _K)
    fw1, fb1 = lin_init(ks[4], ks[5], _FC1, _FC1_IN)
    fw2, fb2 = lin_init(ks[6], ks[7], _FC2, _FC1)
    fw3, fb3 = lin_init(ks[8], ks[9], _FC3, _FC2)
    return dict(w1=w1, b1=b1, w2=w2, b2=b2,
                fw1=fw1, fb1=fb1, fw2=fw2, fb2=fb2, fw3=fw3, fb3=fb3)


# Pure-JAX reference (no Pallas) for the correctness check.
def reference_forward(params, x):
    def conv(x, w, b):
        y = lax.conv_general_dilated(x, w, (1, 1), "VALID",
                                     dimension_numbers=("NCHW", "OIHW", "NCHW"))
        return y + b.reshape(1, -1, 1, 1)

    def pool(x):
        return lax.reduce_window(x, 0.0, lax.add, (1, 1, 2, 2), (1, 1, 2, 2), "VALID") / 4.0

    def lrelu(v):
        return jnp.where(v >= 0, v, _NEG_SLOPE * v)

    y = pool(conv(x, params["w1"], params["b1"]))
    y = pool(conv(y, params["w2"], params["b2"]))
    y = y.reshape(x.shape[0], -1)                    # NCHW flatten == torch .view
    y = lrelu(y @ params["fw1"].T + params["fb1"])
    y = lrelu(y @ params["fw2"].T + params["fb2"])
    return y @ params["fw3"].T + params["fb3"]


# TODO(synk): nn.CrossEntropyLoss (self.critierion) is not part of forward(); not implemented.

if __name__ == "__main__":
    key = jax.random.PRNGKey(0)
    k_param, k_x = jax.random.split(key)
    params = init_params(k_param)
    # Spatial size must be 32x32 (the 16*5*5 flatten hard-codes it); B=12 also
    # exercises the batch-padding path (padded to 16 -> grid of 2 steps).
    x = jax.random.normal(k_x, (12, 3, 32, 32), dtype=jnp.float32)

    logits = jax.block_until_ready(jax.jit(lenet5_forward)(params, x))
    assert logits.shape == (12, 10) and logits.dtype == jnp.float32

    ref = jax.block_until_ready(reference_forward(params, x))
    np.testing.assert_allclose(np.asarray(logits), np.asarray(ref), rtol=1e-3, atol=1e-3)

    print("KERNEL_OK")
</pallas_src>

<mosaic_0001>
module attributes {stable_mosaic.version = 11 : i64} {
  func.func @_lenet_kernel(%arg0: i32, %arg1: memref<256x96xf32, #tpu.memory_space<vmem>>, %arg2: memref<5x96x84xf32, #tpu.memory_space<vmem>>, %arg3: memref<1x84xf32, #tpu.memory_space<vmem>>, %arg4: memref<5x84x80xf32, #tpu.memory_space<vmem>>, %arg5: memref<1x80xf32, #tpu.memory_space<vmem>>, %arg6: memref<5x80x120xf32, #tpu.memory_space<vmem>>, %arg7: memref<1x120xf32, #tpu.memory_space<vmem>>, %arg8: memref<120x84xf32, #tpu.memory_space<vmem>>, %arg9: memref<1x84xf32, #tpu.memory_space<vmem>>, %arg10: memref<84x10xf32, #tpu.memory_space<vmem>>, %arg11: memref<1x10xf32, #tpu.memory_space<vmem>>, %arg12: memref<8x10xf32, #tpu.memory_space<vmem>>, %arg13: memref<256x84xf32, #tpu.memory_space<vmem>>, %arg14: memref<128x84xf32, #tpu.memory_space<vmem>>, %arg15: memref<128x80xf32, #tpu.memory_space<vmem>>, %arg16: memref<64x80xf32, #tpu.memory_space<vmem>>) attributes {dimension_semantics = [#tpu.dimension_semantics<parallel>], iteration_bounds = array<i64: 2>, scalar_prefetch = 0 : i64, scratch_operands = 4 : i64, tpu.core_type = #tpu.core_type<tc>, window_params = [{transform_indices = @transform_0, window_bounds = array<i64: 256, 96>}, {pipeline_mode = #tpu.pipeline_mode<synchronous>, transform_indices = @transform_1, window_bounds = array<i64: 5, 96, 84>}, {pipeline_mode = #tpu.pipeline_mode<synchronous>, transform_indices = @transform_2, window_bounds = array<i64: 1, 84>}, {pipeline_mode = #tpu.pipeline_mode<synchronous>, transform_indices = @transform_3, window_bounds = array<i64: 5, 84, 80>}, {pipeline_mode = #tpu.pipeline_mode<synchronous>, transform_indices = @transform_4, window_bounds = array<i64: 1, 80>}, {pipeline_mode = #tpu.pipeline_mode<synchronous>, transform_indices = @transform_5, window_bounds = array<i64: 5, 80, 120>}, {pipeline_mode = #tpu.pipeline_mode<synchronous>, transform_indices = @transform_6, window_bounds = array<i64: 1, 120>}, {pipeline_mode = #tpu.pipeline_mode<synchronous>, transform_indices = @transform_7, window_bounds = array<i64: 120, 84>}, {pipeline_mode = #tpu.pipeline_mode<synchronous>, transform_indices = @transform_8, window_bounds = array<i64: 1, 84>}, {pipeline_mode = #tpu.pipeline_mode<synchronous>, transform_indices = @transform_9, window_bounds = array<i64: 84, 10>}, {pipeline_mode = #tpu.pipeline_mode<synchronous>, transform_indices = @transform_10, window_bounds = array<i64: 1, 10>}, {transform_indices = @transform_11, window_bounds = array<i64: 8, 10>}]} {
    %c0 = arith.constant 0 : index
    %c0_0 = arith.constant 0 : index
    %0 = vector.load %arg1[%c0, %c0_0] : memref<256x96xf32, #tpu.memory_space<vmem>>, vector<252x96xf32>
    %c0_1 = arith.constant 0 : index
    %c0_2 = arith.constant 0 : index
    %c0_3 = arith.constant 0 : index
    %1 = vector.load %arg2[%c0_1, %c0_2, %c0_3] : memref<5x96x84xf32, #tpu.memory_space<vmem>>, vector<1x96x84xf32>
    %2 = vector.shape_cast %1 : vector<1x96x84xf32> to vector<96x84xf32>
    %cst = arith.constant dense<0.000000e+00> : vector<252x84xf32>
    %3 = tpu.matmul %0, %2, %cst {dimension_numbers = #tpu.dot_dimension_numbers<[1], [0], [0], [1], [0, 0, 1, 1], [], []>} : vector<252x96xf32>, vector<96x84xf32>, vector<252x84xf32> -> vector<252x84xf32>
    %c1 = arith.constant 1 : index
    %c0_4 = arith.constant 0 : index
    %4 = vector.load %arg1[%c1, %c0_4] : memref<256x96xf32, #tpu.memory_space<vmem>>, vector<252x96xf32>
    %c1_5 = arith.constant 1 : index
    %c0_6 = arith.constant 0 : index
    %c0_7 = arith.constant 0 : index
    %5 = vector.load %arg2[%c1_5, %c0_6, %c0_7] : memref<5x96x84xf32, #tpu.memory_space<vmem>>, vector<1x96x84xf32>
    %6 = vector.shape_cast %5 : vector<1x96x84xf32> to vector<96x84xf32>
    %cst_8 = arith.constant dense<0.000000e+00> : vector<252x84xf32>
    %7 = tpu.matmul %4, %6, %cst_8 {dimension_numbers = #tpu.dot_dimension_numbers<[1], [0], [0], [1], [0, 0, 1, 1], [], []>} : vector<252x96xf32>, vector<96x84xf32>, vector<252x84xf32> -> vector<252x84xf32>
    %8 = arith.addf %3, %7 : vector<252x84xf32>
    %c2 = arith.constant 2 : index
    %c0_9 = arith.constant 0 : index
    %9 = vector.load %arg1[%c2, %c0_9] : memref<256x96xf32, #tpu.memory_space<vmem>>, vector<252x96xf32>
    %c2_10 = arith.constant 2 : index
    %c0_11 = arith.constant 0 : index
    %c0_12 = arith.constant 0 : index
    %10 = vector.load %arg2[%c2_10, %c0_11, %c0_12] : memref<5x96x84xf32, #tpu.memory_space<vmem>>, vector<1x96x84xf32>
    %11 = vector.shape_cast %10 : vector<1x96x84xf32> to vector<96x84xf32>
    %cst_13 = arith.constant dense<0.000000e+00> : vector<252x84xf32>
    %12 = tpu.matmul %9, %11, %cst_13 {dimension_numbers = #tpu.dot_dimension_numbers<[1], [0], [0], [1], [0, 0, 1, 1], [], []>} : vector<252x96xf32>, vector<96x84xf32>, vector<252x84xf32> -> vector<252x84xf32>
    %13 = arith.addf %8, %12 : vector<252x84xf32>
    %c3 = arith.constant 3 : index
    %c0_14 = arith.constant 0 : index
    %14 = vector.load %arg1[%c3, %c0_14] : memref<256x96xf32, #tpu.memory_space<vmem>>, vector<252x96xf32>
    %c3_15 = arith.constant 3 : index
    %c0_16 = arith.constant 0 : index
    %c0_17 = arith.constant 0 : index
    %15 = vector.load %arg2[%c3_15, %c0_16, %c0_17] : memref<5x96x84xf32, #tpu.memory_space<vmem>>, vector<1x96x84xf32>
    %16 = vector.shape_cast %15 : vector<1x96x84xf32> to vector<96x84xf32>
    %cst_18 = arith.constant dense<0.000000e+00> : vector<252x84xf32>
    %17 = tpu.matmul %14, %16, %cst_18 {dimension_numbers = #tpu.dot_dimension_numbers<[1], [0], [0], [1], [0, 0, 1, 1], [], []>} : vector<252x96xf32>, vector<96x84xf32>, vector<252x84xf32> -> vector<252x84xf32>
    %18 = arith.addf %13, %17 : vector<252x84xf32>
    %c4 = arith.constant 4 : index
    %c0_19 = arith.constant 0 : index
    %19 = vector.load %arg1[%c4, %c0_19] : memref<256x96xf32, #tpu.memory_space<vmem>>, vector<252x96xf32>
    %c4_20 = arith.constant 4 : index
    %c0_21 = arith.constant 0 : index
    %c0_22 = arith.constant 0 : index
    %20 = vector.load %arg2[%c4_20, %c0_21, %c0_22] : memref<5x96x84xf32, #tpu.memory_space<vmem>>, vector<1x96x84xf32>
    %21 = vector.shape_cast %20 : vector<1x96x84xf32> to vector<96x84xf32>
    %cst_23 = arith.constant dense<0.000000e+00> : vector<252x84xf32>
    %22 = tpu.matmul %19, %21, %cst_23 {dimension_numbers = #tpu.dot_dimension_numbers<[1], [0], [0], [1], [0, 0, 1, 1], [], []>} : vector<252x96xf32>, vector<96x84xf32>, vector<252x84xf32> -> vector<252x84xf32>
    %23 = arith.addf %18, %22 : vector<252x84xf32>
    %c0_24 = arith.constant 0 : index
    %c0_25 = arith.constant 0 : index
    %24 = vector.load %arg13[%c0_24, %c0_25] : memref<256x84xf32, #tpu.memory_space<vmem>>, vector<252x84xf32>
    tpu.vector_store %arg13[%c0_24, %c0_25], %23 {strides = array<i32>} : memref<256x84xf32, #tpu.memory_space<vmem>>, vector<252x84xf32>,
    %cst_26 = arith.constant 0.000000e+00 : f32
    %25 = vector.broadcast %cst_26 : f32 to vector<4x84xf32>
    %c252 = arith.constant 252 : index
    %c0_27 = arith.constant 0 : index
    %26 = vector.load %arg13[%c252, %c0_27] : memref<256x84xf32, #tpu.memory_space<vmem>>, vector<4x84xf32>
    tpu.vector_store %arg13[%c252, %c0_27], %25 {strides = array<i32>} : memref<256x84xf32, #tpu.memory_space<vmem>>, vector<4x84xf32>,
    %c0_28 = arith.constant 0 : index
    %c0_29 = arith.constant 0 : index
    %27 = tpu.strided_load %arg13[%c0_28, %c0_29] {strides = array<i32: 2, 1>} : memref<256x84xf32, #tpu.memory_space<vmem>>, vector<128x84xf32>
    %c1_30 = arith.constant 1 : index
    %c0_31 = arith.constant 0 : index
    %28 = tpu.strided_load %arg13[%c1_30, %c0_31] {strides = array<i32: 2, 1>} : memref<256x84xf32, #tpu.memory_space<vmem>>, vector<128x84xf32>
    %29 = arith.addf %27, %28 : vector<128x84xf32>
    %cst_32 = arith.constant 5.000000e-01 : f32
    %30 = vector.broadcast %cst_32 : f32 to vector<128x84xf32>
    %31 = arith.mulf %30, %29 : vector<128x84xf32>
    %c0_33 = arith.constant 0 : index
    %c0_34 = arith.constant 0 : index
    %32 = vector.load %arg3[%c0_33, %c0_34] : memref<1x84xf32, #tpu.memory_space<vmem>>, vector<1x84xf32>
    %33 = vector.broadcast %32 : vector<1x84xf32> to vector<128x84xf32>
    %34 = arith.addf %31, %33 : vector<128x84xf32>
    %c0_35 = arith.constant 0 : index
    %c0_36 = arith.constant 0 : index
    %35 = vector.load %arg14[%c0_35, %c0_36] : memref<128x84xf32, #tpu.memory_space<vmem>>, vector<128x84xf32>
    tpu.vector_store %arg14[%c0_35, %c0_36], %34 {strides = array<i32>} : memref<128x84xf32, #tpu.memory_space<vmem>>, vector<128x84xf32>,
    %c0_37 = arith.constant 0 : index
    %c0_38 = arith.constant 0 : index
    %36 = vector.load %arg14[%c0_37, %c0_38] : memref<128x84xf32, #tpu.memory_space<vmem>>, vector<124x84xf32>
    %c0_39 = arith.constant 0 : index
    %c0_40 = arith.constant 0 : index
    %c0_41 = arith.constant 0 : index
    %37 = vector.load %arg4[%c0_39, %c0_40, %c0_41] : memref<5x84x80xf32, #tpu.memory_space<vmem>>, vector<1x84x80xf32>
    %38 = vector.shape_cast %37 : vector<1x84x80xf32> to vector<84x80xf32>
    %cst_42 = arith.constant dense<0.000000e+00> : vector<124x80xf32>
    %39 = tpu.matmul %36, %38, %cst_42 {dimension_numbers = #tpu.dot_dimension_numbers<[1], [0], [0], [1], [0, 0, 1, 1], [], []>} : vector<124x84xf32>, vector<84x80xf32>, vector<124x80xf32> -> vector<124x80xf32>
    %c1_43 = arith.constant 1 : index
    %c0_44 = arith.constant 0 : index
    %40 = vector.load %arg14[%c1_43, %c0_44] : memref<128x84xf32, #tpu.memory_space<vmem>>, vector<124x84xf32>
    %c1_45 = arith.constant 1 : index
    %c0_46 = arith.constant 0 : index
    %c0_47 = arith.constant 0 : index
    %41 = vector.load %arg4[%c1_45, %c0_46, %c0_47] : memref<5x84x80xf32, #tpu.memory_space<vmem>>, vector<1x84x80xf32>
    %42 = vector.shape_cast %41 : vector<1x84x80xf32> to vector<84x80xf32>
    %cst_48 = arith.constant dense<0.000000e+00> : vector<124x80xf32>
    %43 = tpu.matmul %40, %42, %cst_48 {dimension_numbers = #tpu.dot_dimension_numbers<[1], [0], [0], [1], [0, 0, 1, 1], [], []>} : vector<124x84xf32>, vector<84x80xf32>, vector<124x80xf32> -> vector<124x80xf32>
    %44 = arith.addf %39, %43 : vector<124x80xf32>
    %c2_49 = arith.constant 2 : index
    %c0_50 = arith.constant 0 : index
    %45 = vector.load %arg14[%c2_49, %c0_50] : memref<128x84xf32, #tpu.memory_space<vmem>>, vector<124x84xf32>
    %c2_51 = arith.constant 2 : index
    %c0_52 = arith.constant 0 : index
    %c0_53 = arith.constant 0 : index
    %46 = vector.load %arg4[%c2_51, %c0_52, %c0_53] : memref<5x84x80xf32, #tpu.memory_space<vmem>>, vector<1x84x80xf32>
    %47 = vector.shape_cast %46 : vector<1x84x80xf32> to vector<84x80xf32>
    %cst_54 = arith.constant dense<0.000000e+00> : vector<124x80xf32>
    %48 = tpu.matmul %45, %47, %cst_54 {dimension_numbers = #tpu.dot_dimension_numbers<[1], [0], [0], [1], [0, 0, 1, 1], [], []>} : vector<124x84xf32>, vector<84x80xf32>, vector<124x80xf32> -> vector<124x80xf32>
    %49 = arith.addf %44, %48 : vector<124x80xf32>
    %c3_55 = arith.constant 3 : index
    %c0_56 = arith.constant 0 : index
    %50 = vector.load %arg14[%c3_55, %c0_56] : memref<128x84xf32, #tpu.memory_space<vmem>>, vector<124x84xf32>
    %c3_57 = arith.constant 3 : index
    %c0_58 = arith.constant 0 : index
    %c0_59 = arith.constant 0 : index
    %51 = vector.load %arg4[%c3_57, %c0_58, %c0_59] : memref<5x84x80xf32, #tpu.memory_space<vmem>>, vector<1x84x80xf32>
    %52 = vector.shape_cast %51 : vector<1x84x80xf32> to vector<84x80xf32>
    %cst_60 = arith.constant dense<0.000000e+00> : vector<124x80xf32>
    %53 = tpu.matmul %50, %52, %cst_60 {dimension_numbers = #tpu.dot_dimension_numbers<[1], [0], [0], [1], [0, 0, 1, 1], [], []>} : vector<124x84xf32>, vector<84x80xf32>, vector<124x80xf32> -> vector<124x80xf32>
    %54 = arith.addf %49, %53 : vector<124x80xf32>
    %c4_61 = arith.constant 4 : index
    %c0_62 = arith.constant 0 : index
    %55 = vector.load %arg14[%c4_61, %c0_62] : memref<128x84xf32, #tpu.memory_space<vmem>>, vector<124x84xf32>
    %c4_63 = arith.constant 4 : index
    %c0_64 = arith.constant 0 : index
    %c0_65 = arith.constant 0 : index
    %56 = vector.load %arg4[%c4_63, %c0_64, %c0_65] : memref<5x84x80xf32, #tpu.memory_space<vmem>>, vector<1x84x80xf32>
    %57 = vector.shape_cast %56 : vector<1x84x80xf32> to vector<84x80xf32>
    %cst_66 = arith.constant dense<0.000000e+00> : vector<124x80xf32>
    %58 = tpu.matmul %55, %57, %cst_66 {dimension_numbers = #tpu.dot_dimension_numbers<[1], [0], [0], [1], [0, 0, 1, 1], [], []>} : vector<124x84xf32>, vector<84x80xf32>, vector<124x80xf32> -> vector<124x80xf32>
    %59 = arith.addf %54, %58 : vector<124x80xf32>
    %c0_67 = arith.constant 0 : index
    %c0_68 = arith.constant 0 : index
    %60 = vector.load %arg15[%c0_67, %c0_68] : memref<128x80xf32, #tpu.memory_space<vmem>>, vector<124x80xf32>
    tpu.vector_store %arg15[%c0_67, %c0_68], %59 {strides = array<i32>} : memref<128x80xf32, #tpu.memory_space<vmem>>, vector<124x80xf32>,
    %cst_69 = arith.constant 0.000000e+00 : f32
    %61 = vector.broadcast %cst_69 : f32 to vector<4x80xf32>
    %c124 = arith.constant 124 : index
    %c0_70 = arith.constant 0 : index
    %62 = vector.load %arg15[%c124, %c0_70] : memref<128x80xf32, #tpu.memory_space<vmem>>, vector<4x80xf32>
    tpu.vector_store %arg15[%c124, %c0_70], %61 {strides = array<i32>} : memref<128x80xf32, #tpu.memory_space<vmem>>, vector<4x80xf32>,
    %c0_71 = arith.constant 0 : index
    %c0_72 = arith.constant 0 : index
    %63 = tpu.strided_load %arg15[%c0_71, %c0_72] {strides = array<i32: 2, 1>} : memref<128x80xf32, #tpu.memory_space<vmem>>, vector<64x80xf32>
    %c1_73 = arith.constant 1 : index
    %c0_74 = arith.constant 0 : index
    %64 = tpu.strided_load %arg15[%c1_73, %c0_74] {strides = array<i32: 2, 1>} : memref<128x80xf32, #tpu.memory_space<vmem>>, vector<64x80xf32>
    %65 = arith.addf %63, %64 : vector<64x80xf32>
    %cst_75 = arith.constant 5.000000e-01 : f32
    %66 = vector.broadcast %cst_75 : f32 to vector<64x80xf32>
    %67 = arith.mulf %66, %65 : vector<64x80xf32>
    %c0_76 = arith.constant 0 : index
    %c0_77 = arith.constant 0 : index
    %68 = vector.load %arg5[%c0_76, %c0_77] : memref<1x80xf32, #tpu.memory_space<vmem>>, vector<1x80xf32>
    %69 = vector.broadcast %68 : vector<1x80xf32> to vector<64x80xf32>
    %70 = arith.addf %67, %69 : vector<64x80xf32>
    %c0_78 = arith.constant 0 : index
    %c0_79 = arith.constant 0 : index
    %71 = vector.load %arg16[%c0_78, %c0_79] : memref<64x80xf32, #tpu.memory_space<vmem>>, vector<64x80xf32>
    tpu.vector_store %arg16[%c0_78, %c0_79], %70 {strides = array<i32>} : memref<64x80xf32, #tpu.memory_space<vmem>>, vector<64x80xf32>,
    %c0_80 = arith.constant 0 : index
    %c0_81 = arith.constant 0 : index
    %72 = tpu.strided_load %arg16[%c0_80, %c0_81] {strides = array<i32: 8, 1>} : memref<64x80xf32, #tpu.memory_space<vmem>>, vector<8x80xf32>
    %c0_82 = arith.constant 0 : index
    %c0_83 = arith.constant 0 : index
    %c0_84 = arith.constant 0 : index
    %73 = vector.load %arg6[%c0_82, %c0_83, %c0_84] : memref<5x80x120xf32, #tpu.memory_space<vmem>>, vector<1x80x120xf32>
    %74 = vector.shape_cast %73 : vector<1x80x120xf32> to vector<80x120xf32>
    %cst_85 = arith.constant dense<0.000000e+00> : vector<8x120xf32>
    %75 = tpu.matmul %72, %74, %cst_85 {dimension_numbers = #tpu.dot_dimension_numbers<[1], [0], [0], [1], [0, 0, 1, 1], [], []>} : vector<8x80xf32>, vector<80x120xf32>, vector<8x120xf32> -> vector<8x120xf32>
    %c1_86 = arith.constant 1 : index
    %c0_87 = arith.constant 0 : index
    %76 = tpu.strided_load %arg16[%c1_86, %c0_87] {strides = array<i32: 8, 1>} : memref<64x80xf32, #tpu.memory_space<vmem>>, vector<8x80xf32>
    %c1_88 = arith.constant 1 : index
    %c0_89 = arith.constant 0 : index
    %c0_90 = arith.constant 0 : index
    %77 = vector.load %arg6[%c1_88, %c0_89, %c0_90] : memref<5x80x120xf32, #tpu.memory_space<vmem>>, vector<1x80x120xf32>
    %78 = vector.shape_cast %77 : vector<1x80x120xf32> to vector<80x120xf32>
    %cst_91 = arith.constant dense<0.000000e+00> : vector<8x120xf32>
    %79 = tpu.matmul %76, %78, %cst_91 {dimension_numbers = #tpu.dot_dimension_numbers<[1], [0], [0], [1], [0, 0, 1, 1], [], []>} : vector<8x80xf32>, vector<80x120xf32>, vector<8x120xf32> -> vector<8x120xf32>
    %80 = arith.addf %75, %79 : vector<8x120xf32>
    %c2_92 = arith.constant 2 : index
    %c0_93 = arith.constant 0 : index
    %81 = tpu.strided_load %arg16[%c2_92, %c0_93] {strides = array<i32: 8, 1>} : memref<64x80xf32, #tpu.memory_space<vmem>>, vector<8x80xf32>
    %c2_94 = arith.constant 2 : index
    %c0_95 = arith.constant 0 : index
    %c0_96 = arith.constant 0 : index
    %82 = vector.load %arg6[%c2_94, %c0_95, %c0_96] : memref<5x80x120xf32, #tpu.memory_space<vmem>>, vector<1x80x120xf32>
    %83 = vector.shape_cast %82 : vector<1x80x120xf32> to vector<80x120xf32>
    %cst_97 = arith.constant dense<0.000000e+00> : vector<8x120xf32>
    %84 = tpu.matmul %81, %83, %cst_97 {dimension_numbers = #tpu.dot_dimension_numbers<[1], [0], [0], [1], [0, 0, 1, 1], [], []>} : vector<8x80xf32>, vector<80x120xf32>, vector<8x120xf32> -> vector<8x120xf32>
    %85 = arith.addf %80, %84 : vector<8x120xf32>
    %c3_98 = arith.constant 3 : index
    %c0_99 = arith.constant 0 : index
    %86 = tpu.strided_load %arg16[%c3_98, %c0_99] {strides = array<i32: 8, 1>} : memref<64x80xf32, #tpu.memory_space<vmem>>, vector<8x80xf32>
    %c3_100 = arith.constant 3 : index
    %c0_101 = arith.constant 0 : index
    %c0_102 = arith.constant 0 : index
    %87 = vector.load %arg6[%c3_100, %c0_101, %c0_102] : memref<5x80x120xf32, #tpu.memory_space<vmem>>, vector<1x80x120xf32>
    %88 = vector.shape_cast %87 : vector<1x80x120xf32> to vector<80x120xf32>
    %cst_103 = arith.constant dense<0.000000e+00> : vector<8x120xf32>
    %89 = tpu.matmul %86, %88, %cst_103 {dimension_numbers = #tpu.dot_dimension_numbers<[1], [0], [0], [1], [0, 0, 1, 1], [], []>} : vector<8x80xf32>, vector<80x120xf32>, vector<8x120xf32> -> vector<8x120xf32>
    %90 = arith.addf %85, %89 : vector<8x120xf32>
    %c4_104 = arith.constant 4 : index
    %c0_105 = arith.constant 0 : index
    %91 = tpu.strided_load %arg16[%c4_104, %c0_105] {strides = array<i32: 8, 1>} : memref<64x80xf32, #tpu.memory_space<vmem>>, vector<8x80xf32>
    %c4_106 = arith.constant 4 : index
    %c0_107 = arith.constant 0 : index
    %c0_108 = arith.constant 0 : index
    %92 = vector.load %arg6[%c4_106, %c0_107, %c0_108] : memref<5x80x120xf32, #tpu.memory_space<vmem>>, vector<1x80x120xf32>
    %93 = vector.shape_cast %92 : vector<1x80x120xf32> to vector<80x120xf32>
    %cst_109 = arith.constant dense<0.000000e+00> : vector<8x120xf32>
    %94 = tpu.matmul %91, %93, %cst_109 {dimension_numbers = #tpu.dot_dimension_numbers<[1], [0], [0], [1], [0, 0, 1, 1], [], []>} : vector<8x80xf32>, vector<80x120xf32>, vector<8x120xf32> -> vector<8x120xf32>
    %95 = arith.addf %90, %94 : vector<8x120xf32>
    %c0_110 = arith.constant 0 : index
    %c0_111 = arith.constant 0 : index
    %96 = vector.load %arg7[%c0_110, %c0_111] : memref<1x120xf32, #tpu.memory_space<vmem>>, vector<1x120xf32>
    %97 = vector.broadcast %96 : vector<1x120xf32> to vector<8x120xf32>
    %98 = arith.addf %95, %97 : vector<8x120xf32>
    %cst_112 = arith.constant 0.000000e+00 : f32
    %99 = vector.broadcast %cst_112 : f32 to vector<8x120xf32>
    %100 = arith.cmpf oge, %98, %99 : vector<8x120xf32>
    %cst_113 = arith.constant 0.00999999977 : f32
    %101 = vector.broadcast %cst_113 : f32 to vector<8x120xf32>
    %102 = arith.mulf %101, %98 : vector<8x120xf32>
    %103 = arith.select %100, %98, %102 : vector<8x120xi1>, vector<8x120xf32>
    %c0_114 = arith.constant 0 : index
    %c0_115 = arith.constant 0 : index
    %104 = vector.load %arg8[%c0_114, %c0_115] : memref<120x84xf32, #tpu.memory_space<vmem>>, vector<120x84xf32>
    %cst_116 = arith.constant dense<0.000000e+00> : vector<8x84xf32>
    %105 = tpu.matmul %103, %104, %cst_116 {dimension_numbers = #tpu.dot_dimension_numbers<[1], [0], [0], [1], [0, 0, 1, 1], [], []>} : vector<8x120xf32>, vector<120x84xf32>, vector<8x84xf32> -> vector<8x84xf32>
    %c0_117 = arith.constant 0 : index
    %c0_118 = arith.constant 0 : index
    %106 = vector.load %arg9[%c0_117, %c0_118] : memref<1x84xf32, #tpu.memory_space<vmem>>, vector<1x84xf32>
    %107 = vector.broadcast %106 : vector<1x84xf32> to vector<8x84xf32>
    %108 = arith.addf %105, %107 : vector<8x84xf32>
    %cst_119 = arith.constant 0.000000e+00 : f32
    %109 = vector.broadcast %cst_119 : f32 to vector<8x84xf32>
    %110 = arith.cmpf oge, %108, %109 : vector<8x84xf32>
    %cst_120 = arith.constant 0.00999999977 : f32
    %111 = vector.broadcast %cst_120 : f32 to vector<8x84xf32>
    %112 = arith.mulf %111, %108 : vector<8x84xf32>
    %113 = arith.select %110, %108, %112 : vector<8x84xi1>, vector<8x84xf32>
    %c0_121 = arith.constant 0 : index
    %c0_122 = arith.constant 0 : index
    %114 = vector.load %arg10[%c0_121, %c0_122] : memref<84x10xf32, #tpu.memory_space<vmem>>, vector<84x10xf32>
    %cst_123 = arith.constant dense<0.000000e+00> : vector<8x10xf32>
    %115 = tpu.matmul %113, %114, %cst_123 {dimension_numbers = #tpu.dot_dimension_numbers<[1], [0], [0], [1], [0, 0, 1, 1], [], []>} : vector<8x84xf32>, vector<84x10xf32>, vector<8x10xf32> -> vector<8x10xf32>
    %c0_124 = arith.constant 0 : index
    %c0_125 = arith.constant 0 : index
    %116 = vector.load %arg11[%c0_124, %c0_125] : memref<1x10xf32, #tpu.memory_space<vmem>>, vector<1x10xf32>
    %117 = vector.broadcast %116 : vector<1x10xf32> to vector<8x10xf32>
    %118 = arith.addf %115, %117 : vector<8x10xf32>
    %c0_126 = arith.constant 0 : index
    %c0_127 = arith.constant 0 : index
    %119 = vector.load %arg12[%c0_126, %c0_127] : memref<8x10xf32, #tpu.memory_space<vmem>>, vector<8x10xf32>
    tpu.vector_store %arg12[%c0_126, %c0_127], %118 {strides = array<i32>} : memref<8x10xf32, #tpu.memory_space<vmem>>, vector<8x10xf32>,
    return
  }
  func.func @transform_0(%arg0: i32) -> (i32, i32) {
    %c0_i32 = arith.constant 0 : i32
    %c0_i32_0 = arith.constant 0 : i32
    return %arg0, %c0_i32 : i32, i32
  }
  func.func @transform_1(%arg0: i32) -> (i32, i32, i32) {
    %c0_i32 = arith.constant 0 : i32
    %c0_i32_0 = arith.constant 0 : i32
    %c0_i32_1 = arith.constant 0 : i32
    %c0_i32_2 = arith.constant 0 : i32
    return %c0_i32, %c0_i32_0, %c0_i32_1 : i32, i32, i32
  }
  func.func @transform_2(%arg0: i32) -> (i32, i32) {
    %c0_i32 = arith.constant 0 : i32
    %c0_i32_0 = arith.constant 0 : i32
    %c0_i32_1 = arith.constant 0 : i32
    return %c0_i32, %c0_i32_0 : i32, i32
  }
  func.func @transform_3(%arg0: i32) -> (i32, i32, i32) {
    %c0_i32 = arith.constant 0 : i32
    %c0_i32_0 = arith.constant 0 : i32
    %c0_i32_1 = arith.constant 0 : i32
    %c0_i32_2 = arith.constant 0 : i32
    return %c0_i32, %c0_i32_0, %c0_i32_1 : i32, i32, i32
  }
  func.func @transform_4(%arg0: i32) -> (i32, i32) {
    %c0_i32 = arith.constant 0 : i32
    %c0_i32_0 = arith.constant 0 : i32
    %c0_i32_1 = arith.constant 0 : i32
    return %c0_i32, %c0_i32_0 : i32, i32
  }
  func.func @transform_5(%arg0: i32) -> (i32, i32, i32) {
    %c0_i32 = arith.constant 0 : i32
    %c0_i32_0 = arith.constant 0 : i32
    %c0_i32_1 = arith.constant 0 : i32
    %c0_i32_2 = arith.constant 0 : i32
    return %c0_i32, %c0_i32_0, %c0_i32_1 : i32, i32, i32
  }
  func.func @transform_6(%arg0: i32) -> (i32, i32) {
    %c0_i32 = arith.constant 0 : i32
    %c0_i32_0 = arith.constant 0 : i32
    %c0_i32_1 = arith.constant 0 : i32
    return %c0_i32, %c0_i32_0 : i32, i32
  }
  func.func @transform_7(%arg0: i32) -> (i32, i32) {
    %c0_i32 = arith.constant 0 : i32
    %c0_i32_0 = arith.constant 0 : i32
    %c0_i32_1 = arith.constant 0 : i32
    return %c0_i32, %c0_i32_0 : i32, i32
  }
  func.func @transform_8(%arg0: i32) -> (i32, i32) {
    %c0_i32 = arith.constant 0 : i32
    %c0_i32_0 = arith.constant 0 : i32
    %c0_i32_1 = arith.constant 0 : i32
    return %c0_i32, %c0_i32_0 : i32, i32
  }
  func.func @transform_9(%arg0: i32) -> (i32, i32) {
    %c0_i32 = arith.constant 0 : i32
    %c0_i32_0 = arith.constant 0 : i32
    %c0_i32_1 = arith.constant 0 : i32
    return %c0_i32, %c0_i32_0 : i32, i32
  }
  func.func @transform_10(%arg0: i32) -> (i32, i32) {
    %c0_i32 = arith.constant 0 : i32
    %c0_i32_0 = arith.constant 0 : i32
    %c0_i32_1 = arith.constant 0 : i32
    return %c0_i32, %c0_i32_0 : i32, i32
  }
  func.func @transform_11(%arg0: i32) -> (i32, i32) {
    %c0_i32 = arith.constant 0 : i32
    %c0_i32_0 = arith.constant 0 : i32
    return %arg0, %c0_i32 : i32, i32
  }
}

</mosaic_0001>

<llo_original>
// kernel: tile.13
$region0: #{tile.13}
  #allocation0 [shape = 's32[1]{0}', space=sflag, size = 0x4, scoped, tag = 'scoped memory for tile.13']
  %s0 = inlined_call_operand.vmem [shape: f32[6], index: 0, kind: input, shape index: {}]
  %s1 = inlined_call_operand.vmem [shape: f32[14,6], index: 1, kind: output, shape index: {}]
  // Predicated region
  $region2: #{tile.13} parent=0 // pred_check
    _
  $region3: #{tile.13} parent=0 // pred_check_branch
    %3 = sbr.rel (0) target = $region5
  $region4: #{tile.13} parent=0 // pred_region
    _
  $region5: #{tile.13} parent=0 // pred_fallthru
    _
  %v4 = vld [vmem:[%s0] ss:$0 sm:$0xff]
  %5 = vst [vmem:[%s1] sm:$0xff] %v4
  %s6 = scalar_lea.vmem %s1, 8
  %7 = vst [vmem:[%s6] sm:$0xff] %v4

// kernel: tile.14
$region0: #{tile.14}
  %s0 = inlined_call_operand.vmem [shape: f32[14,6], index: 0, kind: input, shape index: {}]
  %s1 = inlined_call_operand.vmem [shape: f32[1,84], index: 1, kind: output, shape index: {}]
  $region1: #{tile.14} parent=0
    #allocation0 [shape = 'u8[4096]{0}', space=vmem, size = 0x1000, scoped, tag = 'scoped mem for output reshape']
    %v2 = vld [vmem:[%s0] sm:$0x1]
    %vm3 = vcmask 48128
    %4 = vst.msk [vmem:[#allocation0] sm:$0x1] %vm3, %v2
    %s5 = scalar_lea.vmem %s0, 13
    %v6 = vld [vmem:[%s5] sm:$0x1]
    %7 = vrot.lane.b32.xlu0 %v6, 78
    %v8 = vpop.permute.xlu0 %7
    %vm9 = vcmask 687728
    %10 = vst.msk [vmem:[#allocation0] sm:$0x1] %vm9, %v8
    %s11 = scalar_lea.vmem %s0, 12
    %v12 = vld [vmem:[%s11] sm:$0x1]
    %13 = vrot.lane.b32.xlu0 %v12, 72
    %v14 = vpop.permute.xlu0 %13
    %vm15 = vcmask 638528
    %16 = vst.msk [vmem:[#allocation0] sm:$0x1] %vm15, %v14
    %s17 = scalar_lea.vmem %s0, 11
    %v18 = vld [vmem:[%s17] sm:$0x1]
    %19 = vrot.lane.b32.xlu0 %v18, 66
    %v20 = vpop.permute.xlu0 %19
    %vm21 = vcmask 589328
    %22 = vst.msk [vmem:[#allocation0] sm:$0x1] %vm21, %v20
    %s23 = scalar_lea.vmem %s0, 10
    %v24 = vld [vmem:[%s23] sm:$0x1]
    %25 = vrot.lane.b32.xlu0 %v24, 60
    %v26 = vpop.permute.xlu0 %25
    %vm27 = vcmask 540128
    %28 = vst.msk [vmem:[#allocation0] sm:$0x1] %vm27, %v26
    %s29 = scalar_lea.vmem %s0, 9
    %v30 = vld [vmem:[%s29] sm:$0x1]
    %31 = vrot.lane.b32.xlu0 %v30, 54
    %v32 = vpop.permute.xlu0 %31
    %vm33 = vcmask 490928
    %34 = vst.msk [vmem:[#allocation0] sm:$0x1] %vm33, %v32
    %s35 = scalar_lea.vmem %s0, 8
    %v36 = vld [vmem:[%s35] sm:$0x1]
    %37 = vrot.lane.b32.xlu0 %v36, 48
    %v38 = vpop.permute.xlu0 %37
    %vm39 = vcmask 441728
    %40 = vst.msk [vmem:[#allocation0] sm:$0x1] %vm39, %v38
    %s41 = scalar_lea.vmem %s0, 7
    %v42 = vld [vmem:[%s41] sm:$0x1]
    %43 = vrot.lane.b32.xlu0 %v42, 42
    %v44 = vpop.permute.xlu0 %43
    %vm45 = vcmask 392528
    %46 = vst.msk [vmem:[#allocation0] sm:$0x1] %vm45, %v44
    %s47 = scalar_lea.vmem %s0, 6
    %v48 = vld [vmem:[%s47] sm:$0x1]
    %49 = vrot.lane.b32.xlu0 %v48, 36
    %v50 = vpop.permute.xlu0 %49
    %vm51 = vcmask 343328
    %52 = vst.msk [vmem:[#allocation0] sm:$0x1] %vm51, %v50
    %s53 = scalar_lea.vmem %s0, 5
    %v54 = vld [vmem:[%s53] sm:$0x1]
    %55 = vrot.lane.b32.xlu0 %v54, 30
    %v56 = vpop.permute.xlu0 %55
    %vm57 = vcmask 294128
    %58 = vst.msk [vmem:[#allocation0] sm:$0x1] %vm57, %v56
    %s59 = scalar_lea.vmem %s0, 4
    %v60 = vld [vmem:[%s59] sm:$0x1]
    %61 = vrot.lane.b32.xlu0 %v60, 24
    %v62 = vpop.permute.xlu0 %61
    %vm63 = vcmask 244928
    %64 = vst.msk [vmem:[#allocation0] sm:$0x1] %vm63, %v62
    %s65 = scalar_lea.vmem %s0, 3
    %v66 = vld [vmem:[%s65] sm:$0x1]
    %67 = vrot.lane.b32.xlu0 %v66, 18
    %v68 = vpop.permute.xlu0 %67
    %vm69 = vcmask 195728
    %70 = vst.msk [vmem:[#allocation0] sm:$0x1] %vm69, %v68
    %s71 = scalar_lea.vmem %s0, 2
    %v72 = vld [vmem:[%s71] sm:$0x1]
    %73 = vrot.lane.b32.xlu0 %v72, 12
    %v74 = vpop.permute.xlu0 %73
    %vm75 = vcmask 146528
    %76 = vst.msk [vmem:[#allocation0] sm:$0x1] %vm75, %v74
    %s77 = scalar_lea.vmem %s0, 1
    %v78 = vld [vmem:[%s77] sm:$0x1]
    %79 = vrot.lane.b32.xlu0 %v78, 6
    %v80 = vpop.permute.xlu0 %79
    %vm81 = vcmask 97328
    %82 = vst.msk [vmem:[#allocation0] sm:$0x1] %vm81, %v80
    %s84 = ssub.s32 2, 1
    %v85 = vld [vmem:[#allocation0] sm:%s84]
    %s87 = ssub.s32 2, 1
    %88 = vst [vmem:[%s1] sm:%s87] %v85

// kernel: tile.18
$region0: #{tile.18}
  #allocation0 [shape = 's32[1]{0}', space=sflag, size = 0x4, scoped, tag = 'scoped memory for tile.18']
  %s0 = inlined_call_operand.vmem [shape: f32[16], index: 0, kind: input, shape index: {}]
  %s1 = inlined_call_operand.vmem [shape: f32[5,16], index: 1, kind: output, shape index: {}]
  // Predicated region
  $region2: #{tile.18} parent=0 // pred_check
    _
  $region3: #{tile.18} parent=0 // pred_check_branch
    %3 = sbr.rel (0) target = $region5
  $region4: #{tile.18} parent=0 // pred_region
    _
  $region5: #{tile.18} parent=0 // pred_fallthru
    _
  %v4 = vld [vmem:[%s0] ss:$0 sm:$0xff]
  %5 = vst [vmem:[%s1] sm:$0xff] %v4

// kernel: tile.19
$region0: #{tile.19}
  %s0 = inlined_call_operand.vmem [shape: f32[5,16], index: 0, kind: input, shape index: {}]
  %s1 = inlined_call_operand.vmem [shape: f32[1,80], index: 1, kind: output, shape index: {}]
  $region1: #{tile.19} parent=0
    #allocation0 [shape = 'u8[4096]{0}', space=vmem, size = 0x1000, scoped, tag = 'scoped mem for output reshape']
    %v2 = vld [vmem:[%s0] sm:$0x1]
    %vm3 = vcmask 130048
    %4 = vst.msk [vmem:[#allocation0] sm:$0x1] %vm3, %v2
    %s5 = scalar_lea.vmem %s0, 4
    %v6 = vld [vmem:[%s5] sm:$0x1]
    %7 = vrot.lane.b32.xlu0 %v6, 64
    %v8 = vpop.permute.xlu0 %7
    %vm9 = vcmask 654848
    %10 = vst.msk [vmem:[#allocation0] sm:$0x1] %vm9, %v8
    %s11 = scalar_lea.vmem %s0, 3
    %v12 = vld [vmem:[%s11] sm:$0x1]
    %13 = vrot.lane.b32.xlu0 %v12, 48
    %v14 = vpop.permute.xlu0 %13
    %vm15 = vcmask 523648
    %16 = vst.msk [vmem:[#allocation0] sm:$0x1] %vm15, %v14
    %s17 = scalar_lea.vmem %s0, 2
    %v18 = vld [vmem:[%s17] sm:$0x1]
    %19 = vrot.lane.b32.xlu0 %v18, 32
    %v20 = vpop.permute.xlu0 %19
    %vm21 = vcmask 392448
    %22 = vst.msk [vmem:[#allocation0] sm:$0x1] %vm21, %v20
    %s23 = scalar_lea.vmem %s0, 1
    %v24 = vld [vmem:[%s23] sm:$0x1]
    %25 = vrot.lane.b32.xlu0 %v24, 16
    %v26 = vpop.permute.xlu0 %25
    %vm27 = vcmask 261248
    %28 = vst.msk [vmem:[#allocation0] sm:$0x1] %vm27, %v26
    %s30 = ssub.s32 2, 1
    %v31 = vld [vmem:[#allocation0] sm:%s30]
    %s33 = ssub.s32 2, 1
    %34 = vst [vmem:[%s1] sm:%s33] %v31

// kernel: lenet5_forward.1
$region0: #{lenet5_forward.1}
  #allocation0 [shape = 'u32[]', space=smem, size = 0x4, offset = 0x4, fixed_abs, tag = 'smem constant byte address 0x4 - core index']
  #allocation1 [shape = 'u32[72,128]{1,0:T(1,128)}', space=vmem, size = 0x9000, scoped, tag = 'internal scratch']
  #allocation2 [shape = 'f32[256,84]{1,0:T(8,128)}', space=vmem, size = 0x20000, scoped, tag = 'scratch operand']
  #allocation3 [shape = 'f32[128,84]{1,0:T(8,128)}', space=vmem, size = 0x10000, scoped, tag = 'scratch operand']
  #allocation4 [shape = 'f32[128,80]{1,0:T(8,128)}', space=vmem, size = 0x10000, scoped, tag = 'scratch operand']
  #allocation5 [shape = 'f32[64,80]{1,0:T(8,128)}', space=vmem, size = 0x8000, scoped, tag = 'scratch operand']
  %s0 = inlined_call_operand.vmem [shape: f32[512,96], index: 0, kind: input, shape index: {}]
  %s1 = inlined_call_operand.vmem [shape: f32[5,96,84], index: 1, kind: input, shape index: {}]
  %s2 = inlined_call_operand.vmem [shape: f32[1,84], index: 2, kind: input, shape index: {}]
  %s3 = inlined_call_operand.vmem [shape: f32[5,84,80], index: 3, kind: input, shape index: {}]
  %s4 = inlined_call_operand.vmem [shape: f32[1,80], index: 4, kind: input, shape index: {}]
  %s5 = inlined_call_operand.vmem [shape: f32[5,80,120], index: 5, kind: input, shape index: {}]
  %s6 = inlined_call_operand.vmem [shape: f32[1,120], index: 6, kind: input, shape index: {}]
  %s7 = inlined_call_operand.vmem [shape: f32[120,84], index: 7, kind: input, shape index: {}]
  %s8 = inlined_call_operand.vmem [shape: f32[1,84], index: 8, kind: input, shape index: {}]
  %s9 = inlined_call_operand.vmem [shape: f32[84,10], index: 9, kind: input, shape index: {}]
  %s10 = inlined_call_operand.vmem [shape: f32[1,10], index: 10, kind: input, shape index: {}]
  %s11 = inlined_call_operand.hbm [shape: f32[16,10], index: 11, kind: output, shape index: {}]
  %s12 = sld [smem:[#allocation0]]
  $region77: #{lenet5_forward.1} parent=0
    _
  %s14 = ssub.s32 1, %s12
  %s15 = scalar_select 0, %s14, %s12
  $region1: #{lenet5_forward.1} parent=0
    #allocation6 [shape = 'u8[8192]{0}', space=vmem, size = 0x2000, scoped, tag = 'output window, operand 0']
    #allocation7 [shape = 's32[2]{0}', space=sflag, size = 0x8, scoped, tag = 'scoped memory for lenet5_forward.1']
    %16 = vsyncpa [#allocation7], 0
    %s17 = scalar_lea.sflag [#allocation7], 1
    %18 = vsyncpa %s17, 0
    loop: start=0, step=1, limit=4
    $region2: #{lenet5_forward.1} parent=1 // loop_pre_header
      _
    $region3: #{lenet5_forward.1} parent=1 // loop_header
      %s20 = sphi 0, %s24
      %p21 = scmp.ge.s32.totalorder %s20, 4
      %s30 = sphi 0, %s32
      %s33 = sphi 0, %s30
      %s34 = sphi 0, %s33
      %s50 = sphi 0, %s34
      %s54 = sphi 0, %s54
      %s56 = sphi 0, %s54
      %s57 = sphi 0, %s56
      %s71 = sphi 0, %s57
      %s75 = sphi 0, %s75
      %s77 = sphi 0, %s75
      %s78 = sphi 0, %s77
      %s92 = sphi 0, %s78
      %s96 = sphi 0, %s96
      %s98 = sphi 0, %s96
      %s99 = sphi 0, %s98
      %s113 = sphi 0, %s99
      %s117 = sphi 0, %s117
      %s119 = sphi 0, %s117
      %s120 = sphi 0, %s119
      %s134 = sphi 0, %s120
      %s138 = sphi 0, %s138
      %s140 = sphi 0, %s138
      %s141 = sphi 0, %s140
      %s155 = sphi 0, %s141
      %s159 = sphi 0, %s159
      %s161 = sphi 0, %s159
      %s162 = sphi 0, %s161
      %s176 = sphi 0, %s162
      %s180 = sphi 0, %s180
      %s182 = sphi 0, %s180
      %s183 = sphi 0, %s182
      %s197 = sphi 0, %s183
      %s201 = sphi 0, %s201
      %s203 = sphi 0, %s201
      %s204 = sphi 0, %s203
      %s218 = sphi 0, %s204
      %s222 = sphi 0, %s222
      %s224 = sphi 0, %s222
      %s225 = sphi 0, %s224
      %s239 = sphi 0, %s225
      %s243 = sphi 0, %s243
      %s245 = sphi 0, %s243
      %s246 = sphi 0, %s245
      %s260 = sphi 0, %s246
      %s266 = sphi 0, %s268
      %s269 = sphi 0, %s266
      %s270 = sphi 0, %s269
      %s286 = sphi 0, %s270
    $region4: #{lenet5_forward.1} parent=1 // loop_header_branch
      %23 = sbr.rel (%p21) target = $region8
    $region5: #{lenet5_forward.1} parent=1 // loop_body
      %s25 = ssub.s32 %s20, 1
      %s26 = ssub.s32 %s20, 2
      %s27 = sadd.s32 %s20, 1
      %s28 = ssub.s32 %s20, %s27
      %p29 = scmp.eq.s32.totalorder %s28, 0
      %s31 = sadd.s32 %s30, 1
      %s32 = scalar_select %p29, %s30, %s31
      %p35 = pneg %p29
      %p36 = scmp.eq.s32.totalorder %s20, 1
      %p37 = por %p35, %p36
      %p38 = scmp.ne.s32.totalorder %s30, %s33
      %p39 = scmp.eq.s32.totalorder %s20, 0
      %p40 = por %p38, %p39
      %p41 = scmp.ne.s32.totalorder %s30, %s33
      %p42 = scmp.eq.s32.totalorder %s25, 1
      %p43 = por %p41, %p42
      %p44 = scmp.ne.s32.totalorder %s33, %s34
      %p45 = scmp.eq.s32.totalorder %s25, 0
      %p46 = por %p44, %p45
      %p47 = scmp.ne.s32.totalorder %s33, %s34
      %p48 = scmp.eq.s32.totalorder %s26, 1
      %p49 = por %p47, %p48
      %p51 = scmp.ne.s32.totalorder %s34, %s50
      %p52 = scmp.eq.s32.totalorder %s26, 0
      %p53 = por %p51, %p52
      %s55 = sadd.s32 %s54, 1
      %p58 = scmp.eq.s32.totalorder %s20, 1
      %p59 = scmp.ne.s32.totalorder %s54, %s56
      %p60 = scmp.eq.s32.totalorder %s20, 0
      %p61 = por %p59, %p60
      %p62 = scmp.ne.s32.totalorder %s54, %s56
      %p63 = scmp.eq.s32.totalorder %s25, 1
      %p64 = por %p62, %p63
      %p65 = scmp.ne.s32.totalorder %s56, %s57
      %p66 = scmp.eq.s32.totalorder %s25, 0
      %p67 = por %p65, %p66
      %p68 = scmp.ne.s32.totalorder %s56, %s57
      %p69 = scmp.eq.s32.totalorder %s26, 1
      %p70 = por %p68, %p69
      %p72 = scmp.ne.s32.totalorder %s57, %s71
      %p73 = scmp.eq.s32.totalorder %s26, 0
      %p74 = por %p72, %p73
      %s76 = sadd.s32 %s75, 1
      %p79 = scmp.eq.s32.totalorder %s20, 1
      %p80 = scmp.ne.s32.totalorder %s75, %s77
      %p81 = scmp.eq.s32.totalorder %s20, 0
      %p82 = por %p80, %p81
      %p83 = scmp.ne.s32.totalorder %s75, %s77
      %p84 = scmp.eq.s32.totalorder %s25, 1
      %p85 = por %p83, %p84
      %p86 = scmp.ne.s32.totalorder %s77, %s78
      %p87 = scmp.eq.s32.totalorder %s25, 0
      %p88 = por %p86, %p87
      %p89 = scmp.ne.s32.totalorder %s77, %s78
      %p90 = scmp.eq.s32.totalorder %s26, 1
      %p91 = por %p89, %p90
      %p93 = scmp.ne.s32.totalorder %s78, %s92
      %p94 = scmp.eq.s32.totalorder %s26, 0
      %p95 = por %p93, %p94
      %s97 = sadd.s32 %s96, 1
      %p100 = scmp.eq.s32.totalorder %s20, 1
      %p101 = scmp.ne.s32.totalorder %s96, %s98
      %p102 = scmp.eq.s32.totalorder %s20, 0
      %p103 = por %p101, %p102
      %p104 = scmp.ne.s32.totalorder %s96, %s98
      %p105 = scmp.eq.s32.totalorder %s25, 1
      %p106 = por %p104, %p105
      %p107 = scmp.ne.s32.totalorder %s98, %s99
      %p108 = scmp.eq.s32.totalorder %s25, 0
      %p109 = por %p107, %p108
      %p110 = scmp.ne.s32.totalorder %s98, %s99
      %p111 = scmp.eq.s32.totalorder %s26, 1
      %p112 = por %p110, %p111
      %p114 = scmp.ne.s32.totalorder %s99, %s113
      %p115 = scmp.eq.s32.totalorder %s26, 0
      %p116 = por %p114, %p115
      %s118 = sadd.s32 %s117, 1
      %p121 = scmp.eq.s32.totalorder %s20, 1
      %p122 = scmp.ne.s32.totalorder %s117, %s119
      %p123 = scmp.eq.s32.totalorder %s20, 0
      %p124 = por %p122, %p123
      %p125 = scmp.ne.s32.totalorder %s117, %s119
      %p126 = scmp.eq.s32.totalorder %s25, 1
      %p127 = por %p125, %p126
      %p128 = scmp.ne.s32.totalorder %s119, %s120
      %p129 = scmp.eq.s32.totalorder %s25, 0
      %p130 = por %p128, %p129
      %p131 = scmp.ne.s32.totalorder %s119, %s120
      %p132 = scmp.eq.s32.totalorder %s26, 1
      %p133 = por %p131, %p132
      %p135 = scmp.ne.s32.totalorder %s120, %s134
      %p136 = scmp.eq.s32.totalorder %s26, 0
      %p137 = por %p135, %p136
      %s139 = sadd.s32 %s138, 1
      %p142 = scmp.eq.s32.totalorder %s20, 1
      %p143 = scmp.ne.s32.totalorder %s138, %s140
      %p144 = scmp.eq.s32.totalorder %s20, 0
      %p145 = por %p143, %p144
      %p146 = scmp.ne.s32.totalorder %s138, %s140
      %p147 = scmp.eq.s32.totalorder %s25, 1
      %p148 = por %p146, %p147
      %p149 = scmp.ne.s32.totalorder %s140, %s141
      %p150 = scmp.eq.s32.totalorder %s25, 0
      %p151 = por %p149, %p150
      %p152 = scmp.ne.s32.totalorder %s140, %s141
      %p153 = scmp.eq.s32.totalorder %s26, 1
      %p154 = por %p152, %p153
      %p156 = scmp.ne.s32.totalorder %s141, %s155
      %p157 = scmp.eq.s32.totalorder %s26, 0
      %p158 = por %p156, %p157
      %s160 = sadd.s32 %s159, 1
      %p163 = scmp.eq.s32.totalorder %s20, 1
      %p164 = scmp.ne.s32.totalorder %s159, %s161
      %p165 = scmp.eq.s32.totalorder %s20, 0
      %p166 = por %p164, %p165
      %p167 = scmp.ne.s32.totalorder %s159, %s161
      %p168 = scmp.eq.s32.totalorder %s25, 1
      %p169 = por %p167, %p168
      %p170 = scmp.ne.s32.totalorder %s161, %s162
      %p171 = scmp.eq.s32.totalorder %s25, 0
      %p172 = por %p170, %p171
      %p173 = scmp.ne.s32.totalorder %s161, %s162
      %p174 = scmp.eq.s32.totalorder %s26, 1
      %p175 = por %p173, %p174
      %p177 = scmp.ne.s32.totalorder %s162, %s176
      %p178 = scmp.eq.s32.totalorder %s26, 0
      %p179 = por %p177, %p178
      %s181 = sadd.s32 %s180, 1
      %p184 = scmp.eq.s32.totalorder %s20, 1
      %p185 = scmp.ne.s32.totalorder %s180, %s182
      %p186 = scmp.eq.s32.totalorder %s20, 0
      %p187 = por %p185, %p186
      %p188 = scmp.ne.s32.totalorder %s180, %s182
      %p189 = scmp.eq.s32.totalorder %s25, 1
      %p190 = por %p188, %p189
      %p191 = scmp.ne.s32.totalorder %s182, %s183
      %p192 = scmp.eq.s32.totalorder %s25, 0
      %p193 = por %p191, %p192
      %p194 = scmp.ne.s32.totalorder %s182, %s183
      %p195 = scmp.eq.s32.totalorder %s26, 1
      %p196 = por %p194, %p195
      %p198 = scmp.ne.s32.totalorder %s183, %s197
      %p199 = scmp.eq.s32.totalorder %s26, 0
      %p200 = por %p198, %p199
      %s202 = sadd.s32 %s201, 1
      %p205 = scmp.eq.s32.totalorder %s20, 1
      %p206 = scmp.ne.s32.totalorder %s201, %s203
      %p207 = scmp.eq.s32.totalorder %s20, 0
      %p208 = por %p206, %p207
      %p209 = scmp.ne.s32.totalorder %s201, %s203
      %p210 = scmp.eq.s32.totalorder %s25, 1
      %p211 = por %p209, %p210
      %p212 = scmp.ne.s32.totalorder %s203, %s204
      %p213 = scmp.eq.s32.totalorder %s25, 0
      %p214 = por %p212, %p213
      %p215 = scmp.ne.s32.totalorder %s203, %s204
      %p216 = scmp.eq.s32.totalorder %s26, 1
      %p217 = por %p215, %p216
      %p219 = scmp.ne.s32.totalorder %s204, %s218
      %p220 = scmp.eq.s32.totalorder %s26, 0
      %p221 = por %p219, %p220
      %s223 = sadd.s32 %s222, 1
      %p226 = scmp.eq.s32.totalorder %s20, 1
      %p227 = scmp.ne.s32.totalorder %s222, %s224
      %p228 = scmp.eq.s32.totalorder %s20, 0
      %p229 = por %p227, %p228
      %p230 = scmp.ne.s32.totalorder %s222, %s224
      %p231 = scmp.eq.s32.totalorder %s25, 1
      %p232 = por %p230, %p231
      %p233 = scmp.ne.s32.totalorder %s224, %s225
      %p234 = scmp.eq.s32.totalorder %s25, 0
      %p235 = por %p233, %p234
      %p236 = scmp.ne.s32.totalorder %s224, %s225
      %p237 = scmp.eq.s32.totalorder %s26, 1
      %p238 = por %p236, %p237
      %p240 = scmp.ne.s32.totalorder %s225, %s239
      %p241 = scmp.eq.s32.totalorder %s26, 0
      %p242 = por %p240, %p241
      %s244 = sadd.s32 %s243, 1
      %p247 = scmp.eq.s32.totalorder %s20, 1
      %p248 = scmp.ne.s32.totalorder %s243, %s245
      %p249 = scmp.eq.s32.totalorder %s20, 0
      %p250 = por %p248, %p249
      %p251 = scmp.ne.s32.totalorder %s243, %s245
      %p252 = scmp.eq.s32.totalorder %s25, 1
      %p253 = por %p251, %p252
      %p254 = scmp.ne.s32.totalorder %s245, %s246
      %p255 = scmp.eq.s32.totalorder %s25, 0
      %p256 = por %p254, %p255
      %p257 = scmp.ne.s32.totalorder %s245, %s246
      %p258 = scmp.eq.s32.totalorder %s26, 1
      %p259 = por %p257, %p258
      %p261 = scmp.ne.s32.totalorder %s246, %s260
      %p262 = scmp.eq.s32.totalorder %s26, 0
      %p263 = por %p261, %p262
      %s264 = ssub.s32 %s20, %s27
      %p265 = scmp.eq.s32.totalorder %s264, 0
      %s267 = sadd.s32 %s266, 1
      %s268 = scalar_select %p265, %s266, %s267
      %p271 = pneg %p265
      %p272 = scmp.eq.s32.totalorder %s20, 1
      %p273 = por %p271, %p272
      %p274 = scmp.ne.s32.totalorder %s266, %s269
      %p275 = scmp.eq.s32.totalorder %s20, 0
      %p276 = por %p274, %p275
      %p277 = scmp.ne.s32.totalorder %s266, %s269
      %p278 = scmp.eq.s32.totalorder %s25, 1
      %p279 = por %p277, %p278
      %p280 = scmp.ne.s32.totalorder %s269, %s270
      %p281 = scmp.eq.s32.totalorder %s25, 0
      %p282 = por %p280, %p281
      %p283 = scmp.ne.s32.totalorder %s269, %s270
      %p284 = scmp.eq.s32.totalorder %s26, 1
      %p285 = por %p283, %p284
      %p287 = scmp.ne.s32.totalorder %s270, %s286
      %p288 = scmp.eq.s32.totalorder %s26, 0
      %p289 = por %p287, %p288
      %p290 = scmp.le.s32.totalorder 1, %s20
      %p291 = scmp.lt.s32.totalorder %s20, 3
      %p292 = pnand %p290, %p291
      %p293 = pneg %p292
      // Predicated region
      $region9: #{lenet5_forward.1} parent=5 // pred_check
        _
      $region10: #{lenet5_forward.1} parent=5 // pred_check_branch
        %295 = sbr.rel (%p292) target = $region12
      $region11: #{lenet5_forward.1} parent=5 // pred_region
        %s296 = ssub.s32 %s20, 1
        // Predicated region
        $region13: #{lenet5_forward.1} parent=11 // pred_check
          %p297 = pneg %p67
        $region14: #{lenet5_forward.1} parent=11 // pred_check_branch
          %299 = sbr.rel (%p297) target = $region16
        $region15: #{lenet5_forward.1} parent=11 // pred_region
          _
        $region16: #{lenet5_forward.1} parent=11 // pred_fallthru
          _
        // Predicated region
        $region17: #{lenet5_forward.1} parent=11 // pred_check
          %p300 = pneg %p88
        $region18: #{lenet5_forward.1} parent=11 // pred_check_branch
          %302 = sbr.rel (%p300) target = $region20
        $region19: #{lenet5_forward.1} parent=11 // pred_region
          _
        $region20: #{lenet5_forward.1} parent=11 // pred_fallthru
          _
        // Predicated region
        $region21: #{lenet5_forward.1} parent=11 // pred_check
          %p303 = pneg %p109
        $region22: #{lenet5_forward.1} parent=11 // pred_check_branch
          %305 = sbr.rel (%p303) target = $region24
        $region23: #{lenet5_forward.1} parent=11 // pred_region
          _
        $region24: #{lenet5_forward.1} parent=11 // pred_fallthru
          _
        // Predicated region
        $region25: #{lenet5_forward.1} parent=11 // pred_check
          %p306 = pneg %p130
        $region26: #{lenet5_forward.1} parent=11 // pred_check_branch
          %308 = sbr.rel (%p306) target = $region28
        $region27: #{lenet5_forward.1} parent=11 // pred_region
          _
        $region28: #{lenet5_forward.1} parent=11 // pred_fallthru
          _
        // Predicated region
        $region29: #{lenet5_forward.1} parent=11 // pred_check
          %p309 = pneg %p151
        $region30: #{lenet5_forward.1} parent=11 // pred_check_branch
          %311 = sbr.rel (%p309) target = $region32
        $region31: #{lenet5_forward.1} parent=11 // pred_region
          _
        $region32: #{lenet5_forward.1} parent=11 // pred_fallthru
          _
        // Predicated region
        $region33: #{lenet5_forward.1} parent=11 // pred_check
          %p312 = pneg %p172
        $region34: #{lenet5_forward.1} parent=11 // pred_check_branch
          %314 = sbr.rel (%p312) target = $region36
        $region35: #{lenet5_forward.1} parent=11 // pred_region
          _
        $region36: #{lenet5_forward.1} parent=11 // pred_fallthru
          _
        // Predicated region
        $region37: #{lenet5_forward.1} parent=11 // pred_check
          %p315 = pneg %p193
        $region38: #{lenet5_forward.1} parent=11 // pred_check_branch
          %317 = sbr.rel (%p315) target = $region40
        $region39: #{lenet5_forward.1} parent=11 // pred_region
          _
        $region40: #{lenet5_forward.1} parent=11 // pred_fallthru
          _
        // Predicated region
        $region41: #{lenet5_forward.1} parent=11 // pred_check
          %p318 = pneg %p214
        $region42: #{lenet5_forward.1} parent=11 // pred_check_branch
          %320 = sbr.rel (%p318) target = $region44
        $region43: #{lenet5_forward.1} parent=11 // pred_region
          _
        $region44: #{lenet5_forward.1} parent=11 // pred_fallthru
          _
        // Predicated region
        $region45: #{lenet5_forward.1} parent=11 // pred_check
          %p321 = pneg %p235
        $region46: #{lenet5_forward.1} parent=11 // pred_check_branch
          %323 = sbr.rel (%p321) target = $region48
        $region47: #{lenet5_forward.1} parent=11 // pred_region
          _
        $region48: #{lenet5_forward.1} parent=11 // pred_fallthru
          _
        // Predicated region
        $region49: #{lenet5_forward.1} parent=11 // pred_check
          %p324 = pneg %p256
        $region50: #{lenet5_forward.1} parent=11 // pred_check_branch
          %326 = sbr.rel (%p324) target = $region52
        $region51: #{lenet5_forward.1} parent=11 // pred_region
          _
        $region52: #{lenet5_forward.1} parent=11 // pred_fallthru
          _
      $region12: #{lenet5_forward.1} parent=5 // pred_fallthru
        _
      %p327 = scmp.lt.s32.totalorder %s20, 2
      // Predicated region
      $region53: #{lenet5_forward.1} parent=5 // pred_check
        %p328 = pneg %p327
      $region54: #{lenet5_forward.1} parent=5 // pred_check_branch
        %330 = sbr.rel (%p328) target = $region56
      $region55: #{lenet5_forward.1} parent=5 // pred_region
        // Predicated region
        $region57: #{lenet5_forward.1} parent=55 // pred_check
          %p331 = pneg %p40
        $region58: #{lenet5_forward.1} parent=55 // pred_check_branch
          %333 = sbr.rel (%p331) target = $region60
        $region59: #{lenet5_forward.1} parent=55 // pred_region
          %s334 = smul.u32 32, %s20
          %p335 = scmp.lt.s32.totalorder %s334, 63
          %s336 = scalar_select %p335, %s334, 63
          %s337 = smul.addr %s336, 8
          %s338 = scalar_lea.vmem %s0, %s337
          %s339 = smul.u32 32, %s20
        $region60: #{lenet5_forward.1} parent=55 // pred_fallthru
          _
      $region56: #{lenet5_forward.1} parent=5 // pred_fallthru
        _
      %p340 = scmp.le.s32.totalorder 1, %s20
      %p341 = scmp.lt.s32.totalorder %s20, 3
      %p342 = pnand %p340, %p341
      %p343 = pneg %p342
      // Predicated region
      $region61: #{lenet5_forward.1} parent=5 // pred_check
        _
      $region62: #{lenet5_forward.1} parent=5 // pred_check_branch
        %345 = sbr.rel (%p342) target = $region64
      $region63: #{lenet5_forward.1} parent=5 // pred_region
        %s346 = ssub.s32 %s20, 1
        %s347 = smul.u32 32, %s25
        %p348 = scmp.lt.s32.totalorder %s347, 63
        %s349 = scalar_select %p348, %s347, 63
        %s350 = smul.addr %s349, 8
        %s351 = scalar_lea.vmem %s0, %s350
        %p352 = pneg %p46
        %p353 = pneg %p43
        %p354 = pneg %p67
        %p355 = pneg %p64
        %p356 = pneg %p88
        %p357 = pneg %p85
        %p358 = pneg %p109
        %p359 = pneg %p106
        %p360 = pneg %p130
        %p361 = pneg %p127
        %p362 = pneg %p151
        %p363 = pneg %p148
        %p364 = pneg %p172
        %p365 = pneg %p169
        %p366 = pneg %p193
        %p367 = pneg %p190
        %p368 = pneg %p214
        %p369 = pneg %p211
        %p370 = pneg %p235
        %p371 = pneg %p232
        %p372 = pneg %p256
        %p373 = pneg %p253
        %p374 = pneg %p282
        %p375 = pneg %p279
        %s376 = sand.u32 %s269, 1
        %s377 = scalar_lea.sflag [#allocation7], %s376
        %s378 = sand.u32 %s269, 1
        %s379 = smul.addr %s378, 8
        %s380 = scalar_lea.vmem [#allocation6], %s379
        %s381 = smul.u32 32, %s25
        %p382 = scmp.lt.s32.totalorder %s381, 63
        %s383 = scalar_select %p382, %s381, 63
        %s384 = smul.addr %s383, 8
        %s385 = scalar_lea.vmem %s0, %s384
        %s386 = smul.u32 32, %s25
        %v387 = vld [vmem:[%s385] sm:$0xff]
        %v388 = vld [vmem:[%s385 + $0x8] sm:$0xff]
        %v389 = vld [vmem:[%s385 + $0x10] sm:$0xff]
        %v390 = vld [vmem:[%s385 + $0x18] sm:$0xff]
        %v391 = vld [vmem:[%s385 + $0x20] sm:$0xff]
        %v392 = vld [vmem:[%s385 + $0x28] sm:$0xff]
        %v393 = vld [vmem:[%s385 + $0x30] sm:$0xff]
        %v394 = vld [vmem:[%s385 + $0x38] sm:$0xff]
        %v395 = vld [vmem:[%s385 + $0x40] sm:$0xff]
        %v396 = vld [vmem:[%s385 + $0x48] sm:$0xff]
        %v397 = vld [vmem:[%s385 + $0x50] sm:$0xff]
        %v398 = vld [vmem:[%s385 + $0x58] sm:$0xff]
        %v399 = vld [vmem:[%s385 + $0x60] sm:$0xff]
        %v400 = vld [vmem:[%s385 + $0x68] sm:$0xff]
        %v401 = vld [vmem:[%s385 + $0x70] sm:$0xff]
        %v402 = vld [vmem:[%s385 + $0x78] sm:$0xff]
        %v403 = vld [vmem:[%s385 + $0x80] sm:$0xff]
        %v404 = vld [vmem:[%s385 + $0x88] sm:$0xff]
        %v405 = vld [vmem:[%s385 + $0x90] sm:$0xff]
        %v406 = vld [vmem:[%s385 + $0x98] sm:$0xff]
        %v407 = vld [vmem:[%s385 + $0xa0] sm:$0xff]
        %v408 = vld [vmem:[%s385 + $0xa8] sm:$0xff]
        %v409 = vld [vmem:[%s385 + $0xb0] sm:$0xff]
        %v410 = vld [vmem:[%s385 + $0xb8] sm:$0xff]
        %v411 = vld [vmem:[%s385 + $0xc0] sm:$0xff]
        %v412 = vld [vmem:[%s385 + $0xc8] sm:$0xff]
        %v413 = vld [vmem:[%s385 + $0xd0] sm:$0xff]
        %v414 = vld [vmem:[%s385 + $0xd8] sm:$0xff]
        %v415 = vld [vmem:[%s385 + $0xe0] sm:$0xff]
        %v416 = vld [vmem:[%s385 + $0xe8] sm:$0xff]
        %v417 = vld [vmem:[%s385 + $0xf0] sm:$0xff]
        %v418 = vld [vmem:[%s385 + $0xf8] sm:$0xf]
        %v419 = vld [vmem:[%s1] sm:$0xff]
        %v420 = vld [vmem:[%s1 + $0x8] sm:$0xff]
        %v421 = vld [vmem:[%s1 + $0x10] sm:$0xff]
        %v422 = vld [vmem:[%s1 + $0x18] sm:$0xff]
        %v423 = vld [vmem:[%s1 + $0x20] sm:$0xff]
        %v424 = vld [vmem:[%s1 + $0x28] sm:$0xff]
        %v425 = vld [vmem:[%s1 + $0x30] sm:$0xff]
        %v426 = vld [vmem:[%s1 + $0x38] sm:$0xff]
        %v427 = vld [vmem:[%s1 + $0x40] sm:$0xff]
        %v428 = vld [vmem:[%s1 + $0x48] sm:$0xff]
        %v429 = vld [vmem:[%s1 + $0x50] sm:$0xff]
        %v430 = vld [vmem:[%s1 + $0x58] sm:$0xff]
        %v431 = vld [vmem:[%s385 + $0x1] sm:$0xff]
        %v432 = vld [vmem:[%s385 + $0x9] sm:$0xff]
        %v433 = vld [vmem:[%s385 + $0x11] sm:$0xff]
        %v434 = vld [vmem:[%s385 + $0x19] sm:$0xff]
        %v435 = vld [vmem:[%s385 + $0x21] sm:$0xff]
        %v436 = vld [vmem:[%s385 + $0x29] sm:$0xff]
        %v437 = vld [vmem:[%s385 + $0x31] sm:$0xff]
        %v438 = vld [vmem:[%s385 + $0x39] sm:$0xff]
        %v439 = vld [vmem:[%s385 + $0x41] sm:$0xff]
        %v440 = vld [vmem:[%s385 + $0x49] sm:$0xff]
        %v441 = vld [vmem:[%s385 + $0x51] sm:$0xff]
        %v442 = vld [vmem:[%s385 + $0x59] sm:$0xff]
        %v443 = vld [vmem:[%s385 + $0x61] sm:$0xff]
        %v444 = vld [vmem:[%s385 + $0x69] sm:$0xff]
        %v445 = vld [vmem:[%s385 + $0x71] sm:$0xff]
        %v446 = vld [vmem:[%s385 + $0x79] sm:$0xff]
        %v447 = vld [vmem:[%s385 + $0x81] sm:$0xff]
        %v448 = vld [vmem:[%s385 + $0x89] sm:$0xff]
        %v449 = vld [vmem:[%s385 + $0x91] sm:$0xff]
        %v450 = vld [vmem:[%s385 + $0x99] sm:$0xff]
        %v451 = vld [vmem:[%s385 + $0xa1] sm:$0xff]
        %v452 = vld [vmem:[%s385 + $0xa9] sm:$0xff]
        %v453 = vld [vmem:[%s385 + $0xb1] sm:$0xff]
        %v454 = vld [vmem:[%s385 + $0xb9] sm:$0xff]
        %v455 = vld [vmem:[%s385 + $0xc1] sm:$0xff]
        %v456 = vld [vmem:[%s385 + $0xc9] sm:$0xff]
        %v457 = vld [vmem:[%s385 + $0xd1] sm:$0xff]
        %v458 = vld [vmem:[%s385 + $0xd9] sm:$0xff]
        %v459 = vld [vmem:[%s385 + $0xe1] sm:$0xff]
        %v460 = vld [vmem:[%s385 + $0xe9] sm:$0xff]
        %v461 = vld [vmem:[%s385 + $0xf1] sm:$0xff]
        %v462 = vld [vmem:[%s385 + $0xf9] sm:$0xf]
        %s463 = scalar_lea.vmem %s1, 96
        %v464 = vld [vmem:[%s463] sm:$0xff]
        %v465 = vld [vmem:[%s463 + $0x8] sm:$0xff]
        %v466 = vld [vmem:[%s463 + $0x10] sm:$0xff]
        %v467 = vld [vmem:[%s463 + $0x18] sm:$0xff]
        %v468 = vld [vmem:[%s463 + $0x20] sm:$0xff]
        %v469 = vld [vmem:[%s463 + $0x28] sm:$0xff]
        %v470 = vld [vmem:[%s463 + $0x30] sm:$0xff]
        %v471 = vld [vmem:[%s463 + $0x38] sm:$0xff]
        %v472 = vld [vmem:[%s463 + $0x40] sm:$0xff]
        %v473 = vld [vmem:[%s463 + $0x48] sm:$0xff]
        %v474 = vld [vmem:[%s463 + $0x50] sm:$0xff]
        %v475 = vld [vmem:[%s463 + $0x58] sm:$0xff]
        %vm476 = vcmask 785408
        %v478 = vsel %vm476, %v431, 0
        %v481 = vsel %vm476, %v432, 0
        %v484 = vsel %vm476, %v433, 0
        %v487 = vsel %vm476, %v434, 0
        %v490 = vsel %vm476, %v435, 0
        %v493 = vsel %vm476, %v436, 0
        %v496 = vsel %vm476, %v437, 0
        %v499 = vsel %vm476, %v438, 0
        %v502 = vsel %vm476, %v439, 0
        %v505 = vsel %vm476, %v440, 0
        %v508 = vsel %vm476, %v441, 0
        %v511 = vsel %vm476, %v442, 0
        %v514 = vsel %vm476, %v443, 0
        %v517 = vsel %vm476, %v444, 0
        %v520 = vsel %vm476, %v445, 0
        %v523 = vsel %vm476, %v446, 0
        %v526 = vsel %vm476, %v447, 0
        %v529 = vsel %vm476, %v448, 0
        %v532 = vsel %vm476, %v449, 0
        %v535 = vsel %vm476, %v450, 0
        %v538 = vsel %vm476, %v451, 0
        %v541 = vsel %vm476, %v452, 0
        %v544 = vsel %vm476, %v453, 0
        %v547 = vsel %vm476, %v454, 0
        %v550 = vsel %vm476, %v455, 0
        %v553 = vsel %vm476, %v456, 0
        %v556 = vsel %vm476, %v457, 0
        %v559 = vsel %vm476, %v458, 0
        %v562 = vsel %vm476, %v459, 0
        %v565 = vsel %vm476, %v460, 0
        %v568 = vsel %vm476, %v461, 0
        %v571 = vsel %vm476, %v462, 0
        %573 = vmatpush.msra.mxu0 0.0
        %574 = vmatpush.msra.mxu0 0.0
        %575 = vmatpush.msra.mxu0 0.0
        %576 = vmatpush.msra.mxu0 0.0
        %577 = vmatpush.msra.mxu0 %v475
        %578 = vmatpush.msra.mxu0 %v474
        %579 = vmatpush.msra.mxu0 %v473
        %580 = vmatpush.msra.mxu0 %v472
        %581 = vmatpush.msra.mxu0 %v471
        %582 = vmatpush.msra.mxu0 %v470
        %583 = vmatpush.msra.mxu0 %v469
        %584 = vmatpush.msra.mxu0 %v468
        %585 = vmatpush.msra.mxu0 %v467
        %586 = vmatpush.msra.mxu0 %v466
        %587 = vmatpush.msra.mxu0 %v465
        %588 = vmatpush.msra.mxu0 %v464
        %589 = vmatmul.f32.gmra.mxu0 %v478
        %v590 = vpop.f32.mrf.mxu0
        %v591 = vadd.f32 0.0, %v590
        %592 = vmatmul.f32.gmra.mxu0 %v481
        %v593 = vpop.f32.mrf.mxu0
        %v594 = vadd.f32 0.0, %v593
        %595 = vmatmul.f32.gmra.mxu0 %v484
        %v596 = vpop.f32.mrf.mxu0
        %v597 = vadd.f32 0.0, %v596
        %598 = vmatmul.f32.gmra.mxu0 %v487
        %v599 = vpop.f32.mrf.mxu0
        %v600 = vadd.f32 0.0, %v599
        %601 = vmatmul.f32.gmra.mxu0 %v490
        %v602 = vpop.f32.mrf.mxu0
        %v603 = vadd.f32 0.0, %v602
        %604 = vmatmul.f32.gmra.mxu0 %v493
        %v605 = vpop.f32.mrf.mxu0
        %v606 = vadd.f32 0.0, %v605
        %607 = vmatmul.f32.gmra.mxu0 %v496
        %v608 = vpop.f32.mrf.mxu0
        %v609 = vadd.f32 0.0, %v608
        %610 = vmatmul.f32.gmra.mxu0 %v499
        %v611 = vpop.f32.mrf.mxu0
        %v612 = vadd.f32 0.0, %v611
        %613 = vmatmul.f32.gmra.mxu0 %v502
        %v614 = vpop.f32.mrf.mxu0
        %v615 = vadd.f32 0.0, %v614
        %616 = vmatmul.f32.gmra.mxu0 %v505
        %v617 = vpop.f32.mrf.mxu0
        %v618 = vadd.f32 0.0, %v617
        %619 = vmatmul.f32.gmra.mxu0 %v508
        %v620 = vpop.f32.mrf.mxu0
        %v621 = vadd.f32 0.0, %v620
        %622 = vmatmul.f32.gmra.mxu0 %v511
        %v623 = vpop.f32.mrf.mxu0
        %v624 = vadd.f32 0.0, %v623
        %625 = vmatmul.f32.gmra.mxu0 %v514
        %v626 = vpop.f32.mrf.mxu0
        %v627 = vadd.f32 0.0, %v626
        %628 = vmatmul.f32.gmra.mxu0 %v517
        %v629 = vpop.f32.mrf.mxu0
        %v630 = vadd.f32 0.0, %v629
        %631 = vmatmul.f32.gmra.mxu0 %v520
        %v632 = vpop.f32.mrf.mxu0
        %v633 = vadd.f32 0.0, %v632
        %634 = vmatmul.f32.gmra.mxu0 %v523
        %v635 = vpop.f32.mrf.mxu0
        %v636 = vadd.f32 0.0, %v635
        %637 = vmatmul.f32.gmra.mxu0 %v526
        %v638 = vpop.f32.mrf.mxu0
        %v639 = vadd.f32 0.0, %v638
        %640 = vmatmul.f32.gmra.mxu0 %v529
        %v641 = vpop.f32.mrf.mxu0
        %v642 = vadd.f32 0.0, %v641
        %643 = vmatmul.f32.gmra.mxu0 %v532
        %v644 = vpop.f32.mrf.mxu0
        %v645 = vadd.f32 0.0, %v644
        %646 = vmatmul.f32.gmra.mxu0 %v535
        %v647 = vpop.f32.mrf.mxu0
        %v648 = vadd.f32 0.0, %v647
        %649 = vmatmul.f32.gmra.mxu0 %v538
        %v650 = vpop.f32.mrf.mxu0
        %v651 = vadd.f32 0.0, %v650
        %652 = vmatmul.f32.gmra.mxu0 %v541
        %v653 = vpop.f32.mrf.mxu0
        %v654 = vadd.f32 0.0, %v653
        %655 = vmatmul.f32.gmra.mxu0 %v544
        %v656 = vpop.f32.mrf.mxu0
        %v657 = vadd.f32 0.0, %v656
        %658 = vmatmul.f32.gmra.mxu0 %v547
        %v659 = vpop.f32.mrf.mxu0
        %v660 = vadd.f32 0.0, %v659
        %661 = vmatmul.f32.gmra.mxu0 %v550
        %v662 = vpop.f32.mrf.mxu0
        %v663 = vadd.f32 0.0, %v662
        %664 = vmatmul.f32.gmra.mxu0 %v553
        %v665 = vpop.f32.mrf.mxu0
        %v666 = vadd.f32 0.0, %v665
        %667 = vmatmul.f32.gmra.mxu0 %v556
        %v668 = vpop.f32.mrf.mxu0
        %v669 = vadd.f32 0.0, %v668
        %670 = vmatmul.f32.gmra.mxu0 %v559
        %v671 = vpop.f32.mrf.mxu0
        %v672 = vadd.f32 0.0, %v671
        %673 = vmatmul.f32.gmra.mxu0 %v562
        %v674 = vpop.f32.mrf.mxu0
        %v675 = vadd.f32 0.0, %v674
        %676 = vmatmul.f32.gmra.mxu0 %v565
        %v677 = vpop.f32.mrf.mxu0
        %v678 = vadd.f32 0.0, %v677
        %679 = vmatmul.f32.gmra.mxu0 %v568
        %v680 = vpop.f32.mrf.mxu0
        %v681 = vadd.f32 0.0, %v680
        %682 = vmatmul.f32.gmra.mxu0 %v571
        %v683 = vpop.f32.mrf.mxu0
        %v684 = vadd.f32 0.0, %v683
        %685 = vdwg.mxu0
        %v687 = vsel %vm476, %v387, 0
        %v690 = vsel %vm476, %v388, 0
        %v693 = vsel %vm476, %v389, 0
        %v696 = vsel %vm476, %v390, 0
        %v699 = vsel %vm476, %v391, 0
        %v702 = vsel %vm476, %v392, 0
        %v705 = vsel %vm476, %v393, 0
        %v708 = vsel %vm476, %v394, 0
        %v711 = vsel %vm476, %v395, 0
        %v714 = vsel %vm476, %v396, 0
        %v717 = vsel %vm476, %v397, 0
        %v720 = vsel %vm476, %v398, 0
        %v723 = vsel %vm476, %v399, 0
        %v726 = vsel %vm476, %v400, 0
        %v729 = vsel %vm476, %v401, 0
        %v732 = vsel %vm476, %v402, 0
        %v735 = vsel %vm476, %v403, 0
        %v738 = vsel %vm476, %v404, 0
        %v741 = vsel %vm476, %v405, 0
        %v744 = vsel %vm476, %v406, 0
        %v747 = vsel %vm476, %v407, 0
        %v750 = vsel %vm476, %v408, 0
        %v753 = vsel %vm476, %v409, 0
        %v756 = vsel %vm476, %v410, 0
        %v759 = vsel %vm476, %v411, 0
        %v762 = vsel %vm476, %v412, 0
        %v765 = vsel %vm476, %v413, 0
        %v768 = vsel %vm476, %v414, 0
        %v771 = vsel %vm476, %v415, 0
        %v774 = vsel %vm476, %v416, 0
        %v777 = vsel %vm476, %v417, 0
        %v780 = vsel %vm476, %v418, 0
        %782 = vmatpush.msra.mxu0 0.0
        %783 = vmatpush.msra.mxu0 0.0
        %784 = vmatpush.msra.mxu0 0.0
        %785 = vmatpush.msra.mxu0 0.0
        %786 = vmatpush.msra.mxu0 %v430
        %787 = vmatpush.msra.mxu0 %v429
        %788 = vmatpush.msra.mxu0 %v428
        %789 = vmatpush.msra.mxu0 %v427
        %790 = vmatpush.msra.mxu0 %v426
        %791 = vmatpush.msra.mxu0 %v425
        %792 = vmatpush.msra.mxu0 %v424
        %793 = vmatpush.msra.mxu0 %v423
        %794 = vmatpush.msra.mxu0 %v422
        %795 = vmatpush.msra.mxu0 %v421
        %796 = vmatpush.msra.mxu0 %v420
        %797 = vmatpush.msra.mxu0 %v419
        %798 = vmatmul.f32.gmra.mxu0 %v687
        %v799 = vpop.f32.mrf.mxu0
        %v800 = vadd.f32 %v591, %v799
        %801 = vmatmul.f32.gmra.mxu0 %v690
        %v802 = vpop.f32.mrf.mxu0
        %v803 = vadd.f32 %v594, %v802
        %804 = vmatmul.f32.gmra.mxu0 %v693
        %v805 = vpop.f32.mrf.mxu0
        %v806 = vadd.f32 %v597, %v805
        %807 = vmatmul.f32.gmra.mxu0 %v696
        %v808 = vpop.f32.mrf.mxu0
        %v809 = vadd.f32 %v600, %v808
        %810 = vmatmul.f32.gmra.mxu0 %v699
        %v811 = vpop.f32.mrf.mxu0
        %v812 = vadd.f32 %v603, %v811
        %813 = vmatmul.f32.gmra.mxu0 %v702
        %v814 = vpop.f32.mrf.mxu0
        %v815 = vadd.f32 %v606, %v814
        %816 = vmatmul.f32.gmra.mxu0 %v705
        %v817 = vpop.f32.mrf.mxu0
        %v818 = vadd.f32 %v609, %v817
        %819 = vmatmul.f32.gmra.mxu0 %v708
        %v820 = vpop.f32.mrf.mxu0
        %v821 = vadd.f32 %v612, %v820
        %822 = vmatmul.f32.gmra.mxu0 %v711
        %v823 = vpop.f32.mrf.mxu0
        %v824 = vadd.f32 %v615, %v823
        %825 = vmatmul.f32.gmra.mxu0 %v714
        %v826 = vpop.f32.mrf.mxu0
        %v827 = vadd.f32 %v618, %v826
        %828 = vmatmul.f32.gmra.mxu0 %v717
        %v829 = vpop.f32.mrf.mxu0
        %v830 = vadd.f32 %v621, %v829
        %831 = vmatmul.f32.gmra.mxu0 %v720
        %v832 = vpop.f32.mrf.mxu0
        %v833 = vadd.f32 %v624, %v832
        %834 = vmatmul.f32.gmra.mxu0 %v723
        %v835 = vpop.f32.mrf.mxu0
        %v836 = vadd.f32 %v627, %v835
        %837 = vmatmul.f32.gmra.mxu0 %v726
        %v838 = vpop.f32.mrf.mxu0
        %v839 = vadd.f32 %v630, %v838
        %840 = vmatmul.f32.gmra.mxu0 %v729
        %v841 = vpop.f32.mrf.mxu0
        %v842 = vadd.f32 %v633, %v841
        %843 = vmatmul.f32.gmra.mxu0 %v732
        %v844 = vpop.f32.mrf.mxu0
        %v845 = vadd.f32 %v636, %v844
        %846 = vmatmul.f32.gmra.mxu0 %v735
        %v847 = vpop.f32.mrf.mxu0
        %v848 = vadd.f32 %v639, %v847
        %849 = vmatmul.f32.gmra.mxu0 %v738
        %v850 = vpop.f32.mrf.mxu0
        %v851 = vadd.f32 %v642, %v850
        %852 = vmatmul.f32.gmra.mxu0 %v741
        %v853 = vpop.f32.mrf.mxu0
        %v854 = vadd.f32 %v645, %v853
        %855 = vmatmul.f32.gmra.mxu0 %v744
        %v856 = vpop.f32.mrf.mxu0
        %v857 = vadd.f32 %v648, %v856
        %858 = vmatmul.f32.gmra.mxu0 %v747
        %v859 = vpop.f32.mrf.mxu0
        %v860 = vadd.f32 %v651, %v859
        %861 = vmatmul.f32.gmra.mxu0 %v750
        %v862 = vpop.f32.mrf.mxu0
        %v863 = vadd.f32 %v654, %v862
        %864 = vmatmul.f32.gmra.mxu0 %v753
        %v865 = vpop.f32.mrf.mxu0
        %v866 = vadd.f32 %v657, %v865
        %867 = vmatmul.f32.gmra.mxu0 %v756
        %v868 = vpop.f32.mrf.mxu0
        %v869 = vadd.f32 %v660, %v868
        %870 = vmatmul.f32.gmra.mxu0 %v759
        %v871 = vpop.f32.mrf.mxu0
        %v872 = vadd.f32 %v663, %v871
        %873 = vmatmul.f32.gmra.mxu0 %v762
        %v874 = vpop.f32.mrf.mxu0
        %v875 = vadd.f32 %v666, %v874
        %876 = vmatmul.f32.gmra.mxu0 %v765
        %v877 = vpop.f32.mrf.mxu0
        %v878 = vadd.f32 %v669, %v877
        %879 = vmatmul.f32.gmra.mxu0 %v768
        %v880 = vpop.f32.mrf.mxu0
        %v881 = vadd.f32 %v672, %v880
        %882 = vmatmul.f32.gmra.mxu0 %v771
        %v883 = vpop.f32.mrf.mxu0
        %v884 = vadd.f32 %v675, %v883
        %885 = vmatmul.f32.gmra.mxu0 %v774
        %v886 = vpop.f32.mrf.mxu0
        %v887 = vadd.f32 %v678, %v886
        %888 = vmatmul.f32.gmra.mxu0 %v777
        %v889 = vpop.f32.mrf.mxu0
        %v890 = vadd.f32 %v681, %v889
        %891 = vmatmul.f32.gmra.mxu0 %v780
        %v892 = vpop.f32.mrf.mxu0
        %v893 = vadd.f32 %v684, %v892
        %894 = vdwg.mxu0
        %v895 = vld [vmem:[%s385 + $0x2] sm:$0xff]
        %v896 = vld [vmem:[%s385 + $0xa] sm:$0xff]
        %v897 = vld [vmem:[%s385 + $0x12] sm:$0xff]
        %v898 = vld [vmem:[%s385 + $0x1a] sm:$0xff]
        %v899 = vld [vmem:[%s385 + $0x22] sm:$0xff]
        %v900 = vld [vmem:[%s385 + $0x2a] sm:$0xff]
        %v901 = vld [vmem:[%s385 + $0x32] sm:$0xff]
        %v902 = vld [vmem:[%s385 + $0x3a] sm:$0xff]
        %v903 = vld [vmem:[%s385 + $0x42] sm:$0xff]
        %v904 = vld [vmem:[%s385 + $0x4a] sm:$0xff]
        %v905 = vld [vmem:[%s385 + $0x52] sm:$0xff]
        %v906 = vld [vmem:[%s385 + $0x5a] sm:$0xff]
        %v907 = vld [vmem:[%s385 + $0x62] sm:$0xff]
        %v908 = vld [vmem:[%s385 + $0x6a] sm:$0xff]
        %v909 = vld [vmem:[%s385 + $0x72] sm:$0xff]
        %v910 = vld [vmem:[%s385 + $0x7a] sm:$0xff]
        %v911 = vld [vmem:[%s385 + $0x82] sm:$0xff]
        %v912 = vld [vmem:[%s385 + $0x8a] sm:$0xff]
        %v913 = vld [vmem:[%s385 + $0x92] sm:$0xff]
        %v914 = vld [vmem:[%s385 + $0x9a] sm:$0xff]
        %v915 = vld [vmem:[%s385 + $0xa2] sm:$0xff]
        %v916 = vld [vmem:[%s385 + $0xaa] sm:$0xff]
        %v917 = vld [vmem:[%s385 + $0xb2] sm:$0xff]
        %v918 = vld [vmem:[%s385 + $0xba] sm:$0xff]
        %v919 = vld [vmem:[%s385 + $0xc2] sm:$0xff]
        %v920 = vld [vmem:[%s385 + $0xca] sm:$0xff]
        %v921 = vld [vmem:[%s385 + $0xd2] sm:$0xff]
        %v922 = vld [vmem:[%s385 + $0xda] sm:$0xff]
        %v923 = vld [vmem:[%s385 + $0xe2] sm:$0xff]
        %v924 = vld [vmem:[%s385 + $0xea] sm:$0xff]
        %v925 = vld [vmem:[%s385 + $0xf2] sm:$0xff]
        %v926 = vld [vmem:[%s385 + $0xfa] sm:$0xf]
        %s927 = scalar_lea.vmem %s1, 192
        %v928 = vld [vmem:[%s927] sm:$0xff]
        %v929 = vld [vmem:[%s927 + $0x8] sm:$0xff]
        %v930 = vld [vmem:[%s927 + $0x10] sm:$0xff]
        %v931 = vld [vmem:[%s927 + $0x18] sm:$0xff]
        %v932 = vld [vmem:[%s927 + $0x20] sm:$0xff]
        %v933 = vld [vmem:[%s927 + $0x28] sm:$0xff]
        %v934 = vld [vmem:[%s927 + $0x30] sm:$0xff]
        %v935 = vld [vmem:[%s927 + $0x38] sm:$0xff]
        %v936 = vld [vmem:[%s927 + $0x40] sm:$0xff]
        %v937 = vld [vmem:[%s927 + $0x48] sm:$0xff]
        %v938 = vld [vmem:[%s927 + $0x50] sm:$0xff]
        %v939 = vld [vmem:[%s927 + $0x58] sm:$0xff]
        %v941 = vsel %vm476, %v895, 0
        %v944 = vsel %vm476, %v896, 0
        %v947 = vsel %vm476, %v897, 0
        %v950 = vsel %vm476, %v898, 0
        %v953 = vsel %vm476, %v899, 0
        %v956 = vsel %vm476, %v900, 0
        %v959 = vsel %vm476, %v901, 0
        %v962 = vsel %vm476, %v902, 0
        %v965 = vsel %vm476, %v903, 0
        %v968 = vsel %vm476, %v904, 0
        %v971 = vsel %vm476, %v905, 0
        %v974 = vsel %vm476, %v906, 0
        %v977 = vsel %vm476, %v907, 0
        %v980 = vsel %vm476, %v908, 0
        %v983 = vsel %vm476, %v909, 0
        %v986 = vsel %vm476, %v910, 0
        %v989 = vsel %vm476, %v911, 0
        %v992 = vsel %vm476, %v912, 0
        %v995 = vsel %vm476, %v913, 0
        %v998 = vsel %vm476, %v914, 0
        %v1001 = vsel %vm476, %v915, 0
        %v1004 = vsel %vm476, %v916, 0
        %v1007 = vsel %vm476, %v917, 0
        %v1010 = vsel %vm476, %v918, 0
        %v1013 = vsel %vm476, %v919, 0
        %v1016 = vsel %vm476, %v920, 0
        %v1019 = vsel %vm476, %v921, 0
        %v1022 = vsel %vm476, %v922, 0
        %v1025 = vsel %vm476, %v923, 0
        %v1028 = vsel %vm476, %v924, 0
        %v1031 = vsel %vm476, %v925, 0
        %v1034 = vsel %vm476, %v926, 0
        %1036 = vmatpush.msra.mxu0 0.0
        %1037 = vmatpush.msra.mxu0 0.0
        %1038 = vmatpush.msra.mxu0 0.0
        %1039 = vmatpush.msra.mxu0 0.0
        %1040 = vmatpush.msra.mxu0 %v939
        %1041 = vmatpush.msra.mxu0 %v938
        %1042 = vmatpush.msra.mxu0 %v937
        %1043 = vmatpush.msra.mxu0 %v936
        %1044 = vmatpush.msra.mxu0 %v935
        %1045 = vmatpush.msra.mxu0 %v934
        %1046 = vmatpush.msra.mxu0 %v933
        %1047 = vmatpush.msra.mxu0 %v932
        %1048 = vmatpush.msra.mxu0 %v931
        %1049 = vmatpush.msra.mxu0 %v930
        %1050 = vmatpush.msra.mxu0 %v929
        %1051 = vmatpush.msra.mxu0 %v928
        %1052 = vmatmul.f32.gmra.mxu0 %v941
        %v1053 = vpop.f32.mrf.mxu0
        %v1054 = vadd.f32 0.0, %v1053
        %1055 = vmatmul.f32.gmra.mxu0 %v944
        %v1056 = vpop.f32.mrf.mxu0
        %v1057 = vadd.f32 0.0, %v1056
        %1058 = vmatmul.f32.gmra.mxu0 %v947
        %v1059 = vpop.f32.mrf.mxu0
        %v1060 = vadd.f32 0.0, %v1059
        %1061 = vmatmul.f32.gmra.mxu0 %v950
        %v1062 = vpop.f32.mrf.mxu0
        %v1063 = vadd.f32 0.0, %v1062
        %1064 = vmatmul.f32.gmra.mxu0 %v953
        %v1065 = vpop.f32.mrf.mxu0
        %v1066 = vadd.f32 0.0, %v1065
        %1067 = vmatmul.f32.gmra.mxu0 %v956
        %v1068 = vpop.f32.mrf.mxu0
        %v1069 = vadd.f32 0.0, %v1068
        %1070 = vmatmul.f32.gmra.mxu0 %v959
        %v1071 = vpop.f32.mrf.mxu0
        %v1072 = vadd.f32 0.0, %v1071
        %1073 = vmatmul.f32.gmra.mxu0 %v962
        %v1074 = vpop.f32.mrf.mxu0
        %v1075 = vadd.f32 0.0, %v1074
        %1076 = vmatmul.f32.gmra.mxu0 %v965
        %v1077 = vpop.f32.mrf.mxu0
        %v1078 = vadd.f32 0.0, %v1077
        %1079 = vmatmul.f32.gmra.mxu0 %v968
        %v1080 = vpop.f32.mrf.mxu0
        %v1081 = vadd.f32 0.0, %v1080
        %1082 = vmatmul.f32.gmra.mxu0 %v971
        %v1083 = vpop.f32.mrf.mxu0
        %v1084 = vadd.f32 0.0, %v1083
        %1085 = vmatmul.f32.gmra.mxu0 %v974
        %v1086 = vpop.f32.mrf.mxu0
        %v1087 = vadd.f32 0.0, %v1086
        %1088 = vmatmul.f32.gmra.mxu0 %v977
        %v1089 = vpop.f32.mrf.mxu0
        %v1090 = vadd.f32 0.0, %v1089
        %1091 = vmatmul.f32.gmra.mxu0 %v980
        %v1092 = vpop.f32.mrf.mxu0
        %v1093 = vadd.f32 0.0, %v1092
        %1094 = vmatmul.f32.gmra.mxu0 %v983
        %v1095 = vpop.f32.mrf.mxu0
        %v1096 = vadd.f32 0.0, %v1095
        %1097 = vmatmul.f32.gmra.mxu0 %v986
        %v1098 = vpop.f32.mrf.mxu0
        %v1099 = vadd.f32 0.0, %v1098
        %1100 = vmatmul.f32.gmra.mxu0 %v989
        %v1101 = vpop.f32.mrf.mxu0
        %v1102 = vadd.f32 0.0, %v1101
        %1103 = vmatmul.f32.gmra.mxu0 %v992
        %v1104 = vpop.f32.mrf.mxu0
        %v1105 = vadd.f32 0.0, %v1104
        %1106 = vmatmul.f32.gmra.mxu0 %v995
        %v1107 = vpop.f32.mrf.mxu0
        %v1108 = vadd.f32 0.0, %v1107
        %1109 = vmatmul.f32.gmra.mxu0 %v998
        %v1110 = vpop.f32.mrf.mxu0
        %v1111 = vadd.f32 0.0, %v1110
        %1112 = vmatmul.f32.gmra.mxu0 %v1001
        %v1113 = vpop.f32.mrf.mxu0
        %v1114 = vadd.f32 0.0, %v1113
        %1115 = vmatmul.f32.gmra.mxu0 %v1004
        %v1116 = vpop.f32.mrf.mxu0
        %v1117 = vadd.f32 0.0, %v1116
        %1118 = vmatmul.f32.gmra.mxu0 %v1007
        %v1119 = vpop.f32.mrf.mxu0
        %v1120 = vadd.f32 0.0, %v1119
        %1121 = vmatmul.f32.gmra.mxu0 %v1010
        %v1122 = vpop.f32.mrf.mxu0
        %v1123 = vadd.f32 0.0, %v1122
        %1124 = vmatmul.f32.gmra.mxu0 %v1013
        %v1125 = vpop.f32.mrf.mxu0
        %v1126 = vadd.f32 0.0, %v1125
        %1127 = vmatmul.f32.gmra.mxu0 %v1016
        %v1128 = vpop.f32.mrf.mxu0
        %v1129 = vadd.f32 0.0, %v1128
        %1130 = vmatmul.f32.gmra.mxu0 %v1019
        %v1131 = vpop.f32.mrf.mxu0
        %v1132 = vadd.f32 0.0, %v1131
        %1133 = vmatmul.f32.gmra.mxu0 %v1022
        %v1134 = vpop.f32.mrf.mxu0
        %v1135 = vadd.f32 0.0, %v1134
        %1136 = vmatmul.f32.gmra.mxu0 %v1025
        %v1137 = vpop.f32.mrf.mxu0
        %v1138 = vadd.f32 0.0, %v1137
        %1139 = vmatmul.f32.gmra.mxu0 %v1028
        %v1140 = vpop.f32.mrf.mxu0
        %v1141 = vadd.f32 0.0, %v1140
        %1142 = vmatmul.f32.gmra.mxu0 %v1031
        %v1143 = vpop.f32.mrf.mxu0
        %v1144 = vadd.f32 0.0, %v1143
        %1145 = vmatmul.f32.gmra.mxu0 %v1034
        %v1146 = vpop.f32.mrf.mxu0
        %v1147 = vadd.f32 0.0, %v1146
        %1148 = vdwg.mxu0
        %v1149 = vadd.f32 %v800, %v1054
        %v1150 = vadd.f32 %v803, %v1057
        %v1151 = vadd.f32 %v806, %v1060
        %v1152 = vadd.f32 %v809, %v1063
        %v1153 = vadd.f32 %v812, %v1066
        %v1154 = vadd.f32 %v815, %v1069
        %v1155 = vadd.f32 %v818, %v1072
        %v1156 = vadd.f32 %v821, %v1075
        %v1157 = vadd.f32 %v824, %v1078
        %v1158 = vadd.f32 %v827, %v1081
        %v1159 = vadd.f32 %v830, %v1084
        %v1160 = vadd.f32 %v833, %v1087
        %v1161 = vadd.f32 %v836, %v1090
        %v1162 = vadd.f32 %v839, %v1093
        %v1163 = vadd.f32 %v842, %v1096
        %v1164 = vadd.f32 %v845, %v1099
        %v1165 = vadd.f32 %v848, %v1102
        %v1166 = vadd.f32 %v851, %v1105
        %v1167 = vadd.f32 %v854, %v1108
        %v1168 = vadd.f32 %v857, %v1111
        %v1169 = vadd.f32 %v860, %v1114
        %v1170 = vadd.f32 %v863, %v1117
        %v1171 = vadd.f32 %v866, %v1120
        %v1172 = vadd.f32 %v869, %v1123
        %v1173 = vadd.f32 %v872, %v1126
        %v1174 = vadd.f32 %v875, %v1129
        %v1175 = vadd.f32 %v878, %v1132
        %v1176 = vadd.f32 %v881, %v1135
        %v1177 = vadd.f32 %v884, %v1138
        %v1178 = vadd.f32 %v887, %v1141
        %v1179 = vadd.f32 %v890, %v1144
        %v1180 = vadd.f32 %v893, %v1147
        %v1181 = vld [vmem:[%s385 + $0x3] sm:$0xff]
        %v1182 = vld [vmem:[%s385 + $0xb] sm:$0xff]
        %v1183 = vld [vmem:[%s385 + $0x13] sm:$0xff]
        %v1184 = vld [vmem:[%s385 + $0x1b] sm:$0xff]
        %v1185 = vld [vmem:[%s385 + $0x23] sm:$0xff]
        %v1186 = vld [vmem:[%s385 + $0x2b] sm:$0xff]
        %v1187 = vld [vmem:[%s385 + $0x33] sm:$0xff]
        %v1188 = vld [vmem:[%s385 + $0x3b] sm:$0xff]
        %v1189 = vld [vmem:[%s385 + $0x43] sm:$0xff]
        %v1190 = vld [vmem:[%s385 + $0x4b] sm:$0xff]
        %v1191 = vld [vmem:[%s385 + $0x53] sm:$0xff]
        %v1192 = vld [vmem:[%s385 + $0x5b] sm:$0xff]
        %v1193 = vld [vmem:[%s385 + $0x63] sm:$0xff]
        %v1194 = vld [vmem:[%s385 + $0x6b] sm:$0xff]
        %v1195 = vld [vmem:[%s385 + $0x73] sm:$0xff]
        %v1196 = vld [vmem:[%s385 + $0x7b] sm:$0xff]
        %v1197 = vld [vmem:[%s385 + $0x83] sm:$0xff]
        %v1198 = vld [vmem:[%s385 + $0x8b] sm:$0xff]
        %v1199 = vld [vmem:[%s385 + $0x93] sm:$0xff]
        %v1200 = vld [vmem:[%s385 + $0x9b] sm:$0xff]
        %v1201 = vld [vmem:[%s385 + $0xa3] sm:$0xff]
        %v1202 = vld [vmem:[%s385 + $0xab] sm:$0xff]
        %v1203 = vld [vmem:[%s385 + $0xb3] sm:$0xff]
        %v1204 = vld [vmem:[%s385 + $0xbb] sm:$0xff]
        %v1205 = vld [vmem:[%s385 + $0xc3] sm:$0xff]
        %v1206 = vld [vmem:[%s385 + $0xcb] sm:$0xff]
        %v1207 = vld [vmem:[%s385 + $0xd3] sm:$0xff]
        %v1208 = vld [vmem:[%s385 + $0xdb] sm:$0xff]
        %v1209 = vld [vmem:[%s385 + $0xe3] sm:$0xff]
        %v1210 = vld [vmem:[%s385 + $0xeb] sm:$0xff]
        %v1211 = vld [vmem:[%s385 + $0xf3] sm:$0xff]
        %v1212 = vld [vmem:[%s385 + $0xfb] sm:$0xf]
        %s1213 = scalar_lea.vmem %s1, 288
        %v1214 = vld [vmem:[%s1213] sm:$0xff]
        %v1215 = vld [vmem:[%s1213 + $0x8] sm:$0xff]
        %v1216 = vld [vmem:[%s1213 + $0x10] sm:$0xff]
        %v1217 = vld [vmem:[%s1213 + $0x18] sm:$0xff]
        %v1218 = vld [vmem:[%s1213 + $0x20] sm:$0xff]
        %v1219 = vld [vmem:[%s1213 + $0x28] sm:$0xff]
        %v1220 = vld [vmem:[%s1213 + $0x30] sm:$0xff]
        %v1221 = vld [vmem:[%s1213 + $0x38] sm:$0xff]
        %v1222 = vld [vmem:[%s1213 + $0x40] sm:$0xff]
        %v1223 = vld [vmem:[%s1213 + $0x48] sm:$0xff]
        %v1224 = vld [vmem:[%s1213 + $0x50] sm:$0xff]
        %v1225 = vld [vmem:[%s1213 + $0x58] sm:$0xff]
        %v1227 = vsel %vm476, %v1181, 0
        %v1230 = vsel %vm476, %v1182, 0
        %v1233 = vsel %vm476, %v1183, 0
        %v1236 = vsel %vm476, %v1184, 0
        %v1239 = vsel %vm476, %v1185, 0
        %v1242 = vsel %vm476, %v1186, 0
        %v1245 = vsel %vm476, %v1187, 0
        %v1248 = vsel %vm476, %v1188, 0
        %v1251 = vsel %vm476, %v1189, 0
        %v1254 = vsel %vm476, %v1190, 0
        %v1257 = vsel %vm476, %v1191, 0
        %v1260 = vsel %vm476, %v1192, 0
        %v1263 = vsel %vm476, %v1193, 0
        %v1266 = vsel %vm476, %v1194, 0
        %v1269 = vsel %vm476, %v1195, 0
        %v1272 = vsel %vm476, %v1196, 0
        %v1275 = vsel %vm476, %v1197, 0
        %v1278 = vsel %vm476, %v1198, 0
        %v1281 = vsel %vm476, %v1199, 0
        %v1284 = vsel %vm476, %v1200, 0
        %v1287 = vsel %vm476, %v1201, 0
        %v1290 = vsel %vm476, %v1202, 0
        %v1293 = vsel %vm476, %v1203, 0
        %v1296 = vsel %vm476, %v1204, 0
        %v1299 = vsel %vm476, %v1205, 0
        %v1302 = vsel %vm476, %v1206, 0
        %v1305 = vsel %vm476, %v1207, 0
        %v1308 = vsel %vm476, %v1208, 0
        %v1311 = vsel %vm476, %v1209, 0
        %v1314 = vsel %vm476, %v1210, 0
        %v1317 = vsel %vm476, %v1211, 0
        %v1320 = vsel %vm476, %v1212, 0
        %1322 = vmatpush.msra.mxu0 0.0
        %1323 = vmatpush.msra.mxu0 0.0
        %1324 = vmatpush.msra.mxu0 0.0
        %1325 = vmatpush.msra.mxu0 0.0
        %1326 = vmatpush.msra.mxu0 %v1225
        %1327 = vmatpush.msra.mxu0 %v1224
        %1328 = vmatpush.msra.mxu0 %v1223
        %1329 = vmatpush.msra.mxu0 %v1222
        %1330 = vmatpush.msra.mxu0 %v1221
        %1331 = vmatpush.msra.mxu0 %v1220
        %1332 = vmatpush.msra.mxu0 %v1219
        %1333 = vmatpush.msra.mxu0 %v1218
        %1334 = vmatpush.msra.mxu0 %v1217
        %1335 = vmatpush.msra.mxu0 %v1216
        %1336 = vmatpush.msra.mxu0 %v1215
        %1337 = vmatpush.msra.mxu0 %v1214
        %1338 = vmatmul.f32.gmra.mxu0 %v1227
        %v1339 = vpop.f32.mrf.mxu0
        %v1340 = vadd.f32 0.0, %v1339
        %1341 = vmatmul.f32.gmra.mxu0 %v1230
        %v1342 = vpop.f32.mrf.mxu0
        %v1343 = vadd.f32 0.0, %v1342
        %1344 = vmatmul.f32.gmra.mxu0 %v1233
        %v1345 = vpop.f32.mrf.mxu0
        %v1346 = vadd.f32 0.0, %v1345
        %1347 = vmatmul.f32.gmra.mxu0 %v1236
        %v1348 = vpop.f32.mrf.mxu0
        %v1349 = vadd.f32 0.0, %v1348
        %1350 = vmatmul.f32.gmra.mxu0 %v1239
        %v1351 = vpop.f32.mrf.mxu0
        %v1352 = vadd.f32 0.0, %v1351
        %1353 = vmatmul.f32.gmra.mxu0 %v1242
        %v1354 = vpop.f32.mrf.mxu0
        %v1355 = vadd.f32 0.0, %v1354
        %1356 = vmatmul.f32.gmra.mxu0 %v1245
        %v1357 = vpop.f32.mrf.mxu0
        %v1358 = vadd.f32 0.0, %v1357
        %1359 = vmatmul.f32.gmra.mxu0 %v1248
        %v1360 = vpop.f32.mrf.mxu0
        %v1361 = vadd.f32 0.0, %v1360
        %1362 = vmatmul.f32.gmra.mxu0 %v1251
        %v1363 = vpop.f32.mrf.mxu0
        %v1364 = vadd.f32 0.0, %v1363
        %1365 = vmatmul.f32.gmra.mxu0 %v1254
        %v1366 = vpop.f32.mrf.mxu0
        %v1367 = vadd.f32 0.0, %v1366
        %1368 = vmatmul.f32.gmra.mxu0 %v1257
        %v1369 = vpop.f32.mrf.mxu0
        %v1370 = vadd.f32 0.0, %v1369
        %1371 = vmatmul.f32.gmra.mxu0 %v1260
        %v1372 = vpop.f32.mrf.mxu0
        %v1373 = vadd.f32 0.0, %v1372
        %1374 = vmatmul.f32.gmra.mxu0 %v1263
        %v1375 = vpop.f32.mrf.mxu0
        %v1376 = vadd.f32 0.0, %v1375
        %1377 = vmatmul.f32.gmra.mxu0 %v1266
        %v1378 = vpop.f32.mrf.mxu0
        %v1379 = vadd.f32 0.0, %v1378
        %1380 = vmatmul.f32.gmra.mxu0 %v1269
        %v1381 = vpop.f32.mrf.mxu0
        %v1382 = vadd.f32 0.0, %v1381
        %1383 = vmatmul.f32.gmra.mxu0 %v1272
        %v1384 = vpop.f32.mrf.mxu0
        %v1385 = vadd.f32 0.0, %v1384
        %1386 = vmatmul.f32.gmra.mxu0 %v1275
        %v1387 = vpop.f32.mrf.mxu0
        %v1388 = vadd.f32 0.0, %v1387
        %1389 = vmatmul.f32.gmra.mxu0 %v1278
        %v1390 = vpop.f32.mrf.mxu0
        %v1391 = vadd.f32 0.0, %v1390
        %1392 = vmatmul.f32.gmra.mxu0 %v1281
        %v1393 = vpop.f32.mrf.mxu0
        %v1394 = vadd.f32 0.0, %v1393
        %1395 = vmatmul.f32.gmra.mxu0 %v1284
        %v1396 = vpop.f32.mrf.mxu0
        %v1397 = vadd.f32 0.0, %v1396
        %1398 = vmatmul.f32.gmra.mxu0 %v1287
        %v1399 = vpop.f32.mrf.mxu0
        %v1400 = vadd.f32 0.0, %v1399
        %1401 = vmatmul.f32.gmra.mxu0 %v1290
        %v1402 = vpop.f32.mrf.mxu0
        %v1403 = vadd.f32 0.0, %v1402
        %1404 = vmatmul.f32.gmra.mxu0 %v1293
        %v1405 = vpop.f32.mrf.mxu0
        %v1406 = vadd.f32 0.0, %v1405
        %1407 = vmatmul.f32.gmra.mxu0 %v1296
        %v1408 = vpop.f32.mrf.mxu0
        %v1409 = vadd.f32 0.0, %v1408
        %1410 = vmatmul.f32.gmra.mxu0 %v1299
        %v1411 = vpop.f32.mrf.mxu0
        %v1412 = vadd.f32 0.0, %v1411
        %1413 = vmatmul.f32.gmra.mxu0 %v1302
        %v1414 = vpop.f32.mrf.mxu0
        %v1415 = vadd.f32 0.0, %v1414
        %1416 = vmatmul.f32.gmra.mxu0 %v1305
        %v1417 = vpop.f32.mrf.mxu0
        %v1418 = vadd.f32 0.0, %v1417
        %1419 = vmatmul.f32.gmra.mxu0 %v1308
        %v1420 = vpop.f32.mrf.mxu0
        %v1421 = vadd.f32 0.0, %v1420
        %1422 = vmatmul.f32.gmra.mxu0 %v1311
        %v1423 = vpop.f32.mrf.mxu0
        %v1424 = vadd.f32 0.0, %v1423
        %1425 = vmatmul.f32.gmra.mxu0 %v1314
        %v1426 = vpop.f32.mrf.mxu0
        %v1427 = vadd.f32 0.0, %v1426
        %1428 = vmatmul.f32.gmra.mxu0 %v1317
        %v1429 = vpop.f32.mrf.mxu0
        %v1430 = vadd.f32 0.0, %v1429
        %1431 = vmatmul.f32.gmra.mxu0 %v1320
        %v1432 = vpop.f32.mrf.mxu0
        %v1433 = vadd.f32 0.0, %v1432
        %1434 = vdwg.mxu0
        %v1435 = vadd.f32 %v1149, %v1340
        %v1436 = vadd.f32 %v1150, %v1343
        %v1437 = vadd.f32 %v1151, %v1346
        %v1438 = vadd.f32 %v1152, %v1349
        %v1439 = vadd.f32 %v1153, %v1352
        %v1440 = vadd.f32 %v1154, %v1355
        %v1441 = vadd.f32 %v1155, %v1358
        %v1442 = vadd.f32 %v1156, %v1361
        %v1443 = vadd.f32 %v1157, %v1364
        %v1444 = vadd.f32 %v1158, %v1367
        %v1445 = vadd.f32 %v1159, %v1370
        %v1446 = vadd.f32 %v1160, %v1373
        %v1447 = vadd.f32 %v1161, %v1376
        %v1448 = vadd.f32 %v1162, %v1379
        %v1449 = vadd.f32 %v1163, %v1382
        %v1450 = vadd.f32 %v1164, %v1385
        %v1451 = vadd.f32 %v1165, %v1388
        %v1452 = vadd.f32 %v1166, %v1391
        %v1453 = vadd.f32 %v1167, %v1394
        %v1454 = vadd.f32 %v1168, %v1397
        %v1455 = vadd.f32 %v1169, %v1400
        %v1456 = vadd.f32 %v1170, %v1403
        %v1457 = vadd.f32 %v1171, %v1406
        %v1458 = vadd.f32 %v1172, %v1409
        %v1459 = vadd.f32 %v1173, %v1412
        %v1460 = vadd.f32 %v1174, %v1415
        %v1461 = vadd.f32 %v1175, %v1418
        %v1462 = vadd.f32 %v1176, %v1421
        %v1463 = vadd.f32 %v1177, %v1424
        %v1464 = vadd.f32 %v1178, %v1427
        %v1465 = vadd.f32 %v1179, %v1430
        %v1466 = vadd.f32 %v1180, %v1433
        %v1467 = vld [vmem:[%s385 + $0x4] sm:$0xff]
        %v1468 = vld [vmem:[%s385 + $0xc] sm:$0xff]
        %v1469 = vld [vmem:[%s385 + $0x14] sm:$0xff]
        %v1470 = vld [vmem:[%s385 + $0x1c] sm:$0xff]
        %v1471 = vld [vmem:[%s385 + $0x24] sm:$0xff]
        %v1472 = vld [vmem:[%s385 + $0x2c] sm:$0xff]
        %v1473 = vld [vmem:[%s385 + $0x34] sm:$0xff]
        %v1474 = vld [vmem:[%s385 + $0x3c] sm:$0xff]
        %v1475 = vld [vmem:[%s385 + $0x44] sm:$0xff]
        %v1476 = vld [vmem:[%s385 + $0x4c] sm:$0xff]
        %v1477 = vld [vmem:[%s385 + $0x54] sm:$0xff]
        %v1478 = vld [vmem:[%s385 + $0x5c] sm:$0xff]
        %v1479 = vld [vmem:[%s385 + $0x64] sm:$0xff]
        %v1480 = vld [vmem:[%s385 + $0x6c] sm:$0xff]
        %v1481 = vld [vmem:[%s385 + $0x74] sm:$0xff]
        %v1482 = vld [vmem:[%s385 + $0x7c] sm:$0xff]
        %v1483 = vld [vmem:[%s385 + $0x84] sm:$0xff]
        %v1484 = vld [vmem:[%s385 + $0x8c] sm:$0xff]
        %v1485 = vld [vmem:[%s385 + $0x94] sm:$0xff]
        %v1486 = vld [vmem:[%s385 + $0x9c] sm:$0xff]
        %v1487 = vld [vmem:[%s385 + $0xa4] sm:$0xff]
        %v1488 = vld [vmem:[%s385 + $0xac] sm:$0xff]
        %v1489 = vld [vmem:[%s385 + $0xb4] sm:$0xff]
        %v1490 = vld [vmem:[%s385 + $0xbc] sm:$0xff]
        %v1491 = vld [vmem:[%s385 + $0xc4] sm:$0xff]
        %v1492 = vld [vmem:[%s385 + $0xcc] sm:$0xff]
        %v1493 = vld [vmem:[%s385 + $0xd4] sm:$0xff]
        %v1494 = vld [vmem:[%s385 + $0xdc] sm:$0xff]
        %v1495 = vld [vmem:[%s385 + $0xe4] sm:$0xff]
        %v1496 = vld [vmem:[%s385 + $0xec] sm:$0xff]
        %v1497 = vld [vmem:[%s385 + $0xf4] sm:$0xff]
        %v1498 = vld [vmem:[%s385 + $0xfc] sm:$0xf]
        %s1499 = scalar_lea.vmem %s1, 384
        %v1500 = vld [vmem:[%s1499] sm:$0xff]
        %v1501 = vld [vmem:[%s1499 + $0x8] sm:$0xff]
        %v1502 = vld [vmem:[%s1499 + $0x10] sm:$0xff]
        %v1503 = vld [vmem:[%s1499 + $0x18] sm:$0xff]
        %v1504 = vld [vmem:[%s1499 + $0x20] sm:$0xff]
        %v1505 = vld [vmem:[%s1499 + $0x28] sm:$0xff]
        %v1506 = vld [vmem:[%s1499 + $0x30] sm:$0xff]
        %v1507 = vld [vmem:[%s1499 + $0x38] sm:$0xff]
        %v1508 = vld [vmem:[%s1499 + $0x40] sm:$0xff]
        %v1509 = vld [vmem:[%s1499 + $0x48] sm:$0xff]
        %v1510 = vld [vmem:[%s1499 + $0x50] sm:$0xff]
        %v1511 = vld [vmem:[%s1499 + $0x58] sm:$0xff]
        %v1513 = vsel %vm476, %v1467, 0
        %v1516 = vsel %vm476, %v1468, 0
        %v1519 = vsel %vm476, %v1469, 0
        %v1522 = vsel %vm476, %v1470, 0
        %v1525 = vsel %vm476, %v1471, 0
        %v1528 = vsel %vm476, %v1472, 0
        %v1531 = vsel %vm476, %v1473, 0
        %v1534 = vsel %vm476, %v1474, 0
        %v1537 = vsel %vm476, %v1475, 0
        %v1540 = vsel %vm476, %v1476, 0
        %v1543 = vsel %vm476, %v1477, 0
        %v1546 = vsel %vm476, %v1478, 0
        %v1549 = vsel %vm476, %v1479, 0
        %v1552 = vsel %vm476, %v1480, 0
        %v1555 = vsel %vm476, %v1481, 0
        %v1558 = vsel %vm476, %v1482, 0
        %v1561 = vsel %vm476, %v1483, 0
        %v1564 = vsel %vm476, %v1484, 0
        %v1567 = vsel %vm476, %v1485, 0
        %v1570 = vsel %vm476, %v1486, 0
        %v1573 = vsel %vm476, %v1487, 0
        %v1576 = vsel %vm476, %v1488, 0
        %v1579 = vsel %vm476, %v1489, 0
        %v1582 = vsel %vm476, %v1490, 0
        %v1585 = vsel %vm476, %v1491, 0
        %v1588 = vsel %vm476, %v1492, 0
        %v1591 = vsel %vm476, %v1493, 0
        %v1594 = vsel %vm476, %v1494, 0
        %v1597 = vsel %vm476, %v1495, 0
        %v1600 = vsel %vm476, %v1496, 0
        %v1603 = vsel %vm476, %v1497, 0
        %v1606 = vsel %vm476, %v1498, 0
        %1608 = vmatpush.msra.mxu0 0.0
        %1609 = vmatpush.msra.mxu0 0.0
        %1610 = vmatpush.msra.mxu0 0.0
        %1611 = vmatpush.msra.mxu0 0.0
        %1612 = vmatpush.msra.mxu0 %v1511
        %1613 = vmatpush.msra.mxu0 %v1510
        %1614 = vmatpush.msra.mxu0 %v1509
        %1615 = vmatpush.msra.mxu0 %v1508
        %1616 = vmatpush.msra.mxu0 %v1507
        %1617 = vmatpush.msra.mxu0 %v1506
        %1618 = vmatpush.msra.mxu0 %v1505
        %1619 = vmatpush.msra.mxu0 %v1504
        %1620 = vmatpush.msra.mxu0 %v1503
        %1621 = vmatpush.msra.mxu0 %v1502
        %1622 = vmatpush.msra.mxu0 %v1501
        %1623 = vmatpush.msra.mxu0 %v1500
        %1624 = vmatmul.f32.gmra.mxu0 %v1513
        %v1625 = vpop.f32.mrf.mxu0
        %v1626 = vadd.f32 0.0, %v1625
        %1627 = vmatmul.f32.gmra.mxu0 %v1516
        %v1628 = vpop.f32.mrf.mxu0
        %v1629 = vadd.f32 0.0, %v1628
        %1630 = vmatmul.f32.gmra.mxu0 %v1519
        %v1631 = vpop.f32.mrf.mxu0
        %v1632 = vadd.f32 0.0, %v1631
        %1633 = vmatmul.f32.gmra.mxu0 %v1522
        %v1634 = vpop.f32.mrf.mxu0
        %v1635 = vadd.f32 0.0, %v1634
        %1636 = vmatmul.f32.gmra.mxu0 %v1525
        %v1637 = vpop.f32.mrf.mxu0
        %v1638 = vadd.f32 0.0, %v1637
        %1639 = vmatmul.f32.gmra.mxu0 %v1528
        %v1640 = vpop.f32.mrf.mxu0
        %v1641 = vadd.f32 0.0, %v1640
        %1642 = vmatmul.f32.gmra.mxu0 %v1531
        %v1643 = vpop.f32.mrf.mxu0
        %v1644 = vadd.f32 0.0, %v1643
        %1645 = vmatmul.f32.gmra.mxu0 %v1534
        %v1646 = vpop.f32.mrf.mxu0
        %v1647 = vadd.f32 0.0, %v1646
        %1648 = vmatmul.f32.gmra.mxu0 %v1537
        %v1649 = vpop.f32.mrf.mxu0
        %v1650 = vadd.f32 0.0, %v1649
        %1651 = vmatmul.f32.gmra.mxu0 %v1540
        %v1652 = vpop.f32.mrf.mxu0
        %v1653 = vadd.f32 0.0, %v1652
        %1654 = vmatmul.f32.gmra.mxu0 %v1543
        %v1655 = vpop.f32.mrf.mxu0
        %v1656 = vadd.f32 0.0, %v1655
        %1657 = vmatmul.f32.gmra.mxu0 %v1546
        %v1658 = vpop.f32.mrf.mxu0
        %v1659 = vadd.f32 0.0, %v1658
        %1660 = vmatmul.f32.gmra.mxu0 %v1549
        %v1661 = vpop.f32.mrf.mxu0
        %v1662 = vadd.f32 0.0, %v1661
        %1663 = vmatmul.f32.gmra.mxu0 %v1552
        %v1664 = vpop.f32.mrf.mxu0
        %v1665 = vadd.f32 0.0, %v1664
        %1666 = vmatmul.f32.gmra.mxu0 %v1555
        %v1667 = vpop.f32.mrf.mxu0
        %v1668 = vadd.f32 0.0, %v1667
        %1669 = vmatmul.f32.gmra.mxu0 %v1558
        %v1670 = vpop.f32.mrf.mxu0
        %v1671 = vadd.f32 0.0, %v1670
        %1672 = vmatmul.f32.gmra.mxu0 %v1561
        %v1673 = vpop.f32.mrf.mxu0
        %v1674 = vadd.f32 0.0, %v1673
        %1675 = vmatmul.f32.gmra.mxu0 %v1564
        %v1676 = vpop.f32.mrf.mxu0
        %v1677 = vadd.f32 0.0, %v1676
        %1678 = vmatmul.f32.gmra.mxu0 %v1567
        %v1679 = vpop.f32.mrf.mxu0
        %v1680 = vadd.f32 0.0, %v1679
        %1681 = vmatmul.f32.gmra.mxu0 %v1570
        %v1682 = vpop.f32.mrf.mxu0
        %v1683 = vadd.f32 0.0, %v1682
        %1684 = vmatmul.f32.gmra.mxu0 %v1573
        %v1685 = vpop.f32.mrf.mxu0
        %v1686 = vadd.f32 0.0, %v1685
        %1687 = vmatmul.f32.gmra.mxu0 %v1576
        %v1688 = vpop.f32.mrf.mxu0
        %v1689 = vadd.f32 0.0, %v1688
        %1690 = vmatmul.f32.gmra.mxu0 %v1579
        %v1691 = vpop.f32.mrf.mxu0
        %v1692 = vadd.f32 0.0, %v1691
        %1693 = vmatmul.f32.gmra.mxu0 %v1582
        %v1694 = vpop.f32.mrf.mxu0
        %v1695 = vadd.f32 0.0, %v1694
        %1696 = vmatmul.f32.gmra.mxu0 %v1585
        %v1697 = vpop.f32.mrf.mxu0
        %v1698 = vadd.f32 0.0, %v1697
        %1699 = vmatmul.f32.gmra.mxu0 %v1588
        %v1700 = vpop.f32.mrf.mxu0
        %v1701 = vadd.f32 0.0, %v1700
        %1702 = vmatmul.f32.gmra.mxu0 %v1591
        %v1703 = vpop.f32.mrf.mxu0
        %v1704 = vadd.f32 0.0, %v1703
        %1705 = vmatmul.f32.gmra.mxu0 %v1594
        %v1706 = vpop.f32.mrf.mxu0
        %v1707 = vadd.f32 0.0, %v1706
        %1708 = vmatmul.f32.gmra.mxu0 %v1597
        %v1709 = vpop.f32.mrf.mxu0
        %v1710 = vadd.f32 0.0, %v1709
        %1711 = vmatmul.f32.gmra.mxu0 %v1600
        %v1712 = vpop.f32.mrf.mxu0
        %v1713 = vadd.f32 0.0, %v1712
        %1714 = vmatmul.f32.gmra.mxu0 %v1603
        %v1715 = vpop.f32.mrf.mxu0
        %v1716 = vadd.f32 0.0, %v1715
        %1717 = vmatmul.f32.gmra.mxu0 %v1606
        %v1718 = vpop.f32.mrf.mxu0
        %v1719 = vadd.f32 0.0, %v1718
        %1720 = vdwg.mxu0
        %v1721 = vadd.f32 %v1435, %v1626
        %v1722 = vadd.f32 %v1436, %v1629
        %v1723 = vadd.f32 %v1437, %v1632
        %v1724 = vadd.f32 %v1438, %v1635
        %v1725 = vadd.f32 %v1439, %v1638
        %v1726 = vadd.f32 %v1440, %v1641
        %v1727 = vadd.f32 %v1441, %v1644
        %v1728 = vadd.f32 %v1442, %v1647
        %v1729 = vadd.f32 %v1443, %v1650
        %v1730 = vadd.f32 %v1444, %v1653
        %v1731 = vadd.f32 %v1445, %v1656
        %v1732 = vadd.f32 %v1446, %v1659
        %v1733 = vadd.f32 %v1447, %v1662
        %v1734 = vadd.f32 %v1448, %v1665
        %v1735 = vadd.f32 %v1449, %v1668
        %v1736 = vadd.f32 %v1450, %v1671
        %v1737 = vadd.f32 %v1451, %v1674
        %v1738 = vadd.f32 %v1452, %v1677
        %v1739 = vadd.f32 %v1453, %v1680
        %v1740 = vadd.f32 %v1454, %v1683
        %v1741 = vadd.f32 %v1455, %v1686
        %v1742 = vadd.f32 %v1456, %v1689
        %v1743 = vadd.f32 %v1457, %v1692
        %v1744 = vadd.f32 %v1458, %v1695
        %v1745 = vadd.f32 %v1459, %v1698
        %v1746 = vadd.f32 %v1460, %v1701
        %v1747 = vadd.f32 %v1461, %v1704
        %v1748 = vadd.f32 %v1462, %v1707
        %v1749 = vadd.f32 %v1463, %v1710
        %v1750 = vadd.f32 %v1464, %v1713
        %v1751 = vadd.f32 %v1465, %v1716
        %v1752 = vadd.f32 %v1466, %v1719
        %vm1753 = vcmask 687104
        %1754 = vst.msk [vmem:[#allocation2] sm:$0xff] %vm1753, %v1721
        %1755 = vst.msk [vmem:[#allocation2 + $0x8] sm:$0xff] %vm1753, %v1722
        %1756 = vst.msk [vmem:[#allocation2 + $0x10] sm:$0xff] %vm1753, %v1723
        %1757 = vst.msk [vmem:[#allocation2 + $0x18] sm:$0xff] %vm1753, %v1724
        %1758 = vst.msk [vmem:[#allocation2 + $0x20] sm:$0xff] %vm1753, %v1725
        %1759 = vst.msk [vmem:[#allocation2 + $0x28] sm:$0xff] %vm1753, %v1726
        %1760 = vst.msk [vmem:[#allocation2 + $0x30] sm:$0xff] %vm1753, %v1727
        %1761 = vst.msk [vmem:[#allocation2 + $0x38] sm:$0xff] %vm1753, %v1728
        %1762 = vst.msk [vmem:[#allocation2 + $0x40] sm:$0xff] %vm1753, %v1729
        %1763 = vst.msk [vmem:[#allocation2 + $0x48] sm:$0xff] %vm1753, %v1730
        %1764 = vst.msk [vmem:[#allocation2 + $0x50] sm:$0xff] %vm1753, %v1731
        %1765 = vst.msk [vmem:[#allocation2 + $0x58] sm:$0xff] %vm1753, %v1732
        %1766 = vst.msk [vmem:[#allocation2 + $0x60] sm:$0xff] %vm1753, %v1733
        %1767 = vst.msk [vmem:[#allocation2 + $0x68] sm:$0xff] %vm1753, %v1734
        %1768 = vst.msk [vmem:[#allocation2 + $0x70] sm:$0xff] %vm1753, %v1735
        %1769 = vst.msk [vmem:[#allocation2 + $0x78] sm:$0xff] %vm1753, %v1736
        %1770 = vst.msk [vmem:[#allocation2 + $0x80] sm:$0xff] %vm1753, %v1737
        %1771 = vst.msk [vmem:[#allocation2 + $0x88] sm:$0xff] %vm1753, %v1738
        %1772 = vst.msk [vmem:[#allocation2 + $0x90] sm:$0xff] %vm1753, %v1739
        %1773 = vst.msk [vmem:[#allocation2 + $0x98] sm:$0xff] %vm1753, %v1740
        %1774 = vst.msk [vmem:[#allocation2 + $0xa0] sm:$0xff] %vm1753, %v1741
        %1775 = vst.msk [vmem:[#allocation2 + $0xa8] sm:$0xff] %vm1753, %v1742
        %1776 = vst.msk [vmem:[#allocation2 + $0xb0] sm:$0xff] %vm1753, %v1743
        %1777 = vst.msk [vmem:[#allocation2 + $0xb8] sm:$0xff] %vm1753, %v1744
        %1778 = vst.msk [vmem:[#allocation2 + $0xc0] sm:$0xff] %vm1753, %v1745
        %1779 = vst.msk [vmem:[#allocation2 + $0xc8] sm:$0xff] %vm1753, %v1746
        %1780 = vst.msk [vmem:[#allocation2 + $0xd0] sm:$0xff] %vm1753, %v1747
        %1781 = vst.msk [vmem:[#allocation2 + $0xd8] sm:$0xff] %vm1753, %v1748
        %1782 = vst.msk [vmem:[#allocation2 + $0xe0] sm:$0xff] %vm1753, %v1749
        %1783 = vst.msk [vmem:[#allocation2 + $0xe8] sm:$0xff] %vm1753, %v1750
        %1784 = vst.msk [vmem:[#allocation2 + $0xf0] sm:$0xff] %vm1753, %v1751
        %vm1785 = vcmask 683008
        %1786 = vst.msk [vmem:[#allocation2 + $0xf8] sm:$0xf] %vm1785, %v1752
        %1787 = vst.msk [vmem:[#allocation2 + $0xfc] sm:$0xf] %vm1785, 0.0
        %v1788 = vld [vmem:[#allocation2] ss:$2 sm:$0xff]
        %s1789 = scalar_lea.vmem [#allocation2], 16
        %v1790 = vld [vmem:[%s1789] ss:$2 sm:$0xff]
        %s1791 = scalar_lea.vmem [#allocation2], 32
        %v1792 = vld [vmem:[%s1791] ss:$2 sm:$0xff]
        %s1793 = scalar_lea.vmem [#allocation2], 48
        %v1794 = vld [vmem:[%s1793] ss:$2 sm:$0xff]
        %s1795 = scalar_lea.vmem [#allocation2], 64
        %v1796 = vld [vmem:[%s1795] ss:$2 sm:$0xff]
        %s1797 = scalar_lea.vmem [#allocation2], 80
        %v1798 = vld [vmem:[%s1797] ss:$2 sm:$0xff]
        %s1799 = scalar_lea.vmem [#allocation2], 96
        %v1800 = vld [vmem:[%s1799] ss:$2 sm:$0xff]
        %s1801 = scalar_lea.vmem [#allocation2], 112
        %v1802 = vld [vmem:[%s1801] ss:$2 sm:$0xff]
        %s1803 = scalar_lea.vmem [#allocation2], 128
        %v1804 = vld [vmem:[%s1803] ss:$2 sm:$0xff]
        %s1805 = scalar_lea.vmem [#allocation2], 144
        %v1806 = vld [vmem:[%s1805] ss:$2 sm:$0xff]
        %s1807 = scalar_lea.vmem [#allocation2], 160
        %v1808 = vld [vmem:[%s1807] ss:$2 sm:$0xff]
        %s1809 = scalar_lea.vmem [#allocation2], 176
        %v1810 = vld [vmem:[%s1809] ss:$2 sm:$0xff]
        %s1811 = scalar_lea.vmem [#allocation2], 192
        %v1812 = vld [vmem:[%s1811] ss:$2 sm:$0xff]
        %s1813 = scalar_lea.vmem [#allocation2], 208
        %v1814 = vld [vmem:[%s1813] ss:$2 sm:$0xff]
        %s1815 = scalar_lea.vmem [#allocation2], 224
        %v1816 = vld [vmem:[%s1815] ss:$2 sm:$0xff]
        %s1817 = scalar_lea.vmem [#allocation2], 240
        %v1818 = vld [vmem:[%s1817] ss:$2 sm:$0xff]
        %s1819 = scalar_lea.vmem [#allocation2], 1
        %v1820 = vld [vmem:[%s1819] ss:$2 sm:$0xff]
        %s1821 = scalar_lea.vmem [#allocation2], 17
        %v1822 = vld [vmem:[%s1821] ss:$2 sm:$0xff]
        %s1823 = scalar_lea.vmem [#allocation2], 33
        %v1824 = vld [vmem:[%s1823] ss:$2 sm:$0xff]
        %s1825 = scalar_lea.vmem [#allocation2], 49
        %v1826 = vld [vmem:[%s1825] ss:$2 sm:$0xff]
        %s1827 = scalar_lea.vmem [#allocation2], 65
        %v1828 = vld [vmem:[%s1827] ss:$2 sm:$0xff]
        %s1829 = scalar_lea.vmem [#allocation2], 81
        %v1830 = vld [vmem:[%s1829] ss:$2 sm:$0xff]
        %s1831 = scalar_lea.vmem [#allocation2], 97
        %v1832 = vld [vmem:[%s1831] ss:$2 sm:$0xff]
        %s1833 = scalar_lea.vmem [#allocation2], 113
        %v1834 = vld [vmem:[%s1833] ss:$2 sm:$0xff]
        %s1835 = scalar_lea.vmem [#allocation2], 129
        %v1836 = vld [vmem:[%s1835] ss:$2 sm:$0xff]
        %s1837 = scalar_lea.vmem [#allocation2], 145
        %v1838 = vld [vmem:[%s1837] ss:$2 sm:$0xff]
        %s1839 = scalar_lea.vmem [#allocation2], 161
        %v1840 = vld [vmem:[%s1839] ss:$2 sm:$0xff]
        %s1841 = scalar_lea.vmem [#allocation2], 177
        %v1842 = vld [vmem:[%s1841] ss:$2 sm:$0xff]
        %s1843 = scalar_lea.vmem [#allocation2], 193
        %v1844 = vld [vmem:[%s1843] ss:$2 sm:$0xff]
        %s1845 = scalar_lea.vmem [#allocation2], 209
        %v1846 = vld [vmem:[%s1845] ss:$2 sm:$0xff]
        %s1847 = scalar_lea.vmem [#allocation2], 225
        %v1848 = vld [vmem:[%s1847] ss:$2 sm:$0xff]
        %s1849 = scalar_lea.vmem [#allocation2], 241
        %v1850 = vld [vmem:[%s1849] ss:$2 sm:$0xff]
        %v1851 = vadd.f32 %v1788, %v1820
        %v1852 = vadd.f32 %v1790, %v1822
        %v1853 = vadd.f32 %v1792, %v1824
        %v1854 = vadd.f32 %v1794, %v1826
        %v1855 = vadd.f32 %v1796, %v1828
        %v1856 = vadd.f32 %v1798, %v1830
        %v1857 = vadd.f32 %v1800, %v1832
        %v1858 = vadd.f32 %v1802, %v1834
        %v1859 = vadd.f32 %v1804, %v1836
        %v1860 = vadd.f32 %v1806, %v1838
        %v1861 = vadd.f32 %v1808, %v1840
        %v1862 = vadd.f32 %v1810, %v1842
        %v1863 = vadd.f32 %v1812, %v1844
        %v1864 = vadd.f32 %v1814, %v1846
        %v1865 = vadd.f32 %v1816, %v1848
        %v1866 = vadd.f32 %v1818, %v1850
        %v1867 = vmul.f32 %v1851, 0.5
        %v1868 = vmul.f32 %v1852, 0.5
        %v1869 = vmul.f32 %v1853, 0.5
        %v1870 = vmul.f32 %v1854, 0.5
        %v1871 = vmul.f32 %v1855, 0.5
        %v1872 = vmul.f32 %v1856, 0.5
        %v1873 = vmul.f32 %v1857, 0.5
        %v1874 = vmul.f32 %v1858, 0.5
        %v1875 = vmul.f32 %v1859, 0.5
        %v1876 = vmul.f32 %v1860, 0.5
        %v1877 = vmul.f32 %v1861, 0.5
        %v1878 = vmul.f32 %v1862, 0.5
        %v1879 = vmul.f32 %v1863, 0.5
        %v1880 = vmul.f32 %v1864, 0.5
        %v1881 = vmul.f32 %v1865, 0.5
        %v1882 = vmul.f32 %v1866, 0.5
        %v1883 = vld [vmem:[%s2] sm:$0x1]
        %v1885 = vperm.slane %v1883, 0
        %v1887 = vadd.f32 %v1867, %v1885
        %v1888 = vadd.f32 %v1868, %v1885
        %v1889 = vadd.f32 %v1869, %v1885
        %v1890 = vadd.f32 %v1870, %v1885
        %v1891 = vadd.f32 %v1871, %v1885
        %v1892 = vadd.f32 %v1872, %v1885
        %v1893 = vadd.f32 %v1873, %v1885
        %v1894 = vadd.f32 %v1874, %v1885
        %v1895 = vadd.f32 %v1875, %v1885
        %v1896 = vadd.f32 %v1876, %v1885
        %v1897 = vadd.f32 %v1877, %v1885
        %v1898 = vadd.f32 %v1878, %v1885
        %v1899 = vadd.f32 %v1879, %v1885
        %v1900 = vadd.f32 %v1880, %v1885
        %v1901 = vadd.f32 %v1881, %v1885
        %v1902 = vadd.f32 %v1882, %v1885
        %1903 = vst.msk [vmem:[#allocation3] sm:$0xff] %vm1753, %v1887
        %1904 = vst.msk [vmem:[#allocation3 + $0x8] sm:$0xff] %vm1753, %v1888
        %1905 = vst.msk [vmem:[#allocation3 + $0x10] sm:$0xff] %vm1753, %v1889
        %1906 = vst.msk [vmem:[#allocation3 + $0x18] sm:$0xff] %vm1753, %v1890
        %1907 = vst.msk [vmem:[#allocation3 + $0x20] sm:$0xff] %vm1753, %v1891
        %1908 = vst.msk [vmem:[#allocation3 + $0x28] sm:$0xff] %vm1753, %v1892
        %1909 = vst.msk [vmem:[#allocation3 + $0x30] sm:$0xff] %vm1753, %v1893
        %1910 = vst.msk [vmem:[#allocation3 + $0x38] sm:$0xff] %vm1753, %v1894
        %1911 = vst.msk [vmem:[#allocation3 + $0x40] sm:$0xff] %vm1753, %v1895
        %1912 = vst.msk [vmem:[#allocation3 + $0x48] sm:$0xff] %vm1753, %v1896
        %1913 = vst.msk [vmem:[#allocation3 + $0x50] sm:$0xff] %vm1753, %v1897
        %1914 = vst.msk [vmem:[#allocation3 + $0x58] sm:$0xff] %vm1753, %v1898
        %1915 = vst.msk [vmem:[#allocation3 + $0x60] sm:$0xff] %vm1753, %v1899
        %1916 = vst.msk [vmem:[#allocation3 + $0x68] sm:$0xff] %vm1753, %v1900
        %1917 = vst.msk [vmem:[#allocation3 + $0x70] sm:$0xff] %vm1753, %v1901
        %1918 = vst.msk [vmem:[#allocation3 + $0x78] sm:$0xff] %vm1753, %v1902
        %v1919 = vld [vmem:[#allocation3] sm:$0xff]
        %v1920 = vld [vmem:[#allocation3 + $0x8] sm:$0xff]
        %v1921 = vld [vmem:[#allocation3 + $0x10] sm:$0xff]
        %v1922 = vld [vmem:[#allocation3 + $0x18] sm:$0xff]
        %v1923 = vld [vmem:[#allocation3 + $0x20] sm:$0xff]
        %v1924 = vld [vmem:[#allocation3 + $0x28] sm:$0xff]
        %v1925 = vld [vmem:[#allocation3 + $0x30] sm:$0xff]
        %v1926 = vld [vmem:[#allocation3 + $0x38] sm:$0xff]
        %v1927 = vld [vmem:[#allocation3 + $0x40] sm:$0xff]
        %v1928 = vld [vmem:[#allocation3 + $0x48] sm:$0xff]
        %v1929 = vld [vmem:[#allocation3 + $0x50] sm:$0xff]
        %v1930 = vld [vmem:[#allocation3 + $0x58] sm:$0xff]
        %v1931 = vld [vmem:[#allocation3 + $0x60] sm:$0xff]
        %v1932 = vld [vmem:[#allocation3 + $0x68] sm:$0xff]
        %v1933 = vld [vmem:[#allocation3 + $0x70] sm:$0xff]
        %v1934 = vld [vmem:[#allocation3 + $0x78] sm:$0xf]
        %v1935 = vld [vmem:[%s3] sm:$0xff]
        %v1936 = vld [vmem:[%s3 + $0x8] sm:$0xff]
        %v1937 = vld [vmem:[%s3 + $0x10] sm:$0xff]
        %v1938 = vld [vmem:[%s3 + $0x18] sm:$0xff]
        %v1939 = vld [vmem:[%s3 + $0x20] sm:$0xff]
        %v1940 = vld [vmem:[%s3 + $0x28] sm:$0xff]
        %v1941 = vld [vmem:[%s3 + $0x30] sm:$0xff]
        %v1942 = vld [vmem:[%s3 + $0x38] sm:$0xff]
        %v1943 = vld [vmem:[%s3 + $0x40] sm:$0xff]
        %v1944 = vld [vmem:[%s3 + $0x48] sm:$0xff]
        %v1945 = vld [vmem:[%s3 + $0x50] sm:$0xf]
        %v1946 = vld [vmem:[#allocation3 + $0x1] sm:$0xff]
        %v1947 = vld [vmem:[#allocation3 + $0x9] sm:$0xff]
        %v1948 = vld [vmem:[#allocation3 + $0x11] sm:$0xff]
        %v1949 = vld [vmem:[#allocation3 + $0x19] sm:$0xff]
        %v1950 = vld [vmem:[#allocation3 + $0x21] sm:$0xff]
        %v1951 = vld [vmem:[#allocation3 + $0x29] sm:$0xff]
        %v1952 = vld [vmem:[#allocation3 + $0x31] sm:$0xff]
        %v1953 = vld [vmem:[#allocation3 + $0x39] sm:$0xff]
        %v1954 = vld [vmem:[#allocation3 + $0x41] sm:$0xff]
        %v1955 = vld [vmem:[#allocation3 + $0x49] sm:$0xff]
        %v1956 = vld [vmem:[#allocation3 + $0x51] sm:$0xff]
        %v1957 = vld [vmem:[#allocation3 + $0x59] sm:$0xff]
        %v1958 = vld [vmem:[#allocation3 + $0x61] sm:$0xff]
        %v1959 = vld [vmem:[#allocation3 + $0x69] sm:$0xff]
        %v1960 = vld [vmem:[#allocation3 + $0x71] sm:$0xff]
        %v1961 = vld [vmem:[#allocation3 + $0x79] sm:$0xf]
        %s1962 = scalar_lea.vmem %s3, 88
        %v1963 = vld [vmem:[%s1962] sm:$0xff]
        %v1964 = vld [vmem:[%s1962 + $0x8] sm:$0xff]
        %v1965 = vld [vmem:[%s1962 + $0x10] sm:$0xff]
        %v1966 = vld [vmem:[%s1962 + $0x18] sm:$0xff]
        %v1967 = vld [vmem:[%s1962 + $0x20] sm:$0xff]
        %v1968 = vld [vmem:[%s1962 + $0x28] sm:$0xff]
        %v1969 = vld [vmem:[%s1962 + $0x30] sm:$0xff]
        %v1970 = vld [vmem:[%s1962 + $0x38] sm:$0xff]
        %v1971 = vld [vmem:[%s1962 + $0x40] sm:$0xff]
        %v1972 = vld [vmem:[%s1962 + $0x48] sm:$0xff]
        %v1973 = vld [vmem:[%s1962 + $0x50] sm:$0xf]
        %v1975 = vsel %vm1753, %v1946, 0
        %v1978 = vsel %vm1753, %v1947, 0
        %v1981 = vsel %vm1753, %v1948, 0
        %v1984 = vsel %vm1753, %v1949, 0
        %v1987 = vsel %vm1753, %v1950, 0
        %v1990 = vsel %vm1753, %v1951, 0
        %v1993 = vsel %vm1753, %v1952, 0
        %v1996 = vsel %vm1753, %v1953, 0
        %v1999 = vsel %vm1753, %v1954, 0
        %v2002 = vsel %vm1753, %v1955, 0
        %v2005 = vsel %vm1753, %v1956, 0
        %v2008 = vsel %vm1753, %v1957, 0
        %v2011 = vsel %vm1753, %v1958, 0
        %v2014 = vsel %vm1753, %v1959, 0
        %v2017 = vsel %vm1753, %v1960, 0
        %v2020 = vsel %vm1753, %v1961, 0
        %vm2022 = vcmask 1043456
        %v2024 = vsel %vm2022, %v1973, 0
        %2026 = vmatpush.msra.mxu0 0.0
        %2027 = vmatpush.msra.mxu0 0.0
        %2028 = vmatpush.msra.mxu0 0.0
        %2029 = vmatpush.msra.mxu0 0.0
        %2030 = vmatpush.msra.mxu0 0.0
        %2031 = vmatpush.msra.mxu0 %v2024
        %2032 = vmatpush.msra.mxu0 %v1972
        %2033 = vmatpush.msra.mxu0 %v1971
        %2034 = vmatpush.msra.mxu0 %v1970
        %2035 = vmatpush.msra.mxu0 %v1969
        %2036 = vmatpush.msra.mxu0 %v1968
        %2037 = vmatpush.msra.mxu0 %v1967
        %2038 = vmatpush.msra.mxu0 %v1966
        %2039 = vmatpush.msra.mxu0 %v1965
        %2040 = vmatpush.msra.mxu0 %v1964
        %2041 = vmatpush.msra.mxu0 %v1963
        %2042 = vmatmul.f32.gmra.mxu0 %v1975
        %v2043 = vpop.f32.mrf.mxu0
        %v2044 = vadd.f32 0.0, %v2043
        %2045 = vmatmul.f32.gmra.mxu0 %v1978
        %v2046 = vpop.f32.mrf.mxu0
        %v2047 = vadd.f32 0.0, %v2046
        %2048 = vmatmul.f32.gmra.mxu0 %v1981
        %v2049 = vpop.f32.mrf.mxu0
        %v2050 = vadd.f32 0.0, %v2049
        %2051 = vmatmul.f32.gmra.mxu0 %v1984
        %v2052 = vpop.f32.mrf.mxu0
        %v2053 = vadd.f32 0.0, %v2052
        %2054 = vmatmul.f32.gmra.mxu0 %v1987
        %v2055 = vpop.f32.mrf.mxu0
        %v2056 = vadd.f32 0.0, %v2055
        %2057 = vmatmul.f32.gmra.mxu0 %v1990
        %v2058 = vpop.f32.mrf.mxu0
        %v2059 = vadd.f32 0.0, %v2058
        %2060 = vmatmul.f32.gmra.mxu0 %v1993
        %v2061 = vpop.f32.mrf.mxu0
        %v2062 = vadd.f32 0.0, %v2061
        %2063 = vmatmul.f32.gmra.mxu0 %v1996
        %v2064 = vpop.f32.mrf.mxu0
        %v2065 = vadd.f32 0.0, %v2064
        %2066 = vmatmul.f32.gmra.mxu0 %v1999
        %v2067 = vpop.f32.mrf.mxu0
        %v2068 = vadd.f32 0.0, %v2067
        %2069 = vmatmul.f32.gmra.mxu0 %v2002
        %v2070 = vpop.f32.mrf.mxu0
        %v2071 = vadd.f32 0.0, %v2070
        %2072 = vmatmul.f32.gmra.mxu0 %v2005
        %v2073 = vpop.f32.mrf.mxu0
        %v2074 = vadd.f32 0.0, %v2073
        %2075 = vmatmul.f32.gmra.mxu0 %v2008
        %v2076 = vpop.f32.mrf.mxu0
        %v2077 = vadd.f32 0.0, %v2076
        %2078 = vmatmul.f32.gmra.mxu0 %v2011
        %v2079 = vpop.f32.mrf.mxu0
        %v2080 = vadd.f32 0.0, %v2079
        %2081 = vmatmul.f32.gmra.mxu0 %v2014
        %v2082 = vpop.f32.mrf.mxu0
        %v2083 = vadd.f32 0.0, %v2082
        %2084 = vmatmul.f32.gmra.mxu0 %v2017
        %v2085 = vpop.f32.mrf.mxu0
        %v2086 = vadd.f32 0.0, %v2085
        %2087 = vmatmul.f32.gmra.mxu0 %v2020
        %v2088 = vpop.f32.mrf.mxu0
        %v2089 = vadd.f32 0.0, %v2088
        %2090 = vdwg.mxu0
        %v2092 = vsel %vm1753, %v1919, 0
        %v2095 = vsel %vm1753, %v1920, 0
        %v2098 = vsel %vm1753, %v1921, 0
        %v2101 = vsel %vm1753, %v1922, 0
        %v2104 = vsel %vm1753, %v1923, 0
        %v2107 = vsel %vm1753, %v1924, 0
        %v2110 = vsel %vm1753, %v1925, 0
        %v2113 = vsel %vm1753, %v1926, 0
        %v2116 = vsel %vm1753, %v1927, 0
        %v2119 = vsel %vm1753, %v1928, 0
        %v2122 = vsel %vm1753, %v1929, 0
        %v2125 = vsel %vm1753, %v1930, 0
        %v2128 = vsel %vm1753, %v1931, 0
        %v2131 = vsel %vm1753, %v1932, 0
        %v2134 = vsel %vm1753, %v1933, 0
        %v2137 = vsel %vm1753, %v1934, 0
        %v2140 = vsel %vm2022, %v1945, 0
        %2142 = vmatpush.msra.mxu0 0.0
        %2143 = vmatpush.msra.mxu0 0.0
        %2144 = vmatpush.msra.mxu0 0.0
        %2145 = vmatpush.msra.mxu0 0.0
        %2146 = vmatpush.msra.mxu0 0.0
        %2147 = vmatpush.msra.mxu0 %v2140
        %2148 = vmatpush.msra.mxu0 %v1944
        %2149 = vmatpush.msra.mxu0 %v1943
        %2150 = vmatpush.msra.mxu0 %v1942
        %2151 = vmatpush.msra.mxu0 %v1941
        %2152 = vmatpush.msra.mxu0 %v1940
        %2153 = vmatpush.msra.mxu0 %v1939
        %2154 = vmatpush.msra.mxu0 %v1938
        %2155 = vmatpush.msra.mxu0 %v1937
        %2156 = vmatpush.msra.mxu0 %v1936
        %2157 = vmatpush.msra.mxu0 %v1935
        %2158 = vmatmul.f32.gmra.mxu0 %v2092
        %v2159 = vpop.f32.mrf.mxu0
        %v2160 = vadd.f32 %v2044, %v2159
        %2161 = vmatmul.f32.gmra.mxu0 %v2095
        %v2162 = vpop.f32.mrf.mxu0
        %v2163 = vadd.f32 %v2047, %v2162
        %2164 = vmatmul.f32.gmra.mxu0 %v2098
        %v2165 = vpop.f32.mrf.mxu0
        %v2166 = vadd.f32 %v2050, %v2165
        %2167 = vmatmul.f32.gmra.mxu0 %v2101
        %v2168 = vpop.f32.mrf.mxu0
        %v2169 = vadd.f32 %v2053, %v2168
        %2170 = vmatmul.f32.gmra.mxu0 %v2104
        %v2171 = vpop.f32.mrf.mxu0
        %v2172 = vadd.f32 %v2056, %v2171
        %2173 = vmatmul.f32.gmra.mxu0 %v2107
        %v2174 = vpop.f32.mrf.mxu0
        %v2175 = vadd.f32 %v2059, %v2174
        %2176 = vmatmul.f32.gmra.mxu0 %v2110
        %v2177 = vpop.f32.mrf.mxu0
        %v2178 = vadd.f32 %v2062, %v2177
        %2179 = vmatmul.f32.gmra.mxu0 %v2113
        %v2180 = vpop.f32.mrf.mxu0
        %v2181 = vadd.f32 %v2065, %v2180
        %2182 = vmatmul.f32.gmra.mxu0 %v2116
        %v2183 = vpop.f32.mrf.mxu0
        %v2184 = vadd.f32 %v2068, %v2183
        %2185 = vmatmul.f32.gmra.mxu0 %v2119
        %v2186 = vpop.f32.mrf.mxu0
        %v2187 = vadd.f32 %v2071, %v2186
        %2188 = vmatmul.f32.gmra.mxu0 %v2122
        %v2189 = vpop.f32.mrf.mxu0
        %v2190 = vadd.f32 %v2074, %v2189
        %2191 = vmatmul.f32.gmra.mxu0 %v2125
        %v2192 = vpop.f32.mrf.mxu0
        %v2193 = vadd.f32 %v2077, %v2192
        %2194 = vmatmul.f32.gmra.mxu0 %v2128
        %v2195 = vpop.f32.mrf.mxu0
        %v2196 = vadd.f32 %v2080, %v2195
        %2197 = vmatmul.f32.gmra.mxu0 %v2131
        %v2198 = vpop.f32.mrf.mxu0
        %v2199 = vadd.f32 %v2083, %v2198
        %2200 = vmatmul.f32.gmra.mxu0 %v2134
        %v2201 = vpop.f32.mrf.mxu0
        %v2202 = vadd.f32 %v2086, %v2201
        %2203 = vmatmul.f32.gmra.mxu0 %v2137
        %v2204 = vpop.f32.mrf.mxu0
        %v2205 = vadd.f32 %v2089, %v2204
        %2206 = vdwg.mxu0
        %v2207 = vld [vmem:[#allocation3 + $0x2] sm:$0xff]
        %v2208 = vld [vmem:[#allocation3 + $0xa] sm:$0xff]
        %v2209 = vld [vmem:[#allocation3 + $0x12] sm:$0xff]
        %v2210 = vld [vmem:[#allocation3 + $0x1a] sm:$0xff]
        %v2211 = vld [vmem:[#allocation3 + $0x22] sm:$0xff]
        %v2212 = vld [vmem:[#allocation3 + $0x2a] sm:$0xff]
        %v2213 = vld [vmem:[#allocation3 + $0x32] sm:$0xff]
        %v2214 = vld [vmem:[#allocation3 + $0x3a] sm:$0xff]
        %v2215 = vld [vmem:[#allocation3 + $0x42] sm:$0xff]
        %v2216 = vld [vmem:[#allocation3 + $0x4a] sm:$0xff]
        %v2217 = vld [vmem:[#allocation3 + $0x52] sm:$0xff]
        %v2218 = vld [vmem:[#allocation3 + $0x5a] sm:$0xff]
        %v2219 = vld [vmem:[#allocation3 + $0x62] sm:$0xff]
        %v2220 = vld [vmem:[#allocation3 + $0x6a] sm:$0xff]
        %v2221 = vld [vmem:[#allocation3 + $0x72] sm:$0xff]
        %v2222 = vld [vmem:[#allocation3 + $0x7a] sm:$0xf]
        %s2223 = scalar_lea.vmem %s3, 176
        %v2224 = vld [vmem:[%s2223] sm:$0xff]
        %v2225 = vld [vmem:[%s2223 + $0x8] sm:$0xff]
        %v2226 = vld [vmem:[%s2223 + $0x10] sm:$0xff]
        %v2227 = vld [vmem:[%s2223 + $0x18] sm:$0xff]
        %v2228 = vld [vmem:[%s2223 + $0x20] sm:$0xff]
        %v2229 = vld [vmem:[%s2223 + $0x28] sm:$0xff]
        %v2230 = vld [vmem:[%s2223 + $0x30] sm:$0xff]
        %v2231 = vld [vmem:[%s2223 + $0x38] sm:$0xff]
        %v2232 = vld [vmem:[%s2223 + $0x40] sm:$0xff]
        %v2233 = vld [vmem:[%s2223 + $0x48] sm:$0xff]
        %v2234 = vld [vmem:[%s2223 + $0x50] sm:$0xf]
        %v2236 = vsel %vm1753, %v2207, 0
        %v2239 = vsel %vm1753, %v2208, 0
        %v2242 = vsel %vm1753, %v2209, 0
        %v2245 = vsel %vm1753, %v2210, 0
        %v2248 = vsel %vm1753, %v2211, 0
        %v2251 = vsel %vm1753, %v2212, 0
        %v2254 = vsel %vm1753, %v2213, 0
        %v2257 = vsel %vm1753, %v2214, 0
        %v2260 = vsel %vm1753, %v2215, 0
        %v2263 = vsel %vm1753, %v2216, 0
        %v2266 = vsel %vm1753, %v2217, 0
        %v2269 = vsel %vm1753, %v2218, 0
        %v2272 = vsel %vm1753, %v2219, 0
        %v2275 = vsel %vm1753, %v2220, 0
        %v2278 = vsel %vm1753, %v2221, 0
        %v2281 = vsel %vm1753, %v2222, 0
        %v2284 = vsel %vm2022, %v2234, 0
        %2286 = vmatpush.msra.mxu0 0.0
        %2287 = vmatpush.msra.mxu0 0.0
        %2288 = vmatpush.msra.mxu0 0.0
        %2289 = vmatpush.msra.mxu0 0.0
        %2290 = vmatpush.msra.mxu0 0.0
        %2291 = vmatpush.msra.mxu0 %v2284
        %2292 = vmatpush.msra.mxu0 %v2233
        %2293 = vmatpush.msra.mxu0 %v2232
        %2294 = vmatpush.msra.mxu0 %v2231
        %2295 = vmatpush.msra.mxu0 %v2230
        %2296 = vmatpush.msra.mxu0 %v2229
        %2297 = vmatpush.msra.mxu0 %v2228
        %2298 = vmatpush.msra.mxu0 %v2227
        %2299 = vmatpush.msra.mxu0 %v2226
        %2300 = vmatpush.msra.mxu0 %v2225
        %2301 = vmatpush.msra.mxu0 %v2224
        %2302 = vmatmul.f32.gmra.mxu0 %v2236
        %v2303 = vpop.f32.mrf.mxu0
        %v2304 = vadd.f32 0.0, %v2303
        %2305 = vmatmul.f32.gmra.mxu0 %v2239
        %v2306 = vpop.f32.mrf.mxu0
        %v2307 = vadd.f32 0.0, %v2306
        %2308 = vmatmul.f32.gmra.mxu0 %v2242
        %v2309 = vpop.f32.mrf.mxu0
        %v2310 = vadd.f32 0.0, %v2309
        %2311 = vmatmul.f32.gmra.mxu0 %v2245
        %v2312 = vpop.f32.mrf.mxu0
        %v2313 = vadd.f32 0.0, %v2312
        %2314 = vmatmul.f32.gmra.mxu0 %v2248
        %v2315 = vpop.f32.mrf.mxu0
        %v2316 = vadd.f32 0.0, %v2315
        %2317 = vmatmul.f32.gmra.mxu0 %v2251
        %v2318 = vpop.f32.mrf.mxu0
        %v2319 = vadd.f32 0.0, %v2318
        %2320 = vmatmul.f32.gmra.mxu0 %v2254
        %v2321 = vpop.f32.mrf.mxu0
        %v2322 = vadd.f32 0.0, %v2321
        %2323 = vmatmul.f32.gmra.mxu0 %v2257
        %v2324 = vpop.f32.mrf.mxu0
        %v2325 = vadd.f32 0.0, %v2324
        %2326 = vmatmul.f32.gmra.mxu0 %v2260
        %v2327 = vpop.f32.mrf.mxu0
        %v2328 = vadd.f32 0.0, %v2327
        %2329 = vmatmul.f32.gmra.mxu0 %v2263
        %v2330 = vpop.f32.mrf.mxu0
        %v2331 = vadd.f32 0.0, %v2330
        %2332 = vmatmul.f32.gmra.mxu0 %v2266
        %v2333 = vpop.f32.mrf.mxu0
        %v2334 = vadd.f32 0.0, %v2333
        %2335 = vmatmul.f32.gmra.mxu0 %v2269
        %v2336 = vpop.f32.mrf.mxu0
        %v2337 = vadd.f32 0.0, %v2336
        %2338 = vmatmul.f32.gmra.mxu0 %v2272
        %v2339 = vpop.f32.mrf.mxu0
        %v2340 = vadd.f32 0.0, %v2339
        %2341 = vmatmul.f32.gmra.mxu0 %v2275
        %v2342 = vpop.f32.mrf.mxu0
        %v2343 = vadd.f32 0.0, %v2342
        %2344 = vmatmul.f32.gmra.mxu0 %v2278
        %v2345 = vpop.f32.mrf.mxu0
        %v2346 = vadd.f32 0.0, %v2345
        %2347 = vmatmul.f32.gmra.mxu0 %v2281
        %v2348 = vpop.f32.mrf.mxu0
        %v2349 = vadd.f32 0.0, %v2348
        %2350 = vdwg.mxu0
        %v2351 = vadd.f32 %v2160, %v2304
        %v2352 = vadd.f32 %v2163, %v2307
        %v2353 = vadd.f32 %v2166, %v2310
        %v2354 = vadd.f32 %v2169, %v2313
        %v2355 = vadd.f32 %v2172, %v2316
        %v2356 = vadd.f32 %v2175, %v2319
        %v2357 = vadd.f32 %v2178, %v2322
        %v2358 = vadd.f32 %v2181, %v2325
        %v2359 = vadd.f32 %v2184, %v2328
        %v2360 = vadd.f32 %v2187, %v2331
        %v2361 = vadd.f32 %v2190, %v2334
        %v2362 = vadd.f32 %v2193, %v2337
        %v2363 = vadd.f32 %v2196, %v2340
        %v2364 = vadd.f32 %v2199, %v2343
        %v2365 = vadd.f32 %v2202, %v2346
        %v2366 = vadd.f32 %v2205, %v2349
        %v2367 = vld [vmem:[#allocation3 + $0x3] sm:$0xff]
        %v2368 = vld [vmem:[#allocation3 + $0xb] sm:$0xff]
        %v2369 = vld [vmem:[#allocation3 + $0x13] sm:$0xff]
        %v2370 = vld [vmem:[#allocation3 + $0x1b] sm:$0xff]
        %v2371 = vld [vmem:[#allocation3 + $0x23] sm:$0xff]
        %v2372 = vld [vmem:[#allocation3 + $0x2b] sm:$0xff]
        %v2373 = vld [vmem:[#allocation3 + $0x33] sm:$0xff]
        %v2374 = vld [vmem:[#allocation3 + $0x3b] sm:$0xff]
        %v2375 = vld [vmem:[#allocation3 + $0x43] sm:$0xff]
        %v2376 = vld [vmem:[#allocation3 + $0x4b] sm:$0xff]
        %v2377 = vld [vmem:[#allocation3 + $0x53] sm:$0xff]
        %v2378 = vld [vmem:[#allocation3 + $0x5b] sm:$0xff]
        %v2379 = vld [vmem:[#allocation3 + $0x63] sm:$0xff]
        %v2380 = vld [vmem:[#allocation3 + $0x6b] sm:$0xff]
        %v2381 = vld [vmem:[#allocation3 + $0x73] sm:$0xff]
        %v2382 = vld [vmem:[#allocation3 + $0x7b] sm:$0xf]
        %s2383 = scalar_lea.vmem %s3, 264
        %v2384 = vld [vmem:[%s2383] sm:$0xff]
        %v2385 = vld [vmem:[%s2383 + $0x8] sm:$0xff]
        %v2386 = vld [vmem:[%s2383 + $0x10] sm:$0xff]
        %v2387 = vld [vmem:[%s2383 + $0x18] sm:$0xff]
        %v2388 = vld [vmem:[%s2383 + $0x20] sm:$0xff]
        %v2389 = vld [vmem:[%s2383 + $0x28] sm:$0xff]
        %v2390 = vld [vmem:[%s2383 + $0x30] sm:$0xff]
        %v2391 = vld [vmem:[%s2383 + $0x38] sm:$0xff]
        %v2392 = vld [vmem:[%s2383 + $0x40] sm:$0xff]
        %v2393 = vld [vmem:[%s2383 + $0x48] sm:$0xff]
        %v2394 = vld [vmem:[%s2383 + $0x50] sm:$0xf]
        %v2396 = vsel %vm1753, %v2367, 0
        %v2399 = vsel %vm1753, %v2368, 0
        %v2402 = vsel %vm1753, %v2369, 0
        %v2405 = vsel %vm1753, %v2370, 0
        %v2408 = vsel %vm1753, %v2371, 0
        %v2411 = vsel %vm1753, %v2372, 0
        %v2414 = vsel %vm1753, %v2373, 0
        %v2417 = vsel %vm1753, %v2374, 0
        %v2420 = vsel %vm1753, %v2375, 0
        %v2423 = vsel %vm1753, %v2376, 0
        %v2426 = vsel %vm1753, %v2377, 0
        %v2429 = vsel %vm1753, %v2378, 0
        %v2432 = vsel %vm1753, %v2379, 0
        %v2435 = vsel %vm1753, %v2380, 0
        %v2438 = vsel %vm1753, %v2381, 0
        %v2441 = vsel %vm1753, %v2382, 0
        %v2444 = vsel %vm2022, %v2394, 0
        %2446 = vmatpush.msra.mxu0 0.0
        %2447 = vmatpush.msra.mxu0 0.0
        %2448 = vmatpush.msra.mxu0 0.0
        %2449 = vmatpush.msra.mxu0 0.0
        %2450 = vmatpush.msra.mxu0 0.0
        %2451 = vmatpush.msra.mxu0 %v2444
        %2452 = vmatpush.msra.mxu0 %v2393
        %2453 = vmatpush.msra.mxu0 %v2392
        %2454 = vmatpush.msra.mxu0 %v2391
        %2455 = vmatpush.msra.mxu0 %v2390
        %2456 = vmatpush.msra.mxu0 %v2389
        %2457 = vmatpush.msra.mxu0 %v2388
        %2458 = vmatpush.msra.mxu0 %v2387
        %2459 = vmatpush.msra.mxu0 %v2386
        %2460 = vmatpush.msra.mxu0 %v2385
        %2461 = vmatpush.msra.mxu0 %v2384
        %2462 = vmatmul.f32.gmra.mxu0 %v2396
        %v2463 = vpop.f32.mrf.mxu0
        %v2464 = vadd.f32 0.0, %v2463
        %2465 = vmatmul.f32.gmra.mxu0 %v2399
        %v2466 = vpop.f32.mrf.mxu0
        %v2467 = vadd.f32 0.0, %v2466
        %2468 = vmatmul.f32.gmra.mxu0 %v2402
        %v2469 = vpop.f32.mrf.mxu0
        %v2470 = vadd.f32 0.0, %v2469
        %2471 = vmatmul.f32.gmra.mxu0 %v2405
        %v2472 = vpop.f32.mrf.mxu0
        %v2473 = vadd.f32 0.0, %v2472
        %2474 = vmatmul.f32.gmra.mxu0 %v2408
        %v2475 = vpop.f32.mrf.mxu0
        %v2476 = vadd.f32 0.0, %v2475
        %2477 = vmatmul.f32.gmra.mxu0 %v2411
        %v2478 = vpop.f32.mrf.mxu0
        %v2479 = vadd.f32 0.0, %v2478
        %2480 = vmatmul.f32.gmra.mxu0 %v2414
        %v2481 = vpop.f32.mrf.mxu0
        %v2482 = vadd.f32 0.0, %v2481
        %2483 = vmatmul.f32.gmra.mxu0 %v2417
        %v2484 = vpop.f32.mrf.mxu0
        %v2485 = vadd.f32 0.0, %v2484
        %2486 = vmatmul.f32.gmra.mxu0 %v2420
        %v2487 = vpop.f32.mrf.mxu0
        %v2488 = vadd.f32 0.0, %v2487
        %2489 = vmatmul.f32.gmra.mxu0 %v2423
        %v2490 = vpop.f32.mrf.mxu0
        %v2491 = vadd.f32 0.0, %v2490
        %2492 = vmatmul.f32.gmra.mxu0 %v2426
        %v2493 = vpop.f32.mrf.mxu0
        %v2494 = vadd.f32 0.0, %v2493
        %2495 = vmatmul.f32.gmra.mxu0 %v2429
        %v2496 = vpop.f32.mrf.mxu0
        %v2497 = vadd.f32 0.0, %v2496
        %2498 = vmatmul.f32.gmra.mxu0 %v2432
        %v2499 = vpop.f32.mrf.mxu0
        %v2500 = vadd.f32 0.0, %v2499
        %2501 = vmatmul.f32.gmra.mxu0 %v2435
        %v2502 = vpop.f32.mrf.mxu0
        %v2503 = vadd.f32 0.0, %v2502
        %2504 = vmatmul.f32.gmra.mxu0 %v2438
        %v2505 = vpop.f32.mrf.mxu0
        %v2506 = vadd.f32 0.0, %v2505
        %2507 = vmatmul.f32.gmra.mxu0 %v2441
        %v2508 = vpop.f32.mrf.mxu0
        %v2509 = vadd.f32 0.0, %v2508
        %2510 = vdwg.mxu0
        %v2511 = vadd.f32 %v2351, %v2464
        %v2512 = vadd.f32 %v2352, %v2467
        %v2513 = vadd.f32 %v2353, %v2470
        %v2514 = vadd.f32 %v2354, %v2473
        %v2515 = vadd.f32 %v2355, %v2476
        %v2516 = vadd.f32 %v2356, %v2479
        %v2517 = vadd.f32 %v2357, %v2482
        %v2518 = vadd.f32 %v2358, %v2485
        %v2519 = vadd.f32 %v2359, %v2488
        %v2520 = vadd.f32 %v2360, %v2491
        %v2521 = vadd.f32 %v2361, %v2494
        %v2522 = vadd.f32 %v2362, %v2497
        %v2523 = vadd.f32 %v2363, %v2500
        %v2524 = vadd.f32 %v2364, %v2503
        %v2525 = vadd.f32 %v2365, %v2506
        %v2526 = vadd.f32 %v2366, %v2509
        %v2527 = vld [vmem:[#allocation3 + $0x4] sm:$0xff]
        %v2528 = vld [vmem:[#allocation3 + $0xc] sm:$0xff]
        %v2529 = vld [vmem:[#allocation3 + $0x14] sm:$0xff]
        %v2530 = vld [vmem:[#allocation3 + $0x1c] sm:$0xff]
        %v2531 = vld [vmem:[#allocation3 + $0x24] sm:$0xff]
        %v2532 = vld [vmem:[#allocation3 + $0x2c] sm:$0xff]
        %v2533 = vld [vmem:[#allocation3 + $0x34] sm:$0xff]
        %v2534 = vld [vmem:[#allocation3 + $0x3c] sm:$0xff]
        %v2535 = vld [vmem:[#allocation3 + $0x44] sm:$0xff]
        %v2536 = vld [vmem:[#allocation3 + $0x4c] sm:$0xff]
        %v2537 = vld [vmem:[#allocation3 + $0x54] sm:$0xff]
        %v2538 = vld [vmem:[#allocation3 + $0x5c] sm:$0xff]
        %v2539 = vld [vmem:[#allocation3 + $0x64] sm:$0xff]
        %v2540 = vld [vmem:[#allocation3 + $0x6c] sm:$0xff]
        %v2541 = vld [vmem:[#allocation3 + $0x74] sm:$0xff]
        %v2542 = vld [vmem:[#allocation3 + $0x7c] sm:$0xf]
        %s2543 = scalar_lea.vmem %s3, 352
        %v2544 = vld [vmem:[%s2543] sm:$0xff]
        %v2545 = vld [vmem:[%s2543 + $0x8] sm:$0xff]
        %v2546 = vld [vmem:[%s2543 + $0x10] sm:$0xff]
        %v2547 = vld [vmem:[%s2543 + $0x18] sm:$0xff]
        %v2548 = vld [vmem:[%s2543 + $0x20] sm:$0xff]
        %v2549 = vld [vmem:[%s2543 + $0x28] sm:$0xff]
        %v2550 = vld [vmem:[%s2543 + $0x30] sm:$0xff]
        %v2551 = vld [vmem:[%s2543 + $0x38] sm:$0xff]
        %v2552 = vld [vmem:[%s2543 + $0x40] sm:$0xff]
        %v2553 = vld [vmem:[%s2543 + $0x48] sm:$0xff]
        %v2554 = vld [vmem:[%s2543 + $0x50] sm:$0xf]
        %v2556 = vsel %vm1753, %v2527, 0
        %v2559 = vsel %vm1753, %v2528, 0
        %v2562 = vsel %vm1753, %v2529, 0
        %v2565 = vsel %vm1753, %v2530, 0
        %v2568 = vsel %vm1753, %v2531, 0
        %v2571 = vsel %vm1753, %v2532, 0
        %v2574 = vsel %vm1753, %v2533, 0
        %v2577 = vsel %vm1753, %v2534, 0
        %v2580 = vsel %vm1753, %v2535, 0
        %v2583 = vsel %vm1753, %v2536, 0
        %v2586 = vsel %vm1753, %v2537, 0
        %v2589 = vsel %vm1753, %v2538, 0
        %v2592 = vsel %vm1753, %v2539, 0
        %v2595 = vsel %vm1753, %v2540, 0
        %v2598 = vsel %vm1753, %v2541, 0
        %v2601 = vsel %vm1753, %v2542, 0
        %v2604 = vsel %vm2022, %v2554, 0
        %2606 = vmatpush.msra.mxu0 0.0
        %2607 = vmatpush.msra.mxu0 0.0
        %2608 = vmatpush.msra.mxu0 0.0
        %2609 = vmatpush.msra.mxu0 0.0
        %2610 = vmatpush.msra.mxu0 0.0
        %2611 = vmatpush.msra.mxu0 %v2604
        %2612 = vmatpush.msra.mxu0 %v2553
        %2613 = vmatpush.msra.mxu0 %v2552
        %2614 = vmatpush.msra.mxu0 %v2551
        %2615 = vmatpush.msra.mxu0 %v2550
        %2616 = vmatpush.msra.mxu0 %v2549
        %2617 = vmatpush.msra.mxu0 %v2548
        %2618 = vmatpush.msra.mxu0 %v2547
        %2619 = vmatpush.msra.mxu0 %v2546
        %2620 = vmatpush.msra.mxu0 %v2545
        %2621 = vmatpush.msra.mxu0 %v2544
        %2622 = vmatmul.f32.gmra.mxu0 %v2556
        %v2623 = vpop.f32.mrf.mxu0
        %v2624 = vadd.f32 0.0, %v2623
        %2625 = vmatmul.f32.gmra.mxu0 %v2559
        %v2626 = vpop.f32.mrf.mxu0
        %v2627 = vadd.f32 0.0, %v2626
        %2628 = vmatmul.f32.gmra.mxu0 %v2562
        %v2629 = vpop.f32.mrf.mxu0
        %v2630 = vadd.f32 0.0, %v2629
        %2631 = vmatmul.f32.gmra.mxu0 %v2565
        %v2632 = vpop.f32.mrf.mxu0
        %v2633 = vadd.f32 0.0, %v2632
        %2634 = vmatmul.f32.gmra.mxu0 %v2568
        %v2635 = vpop.f32.mrf.mxu0
        %v2636 = vadd.f32 0.0, %v2635
        %2637 = vmatmul.f32.gmra.mxu0 %v2571
        %v2638 = vpop.f32.mrf.mxu0
        %v2639 = vadd.f32 0.0, %v2638
        %2640 = vmatmul.f32.gmra.mxu0 %v2574
        %v2641 = vpop.f32.mrf.mxu0
        %v2642 = vadd.f32 0.0, %v2641
        %2643 = vmatmul.f32.gmra.mxu0 %v2577
        %v2644 = vpop.f32.mrf.mxu0
        %v2645 = vadd.f32 0.0, %v2644
        %2646 = vmatmul.f32.gmra.mxu0 %v2580
        %v2647 = vpop.f32.mrf.mxu0
        %v2648 = vadd.f32 0.0, %v2647
        %2649 = vmatmul.f32.gmra.mxu0 %v2583
        %v2650 = vpop.f32.mrf.mxu0
        %v2651 = vadd.f32 0.0, %v2650
        %2652 = vmatmul.f32.gmra.mxu0 %v2586
        %v2653 = vpop.f32.mrf.mxu0
        %v2654 = vadd.f32 0.0, %v2653
        %2655 = vmatmul.f32.gmra.mxu0 %v2589
        %v2656 = vpop.f32.mrf.mxu0
        %v2657 = vadd.f32 0.0, %v2656
        %2658 = vmatmul.f32.gmra.mxu0 %v2592
        %v2659 = vpop.f32.mrf.mxu0
        %v2660 = vadd.f32 0.0, %v2659
        %2661 = vmatmul.f32.gmra.mxu0 %v2595
        %v2662 = vpop.f32.mrf.mxu0
        %v2663 = vadd.f32 0.0, %v2662
        %2664 = vmatmul.f32.gmra.mxu0 %v2598
        %v2665 = vpop.f32.mrf.mxu0
        %v2666 = vadd.f32 0.0, %v2665
        %2667 = vmatmul.f32.gmra.mxu0 %v2601
        %v2668 = vpop.f32.mrf.mxu0
        %v2669 = vadd.f32 0.0, %v2668
        %2670 = vdwg.mxu0
        %v2671 = vadd.f32 %v2511, %v2624
        %v2672 = vadd.f32 %v2512, %v2627
        %v2673 = vadd.f32 %v2513, %v2630
        %v2674 = vadd.f32 %v2514, %v2633
        %v2675 = vadd.f32 %v2515, %v2636
        %v2676 = vadd.f32 %v2516, %v2639
        %v2677 = vadd.f32 %v2517, %v2642
        %v2678 = vadd.f32 %v2518, %v2645
        %v2679 = vadd.f32 %v2519, %v2648
        %v2680 = vadd.f32 %v2520, %v2651
        %v2681 = vadd.f32 %v2521, %v2654
        %v2682 = vadd.f32 %v2522, %v2657
        %v2683 = vadd.f32 %v2523, %v2660
        %v2684 = vadd.f32 %v2524, %v2663
        %v2685 = vadd.f32 %v2525, %v2666
        %v2686 = vadd.f32 %v2526, %v2669
        %vm2687 = vcmask 654336
        %2688 = vst.msk [vmem:[#allocation4] sm:$0xff] %vm2687, %v2671
        %2689 = vst.msk [vmem:[#allocation4 + $0x8] sm:$0xff] %vm2687, %v2672
        %2690 = vst.msk [vmem:[#allocation4 + $0x10] sm:$0xff] %vm2687, %v2673
        %2691 = vst.msk [vmem:[#allocation4 + $0x18] sm:$0xff] %vm2687, %v2674
        %2692 = vst.msk [vmem:[#allocation4 + $0x20] sm:$0xff] %vm2687, %v2675
        %2693 = vst.msk [vmem:[#allocation4 + $0x28] sm:$0xff] %vm2687, %v2676
        %2694 = vst.msk [vmem:[#allocation4 + $0x30] sm:$0xff] %vm2687, %v2677
        %2695 = vst.msk [vmem:[#allocation4 + $0x38] sm:$0xff] %vm2687, %v2678
        %2696 = vst.msk [vmem:[#allocation4 + $0x40] sm:$0xff] %vm2687, %v2679
        %2697 = vst.msk [vmem:[#allocation4 + $0x48] sm:$0xff] %vm2687, %v2680
        %2698 = vst.msk [vmem:[#allocation4 + $0x50] sm:$0xff] %vm2687, %v2681
        %2699 = vst.msk [vmem:[#allocation4 + $0x58] sm:$0xff] %vm2687, %v2682
        %2700 = vst.msk [vmem:[#allocation4 + $0x60] sm:$0xff] %vm2687, %v2683
        %2701 = vst.msk [vmem:[#allocation4 + $0x68] sm:$0xff] %vm2687, %v2684
        %2702 = vst.msk [vmem:[#allocation4 + $0x70] sm:$0xff] %vm2687, %v2685
        %vm2703 = vcmask 650240
        %2704 = vst.msk [vmem:[#allocation4 + $0x78] sm:$0xf] %vm2703, %v2686
        %2705 = vst.msk [vmem:[#allocation4 + $0x7c] sm:$0xf] %vm2703, 0.0
        %v2706 = vld [vmem:[#allocation4] ss:$2 sm:$0xff]
        %s2707 = scalar_lea.vmem [#allocation4], 16
        %v2708 = vld [vmem:[%s2707] ss:$2 sm:$0xff]
        %s2709 = scalar_lea.vmem [#allocation4], 32
        %v2710 = vld [vmem:[%s2709] ss:$2 sm:$0xff]
        %s2711 = scalar_lea.vmem [#allocation4], 48
        %v2712 = vld [vmem:[%s2711] ss:$2 sm:$0xff]
        %s2713 = scalar_lea.vmem [#allocation4], 64
        %v2714 = vld [vmem:[%s2713] ss:$2 sm:$0xff]
        %s2715 = scalar_lea.vmem [#allocation4], 80
        %v2716 = vld [vmem:[%s2715] ss:$2 sm:$0xff]
        %s2717 = scalar_lea.vmem [#allocation4], 96
        %v2718 = vld [vmem:[%s2717] ss:$2 sm:$0xff]
        %s2719 = scalar_lea.vmem [#allocation4], 112
        %v2720 = vld [vmem:[%s2719] ss:$2 sm:$0xff]
        %s2721 = scalar_lea.vmem [#allocation4], 1
        %v2722 = vld [vmem:[%s2721] ss:$2 sm:$0xff]
        %s2723 = scalar_lea.vmem [#allocation4], 17
        %v2724 = vld [vmem:[%s2723] ss:$2 sm:$0xff]
        %s2725 = scalar_lea.vmem [#allocation4], 33
        %v2726 = vld [vmem:[%s2725] ss:$2 sm:$0xff]
        %s2727 = scalar_lea.vmem [#allocation4], 49
        %v2728 = vld [vmem:[%s2727] ss:$2 sm:$0xff]
        %s2729 = scalar_lea.vmem [#allocation4], 65
        %v2730 = vld [vmem:[%s2729] ss:$2 sm:$0xff]
        %s2731 = scalar_lea.vmem [#allocation4], 81
        %v2732 = vld [vmem:[%s2731] ss:$2 sm:$0xff]
        %s2733 = scalar_lea.vmem [#allocation4], 97
        %v2734 = vld [vmem:[%s2733] ss:$2 sm:$0xff]
        %s2735 = scalar_lea.vmem [#allocation4], 113
        %v2736 = vld [vmem:[%s2735] ss:$2 sm:$0xff]
        %v2737 = vadd.f32 %v2706, %v2722
        %v2738 = vadd.f32 %v2708, %v2724
        %v2739 = vadd.f32 %v2710, %v2726
        %v2740 = vadd.f32 %v2712, %v2728
        %v2741 = vadd.f32 %v2714, %v2730
        %v2742 = vadd.f32 %v2716, %v2732
        %v2743 = vadd.f32 %v2718, %v2734
        %v2744 = vadd.f32 %v2720, %v2736
        %v2745 = vmul.f32 %v2737, 0.5
        %v2746 = vmul.f32 %v2738, 0.5
        %v2747 = vmul.f32 %v2739, 0.5
        %v2748 = vmul.f32 %v2740, 0.5
        %v2749 = vmul.f32 %v2741, 0.5
        %v2750 = vmul.f32 %v2742, 0.5
        %v2751 = vmul.f32 %v2743, 0.5
        %v2752 = vmul.f32 %v2744, 0.5
        %v2753 = vld [vmem:[%s4] sm:$0x1]
        %v2755 = vperm.slane %v2753, 0
        %v2757 = vadd.f32 %v2745, %v2755
        %v2758 = vadd.f32 %v2746, %v2755
        %v2759 = vadd.f32 %v2747, %v2755
        %v2760 = vadd.f32 %v2748, %v2755
        %v2761 = vadd.f32 %v2749, %v2755
        %v2762 = vadd.f32 %v2750, %v2755
        %v2763 = vadd.f32 %v2751, %v2755
        %v2764 = vadd.f32 %v2752, %v2755
        %2765 = vst.msk [vmem:[#allocation5] sm:$0xff] %vm2687, %v2757
        %2766 = vst.msk [vmem:[#allocation5 + $0x8] sm:$0xff] %vm2687, %v2758
        %2767 = vst.msk [vmem:[#allocation5 + $0x10] sm:$0xff] %vm2687, %v2759
        %2768 = vst.msk [vmem:[#allocation5 + $0x18] sm:$0xff] %vm2687, %v2760
        %2769 = vst.msk [vmem:[#allocation5 + $0x20] sm:$0xff] %vm2687, %v2761
        %2770 = vst.msk [vmem:[#allocation5 + $0x28] sm:$0xff] %vm2687, %v2762
        %2771 = vst.msk [vmem:[#allocation5 + $0x30] sm:$0xff] %vm2687, %v2763
        %2772 = vst.msk [vmem:[#allocation5 + $0x38] sm:$0xff] %vm2687, %v2764
        %v2773 = vld [vmem:[#allocation5] ss:$8 sm:$0xf]
        %v2774 = vld [vmem:[#allocation5] ss:$8 sm:$0xf0]
        %v2775 = vor.u32 %v2773, %v2774
        %v2776 = vld [vmem:[%s5] sm:$0xff]
        %v2777 = vld [vmem:[%s5 + $0x8] sm:$0xff]
        %v2778 = vld [vmem:[%s5 + $0x10] sm:$0xff]
        %v2779 = vld [vmem:[%s5 + $0x18] sm:$0xff]
        %v2780 = vld [vmem:[%s5 + $0x20] sm:$0xff]
        %v2781 = vld [vmem:[%s5 + $0x28] sm:$0xff]
        %v2782 = vld [vmem:[%s5 + $0x30] sm:$0xff]
        %v2783 = vld [vmem:[%s5 + $0x38] sm:$0xff]
        %v2784 = vld [vmem:[%s5 + $0x40] sm:$0xff]
        %v2785 = vld [vmem:[%s5 + $0x48] sm:$0xff]
        %s2786 = scalar_lea.vmem [#allocation5], 1
        %v2787 = vld [vmem:[%s2786] ss:$8 sm:$0xf]
        %v2788 = vld [vmem:[%s2786] ss:$8 sm:$0xf0]
        %v2789 = vor.u32 %v2787, %v2788
        %s2790 = scalar_lea.vmem %s5, 80
        %v2791 = vld [vmem:[%s2790] sm:$0xff]
        %v2792 = vld [vmem:[%s2790 + $0x8] sm:$0xff]
        %v2793 = vld [vmem:[%s2790 + $0x10] sm:$0xff]
        %v2794 = vld [vmem:[%s2790 + $0x18] sm:$0xff]
        %v2795 = vld [vmem:[%s2790 + $0x20] sm:$0xff]
        %v2796 = vld [vmem:[%s2790 + $0x28] sm:$0xff]
        %v2797 = vld [vmem:[%s2790 + $0x30] sm:$0xff]
        %v2798 = vld [vmem:[%s2790 + $0x38] sm:$0xff]
        %v2799 = vld [vmem:[%s2790 + $0x40] sm:$0xff]
        %v2800 = vld [vmem:[%s2790 + $0x48] sm:$0xff]
        %v2802 = vsel %vm2687, %v2789, 0
        %2804 = vmatpush.msra.mxu0 0.0
        %2805 = vmatpush.msra.mxu0 0.0
        %2806 = vmatpush.msra.mxu0 0.0
        %2807 = vmatpush.msra.mxu0 0.0
        %2808 = vmatpush.msra.mxu0 0.0
        %2809 = vmatpush.msra.mxu0 0.0
        %2810 = vmatpush.msra.mxu0 %v2800
        %2811 = vmatpush.msra.mxu0 %v2799
        %2812 = vmatpush.msra.mxu0 %v2798
        %2813 = vmatpush.msra.mxu0 %v2797
        %2814 = vmatpush.msra.mxu0 %v2796
        %2815 = vmatpush.msra.mxu0 %v2795
        %2816 = vmatpush.msra.mxu0 %v2794
        %2817 = vmatpush.msra.mxu0 %v2793
        %2818 = vmatpush.msra.mxu0 %v2792
        %2819 = vmatpush.msra.mxu0 %v2791
        %2820 = vmatmul.f32.gmra.mxu0 %v2802
        %v2821 = vpop.f32.mrf.mxu0
        %v2822 = vadd.f32 0.0, %v2821
        %2823 = vdwg.mxu0
        %v2825 = vsel %vm2687, %v2775, 0
        %2827 = vmatpush.msra.mxu0 0.0
        %2828 = vmatpush.msra.mxu0 0.0
        %2829 = vmatpush.msra.mxu0 0.0
        %2830 = vmatpush.msra.mxu0 0.0
        %2831 = vmatpush.msra.mxu0 0.0
        %2832 = vmatpush.msra.mxu0 0.0
        %2833 = vmatpush.msra.mxu0 %v2785
        %2834 = vmatpush.msra.mxu0 %v2784
        %2835 = vmatpush.msra.mxu0 %v2783
        %2836 = vmatpush.msra.mxu0 %v2782
        %2837 = vmatpush.msra.mxu0 %v2781
        %2838 = vmatpush.msra.mxu0 %v2780
        %2839 = vmatpush.msra.mxu0 %v2779
        %2840 = vmatpush.msra.mxu0 %v2778
        %2841 = vmatpush.msra.mxu0 %v2777
        %2842 = vmatpush.msra.mxu0 %v2776
        %2843 = vmatmul.f32.gmra.mxu0 %v2825
        %v2844 = vpop.f32.mrf.mxu0
        %v2845 = vadd.f32 %v2822, %v2844
        %2846 = vdwg.mxu0
        %s2847 = scalar_lea.vmem [#allocation5], 2
        %v2848 = vld [vmem:[%s2847] ss:$8 sm:$0xf]
        %v2849 = vld [vmem:[%s2847] ss:$8 sm:$0xf0]
        %v2850 = vor.u32 %v2848, %v2849
        %s2851 = scalar_lea.vmem %s5, 160
        %v2852 = vld [vmem:[%s2851] sm:$0xff]
        %v2853 = vld [vmem:[%s2851 + $0x8] sm:$0xff]
        %v2854 = vld [vmem:[%s2851 + $0x10] sm:$0xff]
        %v2855 = vld [vmem:[%s2851 + $0x18] sm:$0xff]
        %v2856 = vld [vmem:[%s2851 + $0x20] sm:$0xff]
        %v2857 = vld [vmem:[%s2851 + $0x28] sm:$0xff]
        %v2858 = vld [vmem:[%s2851 + $0x30] sm:$0xff]
        %v2859 = vld [vmem:[%s2851 + $0x38] sm:$0xff]
        %v2860 = vld [vmem:[%s2851 + $0x40] sm:$0xff]
        %v2861 = vld [vmem:[%s2851 + $0x48] sm:$0xff]
        %v2863 = vsel %vm2687, %v2850, 0
        %2865 = vmatpush.msra.mxu0 0.0
        %2866 = vmatpush.msra.mxu0 0.0
        %2867 = vmatpush.msra.mxu0 0.0
        %2868 = vmatpush.msra.mxu0 0.0
        %2869 = vmatpush.msra.mxu0 0.0
        %2870 = vmatpush.msra.mxu0 0.0
        %2871 = vmatpush.msra.mxu0 %v2861
        %2872 = vmatpush.msra.mxu0 %v2860
        %2873 = vmatpush.msra.mxu0 %v2859
        %2874 = vmatpush.msra.mxu0 %v2858
        %2875 = vmatpush.msra.mxu0 %v2857
        %2876 = vmatpush.msra.mxu0 %v2856
        %2877 = vmatpush.msra.mxu0 %v2855
        %2878 = vmatpush.msra.mxu0 %v2854
        %2879 = vmatpush.msra.mxu0 %v2853
        %2880 = vmatpush.msra.mxu0 %v2852
        %2881 = vmatmul.f32.gmra.mxu0 %v2863
        %v2882 = vpop.f32.mrf.mxu0
        %v2883 = vadd.f32 0.0, %v2882
        %2884 = vdwg.mxu0
        %v2885 = vadd.f32 %v2845, %v2883
        %s2886 = scalar_lea.vmem [#allocation5], 3
        %v2887 = vld [vmem:[%s2886] ss:$8 sm:$0xf]
        %v2888 = vld [vmem:[%s2886] ss:$8 sm:$0xf0]
        %v2889 = vor.u32 %v2887, %v2888
        %s2890 = scalar_lea.vmem %s5, 240
        %v2891 = vld [vmem:[%s2890] sm:$0xff]
        %v2892 = vld [vmem:[%s2890 + $0x8] sm:$0xff]
        %v2893 = vld [vmem:[%s2890 + $0x10] sm:$0xff]
        %v2894 = vld [vmem:[%s2890 + $0x18] sm:$0xff]
        %v2895 = vld [vmem:[%s2890 + $0x20] sm:$0xff]
        %v2896 = vld [vmem:[%s2890 + $0x28] sm:$0xff]
        %v2897 = vld [vmem:[%s2890 + $0x30] sm:$0xff]
        %v2898 = vld [vmem:[%s2890 + $0x38] sm:$0xff]
        %v2899 = vld [vmem:[%s2890 + $0x40] sm:$0xff]
        %v2900 = vld [vmem:[%s2890 + $0x48] sm:$0xff]
        %v2902 = vsel %vm2687, %v2889, 0
        %2904 = vmatpush.msra.mxu0 0.0
        %2905 = vmatpush.msra.mxu0 0.0
        %2906 = vmatpush.msra.mxu0 0.0
        %2907 = vmatpush.msra.mxu0 0.0
        %2908 = vmatpush.msra.mxu0 0.0
        %2909 = vmatpush.msra.mxu0 0.0
        %2910 = vmatpush.msra.mxu0 %v2900
        %2911 = vmatpush.msra.mxu0 %v2899
        %2912 = vmatpush.msra.mxu0 %v2898
        %2913 = vmatpush.msra.mxu0 %v2897
        %2914 = vmatpush.msra.mxu0 %v2896
        %2915 = vmatpush.msra.mxu0 %v2895
        %2916 = vmatpush.msra.mxu0 %v2894
        %2917 = vmatpush.msra.mxu0 %v2893
        %2918 = vmatpush.msra.mxu0 %v2892
        %2919 = vmatpush.msra.mxu0 %v2891
        %2920 = vmatmul.f32.gmra.mxu0 %v2902
        %v2921 = vpop.f32.mrf.mxu0
        %v2922 = vadd.f32 0.0, %v2921
        %2923 = vdwg.mxu0
        %v2924 = vadd.f32 %v2885, %v2922
        %s2925 = scalar_lea.vmem [#allocation5], 4
        %v2926 = vld [vmem:[%s2925] ss:$8 sm:$0xf]
        %v2927 = vld [vmem:[%s2925] ss:$8 sm:$0xf0]
        %v2928 = vor.u32 %v2926, %v2927
        %s2929 = scalar_lea.vmem %s5, 320
        %v2930 = vld [vmem:[%s2929] sm:$0xff]
        %v2931 = vld [vmem:[%s2929 + $0x8] sm:$0xff]
        %v2932 = vld [vmem:[%s2929 + $0x10] sm:$0xff]
        %v2933 = vld [vmem:[%s2929 + $0x18] sm:$0xff]
        %v2934 = vld [vmem:[%s2929 + $0x20] sm:$0xff]
        %v2935 = vld [vmem:[%s2929 + $0x28] sm:$0xff]
        %v2936 = vld [vmem:[%s2929 + $0x30] sm:$0xff]
        %v2937 = vld [vmem:[%s2929 + $0x38] sm:$0xff]
        %v2938 = vld [vmem:[%s2929 + $0x40] sm:$0xff]
        %v2939 = vld [vmem:[%s2929 + $0x48] sm:$0xff]
        %v2941 = vsel %vm2687, %v2928, 0
        %2943 = vmatpush.msra.mxu0 0.0
        %2944 = vmatpush.msra.mxu0 0.0
        %2945 = vmatpush.msra.mxu0 0.0
        %2946 = vmatpush.msra.mxu0 0.0
        %2947 = vmatpush.msra.mxu0 0.0
        %2948 = vmatpush.msra.mxu0 0.0
        %2949 = vmatpush.msra.mxu0 %v2939
        %2950 = vmatpush.msra.mxu0 %v2938
        %2951 = vmatpush.msra.mxu0 %v2937
        %2952 = vmatpush.msra.mxu0 %v2936
        %2953 = vmatpush.msra.mxu0 %v2935
        %2954 = vmatpush.msra.mxu0 %v2934
        %2955 = vmatpush.msra.mxu0 %v2933
        %2956 = vmatpush.msra.mxu0 %v2932
        %2957 = vmatpush.msra.mxu0 %v2931
        %2958 = vmatpush.msra.mxu0 %v2930
        %2959 = vmatmul.f32.gmra.mxu0 %v2941
        %v2960 = vpop.f32.mrf.mxu0
        %v2961 = vadd.f32 0.0, %v2960
        %2962 = vdwg.mxu0
        %v2963 = vadd.f32 %v2924, %v2961
        %v2964 = vld [vmem:[%s6] sm:$0x1]
        %v2966 = vperm.slane %v2964, 0
        %v2968 = vadd.f32 %v2963, %v2966
        %vm2969 = vcmp.ge.f32.partialorder %v2968, 0.0
        %v2970 = vmul.f32 %v2968, 0.01
        %v2971 = vsel %vm2969, %v2968, %v2970
        %v2972 = vld [vmem:[%s7] sm:$0xff]
        %v2973 = vld [vmem:[%s7 + $0x8] sm:$0xff]
        %v2974 = vld [vmem:[%s7 + $0x10] sm:$0xff]
        %v2975 = vld [vmem:[%s7 + $0x18] sm:$0xff]
        %v2976 = vld [vmem:[%s7 + $0x20] sm:$0xff]
        %v2977 = vld [vmem:[%s7 + $0x28] sm:$0xff]
        %v2978 = vld [vmem:[%s7 + $0x30] sm:$0xff]
        %v2979 = vld [vmem:[%s7 + $0x38] sm:$0xff]
        %v2980 = vld [vmem:[%s7 + $0x40] sm:$0xff]
        %v2981 = vld [vmem:[%s7 + $0x48] sm:$0xff]
        %v2982 = vld [vmem:[%s7 + $0x50] sm:$0xff]
        %v2983 = vld [vmem:[%s7 + $0x58] sm:$0xff]
        %v2984 = vld [vmem:[%s7 + $0x60] sm:$0xff]
        %v2985 = vld [vmem:[%s7 + $0x68] sm:$0xff]
        %v2986 = vld [vmem:[%s7 + $0x70] sm:$0xff]
        %v2987 = vld [vmem:[%s8] sm:$0x1]
        %v2989 = vperm.slane %v2987, 0
        %vm2991 = vcmask 982016
        %v2993 = vsel %vm2991, %v2971, 0
        %2995 = vmatpush.msra.mxu0 0.0
        %2996 = vmatpush.msra.mxu0 %v2986
        %2997 = vmatpush.msra.mxu0 %v2985
        %2998 = vmatpush.msra.mxu0 %v2984
        %2999 = vmatpush.msra.mxu0 %v2983
        %3000 = vmatpush.msra.mxu0 %v2982
        %3001 = vmatpush.msra.mxu0 %v2981
        %3002 = vmatpush.msra.mxu0 %v2980
        %3003 = vmatpush.msra.mxu0 %v2979
        %3004 = vmatpush.msra.mxu0 %v2978
        %3005 = vmatpush.msra.mxu0 %v2977
        %3006 = vmatpush.msra.mxu0 %v2976
        %3007 = vmatpush.msra.mxu0 %v2975
        %3008 = vmatpush.msra.mxu0 %v2974
        %3009 = vmatpush.msra.mxu0 %v2973
        %3010 = vmatpush.msra.mxu0 %v2972
        %3011 = vmatmul.f32.gmra.mxu0 %v2993
        %v3012 = vpop.f32.mrf.mxu0
        %v3013 = vadd.f32 %v2989, %v3012
        %3014 = vdwg.mxu0
        %vm3015 = vcmp.ge.f32.partialorder %v3013, 0.0
        %v3016 = vmul.f32 %v3013, 0.01
        %v3017 = vsel %vm3015, %v3013, %v3016
        %v3018 = vld [vmem:[%s9] sm:$0xff]
        %v3019 = vld [vmem:[%s9 + $0x8] sm:$0xff]
        %v3020 = vld [vmem:[%s9 + $0x10] sm:$0xff]
        %v3021 = vld [vmem:[%s9 + $0x18] sm:$0xff]
        %v3022 = vld [vmem:[%s9 + $0x20] sm:$0xff]
        %v3023 = vld [vmem:[%s9 + $0x28] sm:$0xff]
        %v3024 = vld [vmem:[%s9 + $0x30] sm:$0xff]
        %v3025 = vld [vmem:[%s9 + $0x38] sm:$0xff]
        %v3026 = vld [vmem:[%s9 + $0x40] sm:$0xff]
        %v3027 = vld [vmem:[%s9 + $0x48] sm:$0xff]
        %v3028 = vld [vmem:[%s9 + $0x50] sm:$0xf]
        %v3029 = vld [vmem:[%s10] sm:$0x1]
        %v3031 = vperm.slane %v3029, 0
        %v3034 = vsel %vm1753, %v3017, 0
        %v3037 = vsel %vm2022, %v3028, 0
        %3039 = vmatpush.msra.mxu0 0.0
        %3040 = vmatpush.msra.mxu0 0.0
        %3041 = vmatpush.msra.mxu0 0.0
        %3042 = vmatpush.msra.mxu0 0.0
        %3043 = vmatpush.msra.mxu0 0.0
        %3044 = vmatpush.msra.mxu0 %v3037
        %3045 = vmatpush.msra.mxu0 %v3027
        %3046 = vmatpush.msra.mxu0 %v3026
        %3047 = vmatpush.msra.mxu0 %v3025
        %3048 = vmatpush.msra.mxu0 %v3024
        %3049 = vmatpush.msra.mxu0 %v3023
        %3050 = vmatpush.msra.mxu0 %v3022
        %3051 = vmatpush.msra.mxu0 %v3021
        %3052 = vmatpush.msra.mxu0 %v3020
        %3053 = vmatpush.msra.mxu0 %v3019
        %3054 = vmatpush.msra.mxu0 %v3018
        %3055 = vmatmul.f32.gmra.mxu0 %v3034
        %v3056 = vpop.f32.mrf.mxu0
        %v3057 = vadd.f32 %v3031, %v3056
        %3058 = vdwg.mxu0
        %vm3059 = vcmask 80896
        %3060 = vst.msk [vmem:[%s380] sm:$0xff] %vm3059, %v3057
        %s3061 = sand.u32 %s269, 1
        %s3062 = scalar_lea.sflag [#allocation7], %s3061
        %s3063 = sand.u32 %s269, 1
        %s3064 = smul.addr %s3063, 8
        %s3065 = scalar_lea.vmem [#allocation6], %s3064
        // Predicated region
        $region65: #{lenet5_forward.1} parent=63 // pred_check
          %p3066 = pneg %p279
        $region66: #{lenet5_forward.1} parent=63 // pred_check_branch
          %3068 = sbr.rel (%p3066) target = $region68
        $region67: #{lenet5_forward.1} parent=63 // pred_region
          %3070 = vsyncadd %s3062, 0
          %s3071 = smul.addr %s25, 8
          %s3072 = scalar_lea.hbm %s11, %s3071
          %s3074 = sshll.u32 %s3065, 4
          %s3075 = int_to_ptr.vmem [resolvable:$true] %s3074
          %s3076 = sshll.u32 %s3072, 4
          %s3077 = int_to_ptr.hbm [resolvable:$true] %s3076
          %3079 = dma.vmem_to_hbm [thread:$0]  %s3075, 128, %s3077, %s3062
        $region68: #{lenet5_forward.1} parent=63 // pred_fallthru
          _
      $region64: #{lenet5_forward.1} parent=5 // pred_fallthru
        _
      %p3080 = scmp.le.s32.totalorder 2, %s20
      // Predicated region
      $region69: #{lenet5_forward.1} parent=5 // pred_check
        %p3081 = pneg %p3080
      $region70: #{lenet5_forward.1} parent=5 // pred_check_branch
        %3083 = sbr.rel (%p3081) target = $region72
      $region71: #{lenet5_forward.1} parent=5 // pred_region
        %s3084 = ssub.s32 %s20, 2
        // Predicated region
        $region73: #{lenet5_forward.1} parent=71 // pred_check
          %p3085 = pneg %p285
        $region74: #{lenet5_forward.1} parent=71 // pred_check_branch
          %3087 = sbr.rel (%p3085) target = $region76
        $region75: #{lenet5_forward.1} parent=71 // pred_region
          %s3088 = sand.u32 %s270, 1
          %s3089 = scalar_lea.sflag [#allocation7], %s3088
          %s3090 = sand.u32 %s270, 1
          %s3091 = smul.addr %s3090, 8
          %s3092 = scalar_lea.vmem [#allocation6], %s3091
          %3094 = dma.done %s3089, 128
        $region76: #{lenet5_forward.1} parent=71 // pred_fallthru
          _
      $region72: #{lenet5_forward.1} parent=5 // pred_fallthru
        _
    $region6: #{lenet5_forward.1} parent=1 // loop_footer
      %s24 = sadd.s32 1, %s20
    $region7: #{lenet5_forward.1} parent=1 // loop_footer_branch
      %19 = sbr.rel target = $region3
    $region8: #{lenet5_forward.1} parent=1 // loop_exit
      _
    %3095 = vsyncpa [#allocation7], 1
    %s3096 = scalar_lea.sflag [#allocation7], 1
    %3097 = vsyncpa %s3096, 1

</llo_original>
